<compile_context>
chip_gen: v7x
topology: tpu7x:2x2x1
jax: 0.10.0
libtpu: 0.0.40
codegen_flags: <defaults>
</compile_context>

<pallas_src>
import functools

import jax
import jax.numpy as jnp
from jax.experimental import pallas as pl
from jax.experimental.pallas import tpu as pltpu

VMEM_LIMIT = 32 * 1024 * 1024  # safe scoped-VMEM budget on v5e / v6e / v7x


def _pick_tile(dim, candidates):
    """Largest candidate evenly dividing `dim`, else the full dim
    (a full-extent block is always a legal BlockSpec)."""
    for c in candidates:
        if dim >= c and dim % c == 0:
            return c
    return dim


# ----------------------------- Pallas kernels ------------------------------

def _make_matmul_kernel(activation, has_residual):
    """Tiled matmul with f32 accumulator; optional GELU / residual epilogue."""

    def kernel(*refs):
        if has_residual:
            x_ref, w_ref, b_ref, r_ref, o_ref, acc_ref = refs
        else:
            x_ref, w_ref, b_ref, o_ref, acc_ref = refs
            r_ref = None

        @pl.when(pl.program_id(2) == 0)
        def _init():
            acc_ref[...] = jnp.zeros_like(acc_ref)

        acc_ref[...] += jnp.dot(x_ref[...], w_ref[...],
                                preferred_element_type=jnp.float32)

        @pl.when(pl.program_id(2) == pl.num_programs(2) - 1)
        def _finalize():
            out = acc_ref[...] + b_ref[...]
            if activation == 'gelu':
                # TODO(synk): PyTorch nn.GELU defaults to exact erf-GELU; the
                # tanh approximation is used for guaranteed Mosaic lowering
                # (max abs diff ~1e-3).
                out = jax.nn.gelu(out, approximate=True)
            if r_ref is not None:
                out = out + r_ref[...].astype(jnp.float32)
            o_ref[...] = out.astype(o_ref.dtype)

    return kernel


def _ln_matmul_kernel(x_ref, g_ref, bta_ref, w_ref, b_ref, o_ref, *, eps):
    """LayerNorm fused into the prologue of a matmul (full K = D per block)."""
    x = x_ref[...].astype(jnp.float32)
    mu = jnp.mean(x, axis=-1, keepdims=True)
    xc = x - mu
    var = jnp.mean(xc * xc, axis=-1, keepdims=True)
    h = (xc * jax.lax.rsqrt(var + eps)) * g_ref[...] + bta_ref[...]
    acc = jnp.dot(h.astype(jnp.bfloat16), w_ref[...],
                  preferred_element_type=jnp.float32)
    o_ref[...] = (acc + b_ref[...]).astype(o_ref.dtype)


def _mlp_kernel(x_ref, g_ref, bta_ref, w1_ref, b1_ref, w2_ref, b2_ref, o_ref,
                *, eps):
    """Fully fused MLP: LN -> fc1 -> GELU -> fc2 -> +residual (one HBM pass)."""
    x = x_ref[...].astype(jnp.float32)
    mu = jnp.mean(x, axis=-1, keepdims=True)
    xc = x - mu
    var = jnp.mean(xc * xc, axis=-1, keepdims=True)
    h = (xc * jax.lax.rsqrt(var + eps)) * g_ref[...] + bta_ref[...]
    h1 = jnp.dot(h.astype(jnp.bfloat16), w1_ref[...],
                 preferred_element_type=jnp.float32) + b1_ref[...]
    # TODO(synk): tanh-approximate GELU vs PyTorch's exact erf-GELU (~1e-3 abs).
    h1 = jax.nn.gelu(h1, approximate=True)
    h2 = jnp.dot(h1.astype(jnp.bfloat16), w2_ref[...],
                 preferred_element_type=jnp.float32) + b2_ref[...]
    o_ref[...] = (x + h2).astype(o_ref.dtype)


def _layernorm_kernel(x_ref, g_ref, b_ref, o_ref, *, eps):
    x = x_ref[...].astype(jnp.float32)
    mu = jnp.mean(x, axis=-1, keepdims=True)
    xc = x - mu
    var = jnp.mean(xc * xc, axis=-1, keepdims=True)
    y = xc * jax.lax.rsqrt(var + eps)
    o_ref[...] = (y * g_ref[...] + b_ref[...]).astype(o_ref.dtype)


def _flash_attn_kernel(q_ref, k_ref, v_ref, o_ref, m_sc, l_sc, acc_sc,
                       *, scale, heads):
    """Flash-style attention; grid = (B, q tiles, kv tiles), kv axis last.

    Reads head-split blocks straight out of the (B, T, 3, H, Dh) qkv tensor and
    writes the output directly in (B, T, D) token layout (no XLA transposes)."""
    ki = pl.program_id(2)
    dh = acc_sc.shape[-1]

    @pl.when(ki == 0)
    def _init():
        m_sc[...] = jnp.full_like(m_sc, -1e30)
        l_sc[...] = jnp.zeros_like(l_sc)
        acc_sc[...] = jnp.zeros_like(acc_sc)

    q = q_ref[...][0, :, 0]     # (tq,  H, Dh) bf16
    k = k_ref[...][0, :, 0]     # (tkv, H, Dh) bf16
    v = v_ref[...][0, :, 0]     # (tkv, H, Dh) bf16

    for h in range(heads):
        # fold 1/sqrt(Dh) into q (touches Tq*Dh elements instead of Tq*Tk)
        q_h = (q[:, h, :].astype(jnp.float32) * scale).astype(jnp.bfloat16)
        k_h = k[:, h, :]
        v_h = v[:, h, :]
        s = jnp.einsum('qd,kd->qk', q_h, k_h,
                       preferred_element_type=jnp.float32)          # (tq, tkv)
        m_prev = m_sc[h]
        m_new = jnp.maximum(m_prev, jnp.max(s, axis=-1, keepdims=True))
        alpha = jnp.exp(m_prev - m_new)
        p = jnp.exp(s - m_new)
        l_sc[h] = alpha * l_sc[h] + jnp.sum(p, axis=-1, keepdims=True)
        acc_sc[h] = alpha * acc_sc[h] + jnp.einsum(
            'qk,kd->qd', p.astype(jnp.bfloat16), v_h,
            preferred_element_type=jnp.float32)
        m_sc[h] = m_new

    @pl.when(ki == pl.num_programs(2) - 1)
    def _finalize():
        for h in range(heads):
            out_h = acc_sc[h] * pl.reciprocal(l_sc[h], approx=True)
            o_ref[0, :, h * dh:(h + 1) * dh] = out_h.astype(o_ref.dtype)


# ------------------------------ Pallas wrappers -----------------------------

def pallas_matmul(x2d, w, b, residual=None, activation=None,
                  out_dtype=jnp.bfloat16):
    """x2d: (M, K), w: (K, N), b: (N,) [+ residual (M, N)] -> (M, N)."""
    M, K = x2d.shape
    N = w.shape[1]
    tm = _pick_tile(M, (256, 128, 64, 32, 16, 8))
    tn = _pick_tile(N, (512, 256, 128))
    tk = _pick_tile(K, (512, 256, 128))
    grid = (M // tm, N // tn, K // tk)

    in_specs = [
        pl.BlockSpec((tm, tk), lambda i, j, k: (i, k)),
        pl.BlockSpec((tk, tn), lambda i, j, k: (k, j)),
        pl.BlockSpec((1, tn), lambda i, j, k: (0, j)),
    ]
    args = [x2d.astype(jnp.bfloat16), w.astype(jnp.bfloat16),
            b.reshape(1, N).astype(jnp.float32)]
    if residual is not None:
        in_specs.append(pl.BlockSpec((tm, tn), lambda i, j, k: (i, j)))
        args.append(residual.astype(jnp.bfloat16))

    return pl.pallas_call(
        _make_matmul_kernel(activation, residual is not None),
        out_shape=jax.ShapeDtypeStruct((M, N), out_dtype),
        grid=grid,
        in_specs=in_specs,
        out_specs=pl.BlockSpec((tm, tn), lambda i, j, k: (i, j)),
        scratch_shapes=[pltpu.VMEM((tm, tn), jnp.float32)],
        compiler_params=pltpu.CompilerParams(
            dimension_semantics=("parallel", "parallel", "arbitrary"),
            vmem_limit_bytes=VMEM_LIMIT),
        cost_estimate=pl.CostEstimate(
            flops=2 * M * N * K, transcendentals=0,
            bytes_accessed=2 * (M * K + K * N + M * N)),
    )(*args)


def pallas_ln_matmul(x2d, gamma, beta, w, b, eps=1e-6, out_dtype=jnp.bfloat16):
    """LayerNorm(x) @ w + b, LN fused into the matmul prologue."""
    M, D = x2d.shape
    N = w.shape[1]
    tm = _pick_tile(M, (256, 128, 64, 32, 16, 8))
    tn = _pick_tile(N, (512, 256, 128))
    return pl.pallas_call(
        functools.partial(_ln_matmul_kernel, eps=eps),
        out_shape=jax.ShapeDtypeStruct((M, N), out_dtype),
        grid=(M // tm, N // tn),
        in_specs=[
            pl.BlockSpec((tm, D), lambda i, j: (i, 0)),
            pl.BlockSpec((1, D), lambda i, j: (0, 0)),
            pl.BlockSpec((1, D), lambda i, j: (0, 0)),
            pl.BlockSpec((D, tn), lambda i, j: (0, j)),
            pl.BlockSpec((1, tn), lambda i, j: (0, j)),
        ],
        out_specs=pl.BlockSpec((tm, tn), lambda i, j: (i, j)),
        compiler_params=pltpu.CompilerParams(
            dimension_semantics=("parallel", "parallel"),
            vmem_limit_bytes=VMEM_LIMIT),
    )(x2d.astype(jnp.bfloat16),
      gamma.reshape(1, D).astype(jnp.float32),
      beta.reshape(1, D).astype(jnp.float32),
      w.astype(jnp.bfloat16), b.reshape(1, N).astype(jnp.float32))


def pallas_mlp_block(x2d, gamma, beta, w1, b1, w2, b2, eps=1e-6):
    """x + fc2(GELU(fc1(LN(x)))) fused into one kernel, hidden kept on-chip."""
    M, D = x2d.shape
    Hd = w1.shape[1]
    tm = _pick_tile(M, (128, 64, 32, 16, 8))
    return pl.pallas_call(
        functools.partial(_mlp_kernel, eps=eps),
        out_shape=jax.ShapeDtypeStruct((M, D), jnp.bfloat16),
        grid=(M // tm,),
        in_specs=[
            pl.BlockSpec((tm, D), lambda i: (i, 0)),
            pl.BlockSpec((1, D), lambda i: (0, 0)),
            pl.BlockSpec((1, D), lambda i: (0, 0)),
            pl.BlockSpec((D, Hd), lambda i: (0, 0)),
            pl.BlockSpec((1, Hd), lambda i: (0, 0)),
            pl.BlockSpec((Hd, D), lambda i: (0, 0)),
            pl.BlockSpec((1, D), lambda i: (0, 0)),
        ],
        out_specs=pl.BlockSpec((tm, D), lambda i: (i, 0)),
        compiler_params=pltpu.CompilerParams(
            dimension_semantics=("parallel",),
            vmem_limit_bytes=VMEM_LIMIT),
    )(x2d.astype(jnp.bfloat16),
      gamma.reshape(1, D).astype(jnp.float32),
      beta.reshape(1, D).astype(jnp.float32),
      w1.astype(jnp.bfloat16), b1.reshape(1, Hd).astype(jnp.float32),
      w2.astype(jnp.bfloat16), b2.reshape(1, D).astype(jnp.float32))


def pallas_layernorm(x2d, gamma, beta, eps=1e-6, out_dtype=jnp.bfloat16):
    """Row-tiled LayerNorm over the last dim."""
    M, D = x2d.shape
    tm = _pick_tile(M, (512, 256, 128, 64, 32, 16, 8))
    return pl.pallas_call(
        functools.partial(_layernorm_kernel, eps=eps),
        out_shape=jax.ShapeDtypeStruct((M, D), out_dtype),
        grid=(M // tm,),
        in_specs=[
            pl.BlockSpec((tm, D), lambda i: (i, 0)),
            pl.BlockSpec((1, D), lambda i: (0, 0)),
            pl.BlockSpec((1, D), lambda i: (0, 0)),
        ],
        out_specs=pl.BlockSpec((tm, D), lambda i: (i, 0)),
        compiler_params=pltpu.CompilerParams(
            dimension_semantics=("parallel",),
            vmem_limit_bytes=VMEM_LIMIT),
    )(x2d.astype(jnp.bfloat16),
      gamma.reshape(1, D).astype(jnp.float32),
      beta.reshape(1, D).astype(jnp.float32))


def pallas_flash_attention(qkv, heads):
    """qkv: (B, T, 3, H, Dh) -> attention output (B, T, H*Dh)."""
    B, T, three, H, Dh = qkv.shape
    assert three == 3 and H == heads
    D = H * Dh
    tq = _pick_tile(T, (256, 128))
    tkv = _pick_tile(T, (512, 256, 128))
    qkv_b = qkv.astype(jnp.bfloat16)
    return pl.pallas_call(
        functools.partial(_flash_attn_kernel, scale=Dh ** -0.5, heads=H),
        out_shape=jax.ShapeDtypeStruct((B, T, D), jnp.bfloat16),
        grid=(B, T // tq, T // tkv),
        in_specs=[
            pl.BlockSpec((1, tq, 1, H, Dh), lambda b, qi, ki: (b, qi, 0, 0, 0)),
            pl.BlockSpec((1, tkv, 1, H, Dh), lambda b, qi, ki: (b, ki, 1, 0, 0)),
            pl.BlockSpec((1, tkv, 1, H, Dh), lambda b, qi, ki: (b, ki, 2, 0, 0)),
        ],
        out_specs=pl.BlockSpec((1, tq, D), lambda b, qi, ki: (b, qi, 0)),
        scratch_shapes=[
            pltpu.VMEM((H, tq, 1), jnp.float32),   # running max
            pltpu.VMEM((H, tq, 1), jnp.float32),   # running denom
            pltpu.VMEM((H, tq, Dh), jnp.float32),  # output accumulator
        ],
        compiler_params=pltpu.CompilerParams(
            dimension_semantics=("parallel", "parallel", "arbitrary"),
            vmem_limit_bytes=VMEM_LIMIT),
    )(qkv_b, qkv_b, qkv_b)


# --------------------------------- glue ------------------------------------

def extract_patches(x, p):
    """NCHW -> (B, num_patches, C*p*p), feature order (c, u, v) to match
    Conv2d(kernel=stride=patch) patch-embed semantics."""
    B, C, H, W = x.shape
    hp, wp = H // p, W // p
    x = x.reshape(B, C, hp, p, wp, p)
    x = jnp.transpose(x, (0, 2, 4, 1, 3, 5))
    return x.reshape(B, hp * wp, C * p * p)


def unpatchify(y, img_size, patch_size, out_chans):
    """(B, N, p*p*C) -> NCHW image (MAE convention, feature order (p, q, c))."""
    p, c = patch_size, out_chans
    hp, wp = img_size[0] // p, img_size[1] // p
    B = y.shape[0]
    y = y.reshape(B, hp, wp, p, p, c)
    y = jnp.einsum('nhwpqc->nchpwq', y)
    return y.reshape(B, c, hp * p, wp * p)


def transformer_block(x, bp, heads, eps=1e-6):
    """Pre-norm ViT block: x + Attn(LN(x)); x + MLP(LN(x)). 4 pallas_calls,
    zero XLA transposes (only metadata reshapes)."""
    B, T, D = x.shape
    dh = D // heads
    x2d = x.reshape(B * T, D)

    qkv = pallas_ln_matmul(x2d, bp['ln1_g'], bp['ln1_b'],
                           bp['qkv_w'], bp['qkv_b'], eps=eps)      # (B*T, 3D)
    qkv = qkv.reshape(B, T, 3, heads, dh)                          # metadata only

    o = pallas_flash_attention(qkv, heads)                         # (B, T, D)
    o2d = o.reshape(B * T, D)                                      # metadata only

    x2d = pallas_matmul(o2d, bp['proj_w'], bp['proj_b'], residual=x2d)
    x2d = pallas_mlp_block(x2d, bp['ln2_g'], bp['ln2_b'],
                           bp['fc1_w'], bp['fc1_b'],
                           bp['fc2_w'], bp['fc2_b'], eps=eps)
    return x2d.reshape(B, T, D)


# ---------------------------- model definition ------------------------------

def encoder_forward_features(x_img, ep, cfg):
    """DINOv2-style forward_features: returns normed [cls ; patch] tokens."""
    B = x_img.shape[0]
    D = cfg['embed_dim']
    patches = extract_patches(x_img, cfg['patch_size'])            # (B, Np, Cpp)
    Np = patches.shape[1]
    tok = pallas_matmul(patches.reshape(B * Np, -1),
                        ep['patch_w'], ep['patch_b']).reshape(B, Np, D)
    cls = jnp.broadcast_to(ep['cls_token'].astype(jnp.bfloat16), (B, 1, D))
    x = jnp.concatenate([cls, tok], axis=1) + ep['pos_embed'].astype(jnp.bfloat16)
    for bp in ep['blocks']:
        x = transformer_block(x, bp, cfg['heads'])
    T = x.shape[1]
    # row 0 == x_norm_clstoken, rows 1: == x_norm_patchtokens
    xn = pallas_layernorm(x.reshape(B * T, D),
                          ep['norm_g'], ep['norm_b']).reshape(B, T, D)
    return xn


def decoder_forward(x, dp, cfg):
    """MAE-style decoder: embed -> blocks -> (LN fused into) pred -> unpatchify."""
    B, T, D = x.shape
    dd = cfg['dec_dim']
    y = pallas_matmul(x.reshape(B * T, D),
                      dp['embed_w'], dp['embed_b']).reshape(B, T, dd)
    y = y + dp['pos_embed'].astype(jnp.bfloat16)
    for bp in dp['blocks']:
        y = transformer_block(y, bp, cfg['dec_heads'])
    y = pallas_ln_matmul(y.reshape(B * T, dd), dp['norm_g'], dp['norm_b'],
                         dp['pred_w'], dp['pred_b'], out_dtype=jnp.float32)
    pp = cfg['patch_size'] ** 2 * cfg['out_chans']
    y = y.reshape(B, T, pp)[:, 1:, :]                              # drop cls token
    return unpatchify(y, cfg['img_size'], cfg['patch_size'], cfg['out_chans'])


def encoder_decoder_forward(params, x_img, cfg):
    """Equivalent of EncoderDecoder.forward with vit_encoder=True.
    Returns (decoder_output_NCHW, encoder tokens (B, N+1, D))."""
    tokens = encoder_forward_features(x_img, params['encoder'], cfg)
    output = decoder_forward(tokens, params['decoder'], cfg)
    return output, tokens.astype(jnp.float32)


# ------------------------------ parameter init ------------------------------

def _init_block(key, dim, mlp_ratio):
    hidden = int(dim * mlp_ratio)
    ks = jax.random.split(key, 4)
    f32, bf16 = jnp.float32, jnp.bfloat16
    return {
        'ln1_g': jnp.ones((dim,), f32), 'ln1_b': jnp.zeros((dim,), f32),
        'qkv_w': (0.02 * jax.random.normal(ks[0], (dim, 3 * dim), f32)).astype(bf16),
        'qkv_b': jnp.zeros((3 * dim,), f32),
        'proj_w': (0.02 * jax.random.normal(ks[1], (dim, dim), f32)).astype(bf16),
        'proj_b': jnp.zeros((dim,), f32),
        'ln2_g': jnp.ones((dim,), f32), 'ln2_b': jnp.zeros((dim,), f32),
        'fc1_w': (0.02 * jax.random.normal(ks[2], (dim, hidden), f32)).astype(bf16),
        'fc1_b': jnp.zeros((hidden,), f32),
        'fc2_w': (0.02 * jax.random.normal(ks[3], (hidden, dim), f32)).astype(bf16),
        'fc2_b': jnp.zeros((dim,), f32),
    }


def init_params(key, cfg):
    f32, bf16 = jnp.float32, jnp.bfloat16
    p = cfg['patch_size']
    n_patch = (cfg['img_size'][0] // p) * (cfg['img_size'][1] // p)
    T = n_patch + 1
    D, dd = cfg['embed_dim'], cfg['dec_dim']
    k_enc, k_dec = jax.random.split(key)

    ke = jax.random.split(k_enc, 4 + cfg['depth'])
    enc = {
        'patch_w': (0.02 * jax.random.normal(
            ke[0], (cfg['in_chans'] * p * p, D), f32)).astype(bf16),
        'patch_b': jnp.zeros((D,), f32),
        'cls_token': (0.02 * jax.random.normal(ke[1], (1, 1, D), f32)).astype(bf16),
        'pos_embed': (0.02 * jax.random.normal(ke[2], (1, T, D), f32)).astype(bf16),
        'norm_g': jnp.ones((D,), f32), 'norm_b': jnp.zeros((D,), f32),
        'blocks': [_init_block(ke[4 + i], D, cfg['mlp_ratio'])
                   for i in range(cfg['depth'])],
    }

    kd = jax.random.split(k_dec, 4 + cfg['dec_depth'])
    dec = {
        'embed_w': (0.02 * jax.random.normal(kd[0], (D, dd), f32)).astype(bf16),
        'embed_b': jnp.zeros((dd,), f32),
        'pos_embed': (0.02 * jax.random.normal(kd[1], (1, T, dd), f32)).astype(bf16),
        'norm_g': jnp.ones((dd,), f32), 'norm_b': jnp.zeros((dd,), f32),
        'pred_w': (0.02 * jax.random.normal(
            kd[2], (dd, p * p * cfg['out_chans']), f32)).astype(bf16),
        'pred_b': jnp.zeros((p * p * cfg['out_chans'],), f32),
        'blocks': [_init_block(kd[4 + i], dd, cfg['mlp_ratio'])
                   for i in range(cfg['dec_depth'])],
    }
    return {'encoder': enc, 'decoder': dec}


# ----------------------------------- main -----------------------------------

if __name__ == "__main__":
    cfg = dict(
        img_size=(16, 16),
        patch_size=4,
        in_chans=3,
        embed_dim=32,
        heads=4,
        depth=2,
        mlp_ratio=4,
        dec_dim=32,
        dec_heads=4,
        dec_depth=1,
        out_chans=3,
    )

    key = jax.random.PRNGKey(0)
    k_param, k_data = jax.random.split(key)
    params = init_params(k_param, cfg)

    B = 2
    x_img = jax.random.normal(
        k_data, (B, cfg['in_chans'], cfg['img_size'][0], cfg['img_size'][1]),
        jnp.float32)

    fwd = jax.jit(functools.partial(encoder_decoder_forward, cfg=cfg))
    output, tokens = fwd(params, x_img)
    jax.block_until_ready((output, tokens))

    n_patches = (cfg['img_size'][0] // cfg['patch_size']) * \
                (cfg['img_size'][1] // cfg['patch_size'])
    assert output.shape == (B, cfg['out_chans'],
                            cfg['img_size'][0], cfg['img_size'][1])
    assert tokens.shape == (B, n_patches + 1, cfg['embed_dim'])
    assert bool(jnp.isfinite(output).all()) and bool(jnp.isfinite(tokens).all())

    print("KERNEL_OK")
</pallas_src>

<mosaic_0001>
module attributes {stable_mosaic.version = 11 : i64} {
  func.func @kernel(%arg0: i32, %arg1: i32, %arg2: i32, %arg3: memref<32x48xbf16, #tpu.memory_space<vmem>>, %arg4: memref<48x32xbf16, #tpu.memory_space<vmem>>, %arg5: memref<1x32xf32, #tpu.memory_space<vmem>>, %arg6: memref<32x32xbf16, #tpu.memory_space<vmem>>, %arg7: memref<32x32xf32, #tpu.memory_space<vmem>>) attributes {dimension_semantics = [#tpu.dimension_semantics<parallel>, #tpu.dimension_semantics<parallel>, #tpu.dimension_semantics<arbitrary>], iteration_bounds = array<i64: 1, 1, 1>, scalar_prefetch = 0 : i64, scratch_operands = 1 : i64, tpu.core_type = #tpu.core_type<tc>, window_params = [{transform_indices = @transform_0, window_bounds = array<i64: 32, 48>}, {transform_indices = @transform_1, window_bounds = array<i64: 48, 32>}, {transform_indices = @transform_2, window_bounds = array<i64: 1, 32>}, {transform_indices = @transform_3, window_bounds = array<i64: 32, 32>}]} {
    %c0_i32 = arith.constant 0 : i32
    %0 = arith.cmpi eq, %arg2, %c0_i32 : i32
    %1 = arith.extui %0 : i1 to i32
    %c0_i32_0 = arith.constant 0 : i32
    %2 = arith.cmpi ne, %1, %c0_i32_0 : i32
    scf.if %2 {
      %cst_10 = arith.constant 0.000000e+00 : f32
      %12 = vector.broadcast %cst_10 : f32 to vector<32x32xf32>
      %c0_11 = arith.constant 0 : index
      %c0_12 = arith.constant 0 : index
      %13 = vector.load %arg7[%c0_11, %c0_12] : memref<32x32xf32, #tpu.memory_space<vmem>>, vector<32x32xf32>
      tpu.vector_store %arg7[%c0_11, %c0_12], %12 {strides = array<i32>} : memref<32x32xf32, #tpu.memory_space<vmem>>, vector<32x32xf32>,
    } else {
    }
    %c0 = arith.constant 0 : index
    %c0_1 = arith.constant 0 : index
    %3 = vector.load %arg7[%c0, %c0_1] : memref<32x32xf32, #tpu.memory_space<vmem>>, vector<32x32xf32>
    %c0_2 = arith.constant 0 : index
    %c0_3 = arith.constant 0 : index
    %4 = vector.load %arg3[%c0_2, %c0_3] : memref<32x48xbf16, #tpu.memory_space<vmem>>, vector<32x48xbf16>
    %c0_4 = arith.constant 0 : index
    %c0_5 = arith.constant 0 : index
    %5 = vector.load %arg4[%c0_4, %c0_5] : memref<48x32xbf16, #tpu.memory_space<vmem>>, vector<48x32xbf16>
    %cst = arith.constant dense<0.000000e+00> : vector<32x32xf32>
    %6 = tpu.matmul %4, %5, %cst {dimension_numbers = #tpu.dot_dimension_numbers<[1], [0], [0], [1], [0, 0, 1, 1], [], []>} : vector<32x48xbf16>, vector<48x32xbf16>, vector<32x32xf32> -> vector<32x32xf32>
    %7 = arith.addf %3, %6 : vector<32x32xf32>
    %c0_6 = arith.constant 0 : index
    %c0_7 = arith.constant 0 : index
    %8 = vector.load %arg7[%c0_6, %c0_7] : memref<32x32xf32, #tpu.memory_space<vmem>>, vector<32x32xf32>
    tpu.vector_store %arg7[%c0_6, %c0_7], %7 {strides = array<i32>} : memref<32x32xf32, #tpu.memory_space<vmem>>, vector<32x32xf32>,
    %c0_i32_8 = arith.constant 0 : i32
    %9 = arith.cmpi eq, %arg2, %c0_i32_8 : i32
    %10 = arith.extui %9 : i1 to i32
    %c0_i32_9 = arith.constant 0 : i32
    %11 = arith.cmpi ne, %10, %c0_i32_9 : i32
    scf.if %11 {
      %c0_10 = arith.constant 0 : index
      %c0_11 = arith.constant 0 : index
      %12 = vector.load %arg7[%c0_10, %c0_11] : memref<32x32xf32, #tpu.memory_space<vmem>>, vector<32x32xf32>
      %c0_12 = arith.constant 0 : index
      %c0_13 = arith.constant 0 : index
      %13 = vector.load %arg5[%c0_12, %c0_13] : memref<1x32xf32, #tpu.memory_space<vmem>>, vector<1x32xf32>
      %14 = vector.broadcast %13 : vector<1x32xf32> to vector<32x32xf32>
      %15 = arith.addf %12, %14 : vector<32x32xf32>
      %16 = arith.truncf %15 : vector<32x32xf32> to vector<32x32xbf16>
      %c0_14 = arith.constant 0 : index
      %c0_15 = arith.constant 0 : index
      %17 = vector.load %arg6[%c0_14, %c0_15] : memref<32x32xbf16, #tpu.memory_space<vmem>>, vector<32x32xbf16>
      tpu.vector_store %arg6[%c0_14, %c0_15], %16 {strides = array<i32>} : memref<32x32xbf16, #tpu.memory_space<vmem>>, vector<32x32xbf16>,
    } else {
    }
    return
  }
  func.func @transform_0(%arg0: i32, %arg1: i32, %arg2: i32) -> (i32, i32) {
    %c0_i32 = arith.constant 0 : i32
    return %arg0, %arg2 : i32, i32
  }
  func.func @transform_1(%arg0: i32, %arg1: i32, %arg2: i32) -> (i32, i32) {
    %c0_i32 = arith.constant 0 : i32
    return %arg2, %arg1 : i32, i32
  }
  func.func @transform_2(%arg0: i32, %arg1: i32, %arg2: i32) -> (i32, i32) {
    %c0_i32 = arith.constant 0 : i32
    %c0_i32_0 = arith.constant 0 : i32
    return %c0_i32, %arg1 : i32, i32
  }
  func.func @transform_3(%arg0: i32, %arg1: i32, %arg2: i32) -> (i32, i32) {
    %c0_i32 = arith.constant 0 : i32
    return %arg0, %arg1 : i32, i32
  }
}

module attributes {stable_mosaic.version = 11 : i64} {
  func.func @_ln_matmul_kernel(%arg0: i32, %arg1: i32, %arg2: memref<34x32xbf16, #tpu.memory_space<vmem>>, %arg3: memref<1x32xf32, #tpu.memory_space<vmem>>, %arg4: memref<1x32xf32, #tpu.memory_space<vmem>>, %arg5: memref<32x96xbf16, #tpu.memory_space<vmem>>, %arg6: memref<1x96xf32, #tpu.memory_space<vmem>>, %arg7: memref<34x96xbf16, #tpu.memory_space<vmem>>) attributes {dimension_semantics = [#tpu.dimension_semantics<parallel>, #tpu.dimension_semantics<parallel>], iteration_bounds = array<i64: 1, 1>, scalar_prefetch = 0 : i64, scratch_operands = 0 : i64, tpu.core_type = #tpu.core_type<tc>, window_params = [{transform_indices = @transform_0, window_bounds = array<i64: 34, 32>}, {pipeline_mode = #tpu.pipeline_mode<synchronous>, transform_indices = @transform_1, window_bounds = array<i64: 1, 32>}, {pipeline_mode = #tpu.pipeline_mode<synchronous>, transform_indices = @transform_2, window_bounds = array<i64: 1, 32>}, {transform_indices = @transform_3, window_bounds = array<i64: 32, 96>}, {transform_indices = @transform_4, window_bounds = array<i64: 1, 96>}, {transform_indices = @transform_5, window_bounds = array<i64: 34, 96>}]} {
    %c0 = arith.constant 0 : index
    %c0_0 = arith.constant 0 : index
    %0 = vector.load %arg2[%c0, %c0_0] : memref<34x32xbf16, #tpu.memory_space<vmem>>, vector<34x32xbf16>
    %1 = arith.extf %0 : vector<34x32xbf16> to vector<34x32xf32>
    %cst = arith.constant dense<0.000000e+00> : vector<34xf32>
    %2 = vector.multi_reduction <add>, %1, %cst [1] : vector<34x32xf32> to vector<34xf32>
    %3 = vector.shape_cast %2 : vector<34xf32> to vector<34x1xf32>
    %cst_1 = arith.constant 3.200000e+01 : f32
    %4 = vector.broadcast %cst_1 : f32 to vector<34x1xf32>
    %5 = arith.divf %3, %4 : vector<34x1xf32>
    %6 = vector.broadcast %5 : vector<34x1xf32> to vector<34x32xf32>
    %7 = arith.subf %1, %6 : vector<34x32xf32>
    %8 = arith.mulf %7, %7 : vector<34x32xf32>
    %cst_2 = arith.constant dense<0.000000e+00> : vector<34xf32>
    %9 = vector.multi_reduction <add>, %8, %cst_2 [1] : vector<34x32xf32> to vector<34xf32>
    %10 = vector.shape_cast %9 : vector<34xf32> to vector<34x1xf32>
    %cst_3 = arith.constant 3.200000e+01 : f32
    %11 = vector.broadcast %cst_3 : f32 to vector<34x1xf32>
    %12 = arith.divf %10, %11 : vector<34x1xf32>
    %cst_4 = arith.constant 9.99999997E-7 : f32
    %13 = vector.broadcast %cst_4 : f32 to vector<34x1xf32>
    %14 = arith.addf %12, %13 : vector<34x1xf32>
    %15 = math.rsqrt %14 : vector<34x1xf32>
    %16 = vector.broadcast %15 : vector<34x1xf32> to vector<34x32xf32>
    %17 = arith.mulf %7, %16 : vector<34x32xf32>
    %c0_5 = arith.constant 0 : index
    %c0_6 = arith.constant 0 : index
    %18 = vector.load %arg3[%c0_5, %c0_6] : memref<1x32xf32, #tpu.memory_space<vmem>>, vector<1x32xf32>
    %19 = vector.broadcast %18 : vector<1x32xf32> to vector<34x32xf32>
    %20 = arith.mulf %17, %19 : vector<34x32xf32>
    %c0_7 = arith.constant 0 : index
    %c0_8 = arith.constant 0 : index
    %21 = vector.load %arg4[%c0_7, %c0_8] : memref<1x32xf32, #tpu.memory_space<vmem>>, vector<1x32xf32>
    %22 = vector.broadcast %21 : vector<1x32xf32> to vector<34x32xf32>
    %23 = arith.addf %20, %22 : vector<34x32xf32>
    %24 = arith.truncf %23 : vector<34x32xf32> to vector<34x32xbf16>
    %c0_9 = arith.constant 0 : index
    %c0_10 = arith.constant 0 : index
    %25 = vector.load %arg5[%c0_9, %c0_10] : memref<32x96xbf16, #tpu.memory_space<vmem>>, vector<32x96xbf16>
    %cst_11 = arith.constant dense<0.000000e+00> : vector<34x96xf32>
    %26 = tpu.matmul %24, %25, %cst_11 {dimension_numbers = #tpu.dot_dimension_numbers<[1], [0], [0], [1], [0, 0, 1, 1], [], []>} : vector<34x32xbf16>, vector<32x96xbf16>, vector<34x96xf32> -> vector<34x96xf32>
    %c0_12 = arith.constant 0 : index
    %c0_13 = arith.constant 0 : index
    %27 = vector.load %arg6[%c0_12, %c0_13] : memref<1x96xf32, #tpu.memory_space<vmem>>, vector<1x96xf32>
    %28 = vector.broadcast %27 : vector<1x96xf32> to vector<34x96xf32>
    %29 = arith.addf %26, %28 : vector<34x96xf32>
    %30 = arith.truncf %29 : vector<34x96xf32> to vector<34x96xbf16>
    %c0_14 = arith.constant 0 : index
    %c0_15 = arith.constant 0 : index
    %31 = vector.load %arg7[%c0_14, %c0_15] : memref<34x96xbf16, #tpu.memory_space<vmem>>, vector<34x96xbf16>
    tpu.vector_store %arg7[%c0_14, %c0_15], %30 {strides = array<i32>} : memref<34x96xbf16, #tpu.memory_space<vmem>>, vector<34x96xbf16>,
    return
  }
  func.func @transform_0(%arg0: i32, %arg1: i32) -> (i32, i32) {
    %c0_i32 = arith.constant 0 : i32
    %c0_i32_0 = arith.constant 0 : i32
    return %arg0, %c0_i32 : i32, i32
  }
  func.func @transform_1(%arg0: i32, %arg1: i32) -> (i32, i32) {
    %c0_i32 = arith.constant 0 : i32
    %c0_i32_0 = arith.constant 0 : i32
    %c0_i32_1 = arith.constant 0 : i32
    return %c0_i32, %c0_i32_0 : i32, i32
  }
  func.func @transform_2(%arg0: i32, %arg1: i32) -> (i32, i32) {
    %c0_i32 = arith.constant 0 : i32
    %c0_i32_0 = arith.constant 0 : i32
    %c0_i32_1 = arith.constant 0 : i32
    return %c0_i32, %c0_i32_0 : i32, i32
  }
  func.func @transform_3(%arg0: i32, %arg1: i32) -> (i32, i32) {
    %c0_i32 = arith.constant 0 : i32
    %c0_i32_0 = arith.constant 0 : i32
    return %c0_i32, %arg1 : i32, i32
  }
  func.func @transform_4(%arg0: i32, %arg1: i32) -> (i32, i32) {
    %c0_i32 = arith.constant 0 : i32
    %c0_i32_0 = arith.constant 0 : i32
    return %c0_i32, %arg1 : i32, i32
  }
  func.func @transform_5(%arg0: i32, %arg1: i32) -> (i32, i32) {
    %c0_i32 = arith.constant 0 : i32
    return %arg0, %arg1 : i32, i32
  }
}

module attributes {stable_mosaic.version = 11 : i64} {
  func.func @_flash_attn_kernel(%arg0: i32, %arg1: i32, %arg2: i32, %arg3: memref<1x17x1x4x8xbf16, #tpu.memory_space<vmem>>, %arg4: memref<1x17x1x4x8xbf16, #tpu.memory_space<vmem>>, %arg5: memref<1x17x1x4x8xbf16, #tpu.memory_space<vmem>>, %arg6: memref<1x17x32xbf16, #tpu.memory_space<vmem>>, %arg7: memref<4x17x1xf32, #tpu.memory_space<vmem>>, %arg8: memref<4x17x1xf32, #tpu.memory_space<vmem>>, %arg9: memref<4x17x8xf32, #tpu.memory_space<vmem>>) attributes {dimension_semantics = [#tpu.dimension_semantics<parallel>, #tpu.dimension_semantics<parallel>, #tpu.dimension_semantics<arbitrary>], iteration_bounds = array<i64: 2, 1, 1>, scalar_prefetch = 0 : i64, scratch_operands = 3 : i64, tpu.core_type = #tpu.core_type<tc>, window_params = [{transform_indices = @transform_0, window_bounds = array<i64: 1, 17, 1, 4, 8>}, {transform_indices = @transform_1, window_bounds = array<i64: 1, 17, 1, 4, 8>}, {transform_indices = @transform_2, window_bounds = array<i64: 1, 17, 1, 4, 8>}, {transform_indices = @transform_3, window_bounds = array<i64: 1, 17, 32>}]} {
    %c0_i32 = arith.constant 0 : i32
    %0 = arith.cmpi eq, %arg2, %c0_i32 : i32
    %1 = arith.extui %0 : i1 to i32
    %c0_i32_0 = arith.constant 0 : i32
    %2 = arith.cmpi ne, %1, %c0_i32_0 : i32
    scf.if %2 {
      %cst_105 = arith.constant -1.000000e+30 : f32
      %184 = vector.broadcast %cst_105 : f32 to vector<4x17x1xf32>
      %c0_106 = arith.constant 0 : index
      %c0_107 = arith.constant 0 : index
      %c0_108 = arith.constant 0 : index
      %185 = vector.load %arg7[%c0_106, %c0_107, %c0_108] : memref<4x17x1xf32, #tpu.memory_space<vmem>>, vector<4x17x1xf32>
      tpu.vector_store %arg7[%c0_106, %c0_107, %c0_108], %184 {strides = array<i32>} : memref<4x17x1xf32, #tpu.memory_space<vmem>>, vector<4x17x1xf32>,
      %cst_109 = arith.constant 0.000000e+00 : f32
      %186 = vector.broadcast %cst_109 : f32 to vector<4x17x1xf32>
      %c0_110 = arith.constant 0 : index
      %c0_111 = arith.constant 0 : index
      %c0_112 = arith.constant 0 : index
      %187 = vector.load %arg8[%c0_110, %c0_111, %c0_112] : memref<4x17x1xf32, #tpu.memory_space<vmem>>, vector<4x17x1xf32>
      tpu.vector_store %arg8[%c0_110, %c0_111, %c0_112], %186 {strides = array<i32>} : memref<4x17x1xf32, #tpu.memory_space<vmem>>, vector<4x17x1xf32>,
      %cst_113 = arith.constant 0.000000e+00 : f32
      %188 = vector.broadcast %cst_113 : f32 to vector<4x17x8xf32>
      %c0_114 = arith.constant 0 : index
      %c0_115 = arith.constant 0 : index
      %c0_116 = arith.constant 0 : index
      %189 = vector.load %arg9[%c0_114, %c0_115, %c0_116] : memref<4x17x8xf32, #tpu.memory_space<vmem>>, vector<4x17x8xf32>
      tpu.vector_store %arg9[%c0_114, %c0_115, %c0_116], %188 {strides = array<i32>} : memref<4x17x8xf32, #tpu.memory_space<vmem>>, vector<4x17x8xf32>,
    } else {
    }
    %c0 = arith.constant 0 : index
    %c0_1 = arith.constant 0 : index
    %c0_2 = arith.constant 0 : index
    %c0_3 = arith.constant 0 : index
    %c0_4 = arith.constant 0 : index
    %3 = vector.load %arg3[%c0, %c0_1, %c0_2, %c0_3, %c0_4] : memref<1x17x1x4x8xbf16, #tpu.memory_space<vmem>>, vector<1x17x1x4x8xbf16>
    %4 = vector.shape_cast %3 : vector<1x17x1x4x8xbf16> to vector<17x4x8xbf16>
    %c0_5 = arith.constant 0 : index
    %c0_6 = arith.constant 0 : index
    %c0_7 = arith.constant 0 : index
    %c0_8 = arith.constant 0 : index
    %c0_9 = arith.constant 0 : index
    %5 = vector.load %arg4[%c0_5, %c0_6, %c0_7, %c0_8, %c0_9] : memref<1x17x1x4x8xbf16, #tpu.memory_space<vmem>>, vector<1x17x1x4x8xbf16>
    %6 = vector.shape_cast %5 : vector<1x17x1x4x8xbf16> to vector<17x4x8xbf16>
    %c0_10 = arith.constant 0 : index
    %c0_11 = arith.constant 0 : index
    %c0_12 = arith.constant 0 : index
    %c0_13 = arith.constant 0 : index
    %c0_14 = arith.constant 0 : index
    %7 = vector.load %arg5[%c0_10, %c0_11, %c0_12, %c0_13, %c0_14] : memref<1x17x1x4x8xbf16, #tpu.memory_space<vmem>>, vector<1x17x1x4x8xbf16>
    %8 = vector.shape_cast %7 : vector<1x17x1x4x8xbf16> to vector<17x4x8xbf16>
    %9 = vector.extract_strided_slice %4 {offsets = [0, 0, 0], sizes = [17, 1, 8], strides = [1, 1, 1]} : vector<17x4x8xbf16> to vector<17x1x8xbf16>
    %10 = vector.shape_cast %9 : vector<17x1x8xbf16> to vector<17x8xbf16>
    %11 = arith.extf %10 : vector<17x8xbf16> to vector<17x8xf32>
    %cst = arith.constant 0.353553385 : f32
    %12 = vector.broadcast %cst : f32 to vector<17x8xf32>
    %13 = arith.mulf %11, %12 : vector<17x8xf32>
    %14 = arith.truncf %13 : vector<17x8xf32> to vector<17x8xbf16>
    %15 = vector.extract_strided_slice %6 {offsets = [0, 0, 0], sizes = [17, 1, 8], strides = [1, 1, 1]} : vector<17x4x8xbf16> to vector<17x1x8xbf16>
    %16 = vector.shape_cast %15 : vector<17x1x8xbf16> to vector<17x8xbf16>
    %17 = vector.extract_strided_slice %8 {offsets = [0, 0, 0], sizes = [17, 1, 8], strides = [1, 1, 1]} : vector<17x4x8xbf16> to vector<17x1x8xbf16>
    %18 = vector.shape_cast %17 : vector<17x1x8xbf16> to vector<17x8xbf16>
    "tpu.trace_start"() <{level = 10 : i32, message = "qd,kd->qk"}> : () -> ()
    %cst_15 = arith.constant dense<0.000000e+00> : vector<17x17xf32>
    %19 = tpu.matmul %14, %16, %cst_15 {dimension_numbers = #tpu.dot_dimension_numbers<[1], [1], [0], [0], [0, 0, 1, 0], [], []>} : vector<17x8xbf16>, vector<17x8xbf16>, vector<17x17xf32> -> vector<17x17xf32>
    "tpu.trace_stop"() : () -> ()
    %c0_16 = arith.constant 0 : index
    %c0_17 = arith.constant 0 : index
    %c0_18 = arith.constant 0 : index
    %20 = vector.load %arg7[%c0_16, %c0_17, %c0_18] : memref<4x17x1xf32, #tpu.memory_space<vmem>>, vector<1x17x1xf32>
    %21 = vector.shape_cast %20 : vector<1x17x1xf32> to vector<17x1xf32>
    %cst_19 = arith.constant dense<0xFF800000> : vector<17xf32>
    %22 = vector.multi_reduction <maximumf>, %19, %cst_19 [1] : vector<17x17xf32> to vector<17xf32>
    %23 = vector.shape_cast %22 : vector<17xf32> to vector<17x1xf32>
    %24 = arith.maximumf %21, %23 : vector<17x1xf32>
    %25 = arith.subf %21, %24 : vector<17x1xf32>
    %26 = math.exp %25 : vector<17x1xf32>
    %27 = vector.broadcast %24 : vector<17x1xf32> to vector<17x17xf32>
    %28 = arith.subf %19, %27 : vector<17x17xf32>
    %29 = math.exp %28 : vector<17x17xf32>
    %c0_20 = arith.constant 0 : index
    %c0_21 = arith.constant 0 : index
    %c0_22 = arith.constant 0 : index
    %30 = vector.load %arg8[%c0_20, %c0_21, %c0_22] : memref<4x17x1xf32, #tpu.memory_space<vmem>>, vector<1x17x1xf32>
    %31 = vector.shape_cast %30 : vector<1x17x1xf32> to vector<17x1xf32>
    %32 = arith.mulf %26, %31 : vector<17x1xf32>
    %cst_23 = arith.constant dense<0.000000e+00> : vector<17xf32>
    %33 = vector.multi_reduction <add>, %29, %cst_23 [1] : vector<17x17xf32> to vector<17xf32>
    %34 = vector.shape_cast %33 : vector<17xf32> to vector<17x1xf32>
    %35 = arith.addf %32, %34 : vector<17x1xf32>
    %c0_24 = arith.constant 0 : index
    %c0_25 = arith.constant 0 : index
    %c0_26 = arith.constant 0 : index
    %36 = vector.load %arg8[%c0_24, %c0_25, %c0_26] : memref<4x17x1xf32, #tpu.memory_space<vmem>>, vector<1x17x1xf32>
    %37 = vector.shape_cast %36 : vector<1x17x1xf32> to vector<17x1xf32>
    %38 = vector.shape_cast %35 : vector<17x1xf32> to vector<1x17x1xf32>
    tpu.vector_store %arg8[%c0_24, %c0_25, %c0_26], %38 {strides = array<i32>} : memref<4x17x1xf32, #tpu.memory_space<vmem>>, vector<1x17x1xf32>,
    %c0_27 = arith.constant 0 : index
    %c0_28 = arith.constant 0 : index
    %c0_29 = arith.constant 0 : index
    %39 = vector.load %arg9[%c0_27, %c0_28, %c0_29] : memref<4x17x8xf32, #tpu.memory_space<vmem>>, vector<1x17x8xf32>
    %40 = vector.shape_cast %39 : vector<1x17x8xf32> to vector<17x8xf32>
    %41 = vector.broadcast %26 : vector<17x1xf32> to vector<17x8xf32>
    %42 = arith.mulf %41, %40 : vector<17x8xf32>
    %43 = arith.truncf %29 : vector<17x17xf32> to vector<17x17xbf16>
    "tpu.trace_start"() <{level = 10 : i32, message = "qk,kd->qd"}> : () -> ()
    %cst_30 = arith.constant dense<0.000000e+00> : vector<17x8xf32>
    %44 = tpu.matmul %43, %18, %cst_30 {dimension_numbers = #tpu.dot_dimension_numbers<[1], [0], [0], [1], [0, 0, 1, 1], [], []>} : vector<17x17xbf16>, vector<17x8xbf16>, vector<17x8xf32> -> vector<17x8xf32>
    "tpu.trace_stop"() : () -> ()
    %45 = arith.addf %42, %44 : vector<17x8xf32>
    %c0_31 = arith.constant 0 : index
    %c0_32 = arith.constant 0 : index
    %c0_33 = arith.constant 0 : index
    %46 = vector.load %arg9[%c0_31, %c0_32, %c0_33] : memref<4x17x8xf32, #tpu.memory_space<vmem>>, vector<1x17x8xf32>
    %47 = vector.shape_cast %46 : vector<1x17x8xf32> to vector<17x8xf32>
    %48 = vector.shape_cast %45 : vector<17x8xf32> to vector<1x17x8xf32>
    tpu.vector_store %arg9[%c0_31, %c0_32, %c0_33], %48 {strides = array<i32>} : memref<4x17x8xf32, #tpu.memory_space<vmem>>, vector<1x17x8xf32>,
    %c0_34 = arith.constant 0 : index
    %c0_35 = arith.constant 0 : index
    %c0_36 = arith.constant 0 : index
    %49 = vector.load %arg7[%c0_34, %c0_35, %c0_36] : memref<4x17x1xf32, #tpu.memory_space<vmem>>, vector<1x17x1xf32>
    %50 = vector.shape_cast %49 : vector<1x17x1xf32> to vector<17x1xf32>
    %51 = vector.shape_cast %24 : vector<17x1xf32> to vector<1x17x1xf32>
    tpu.vector_store %arg7[%c0_34, %c0_35, %c0_36], %51 {strides = array<i32>} : memref<4x17x1xf32, #tpu.memory_space<vmem>>, vector<1x17x1xf32>,
    %52 = vector.extract_strided_slice %4 {offsets = [0, 1, 0], sizes = [17, 1, 8], strides = [1, 1, 1]} : vector<17x4x8xbf16> to vector<17x1x8xbf16>
    %53 = vector.shape_cast %52 : vector<17x1x8xbf16> to vector<17x8xbf16>
    %54 = arith.extf %53 : vector<17x8xbf16> to vector<17x8xf32>
    %cst_37 = arith.constant 0.353553385 : f32
    %55 = vector.broadcast %cst_37 : f32 to vector<17x8xf32>
    %56 = arith.mulf %54, %55 : vector<17x8xf32>
    %57 = arith.truncf %56 : vector<17x8xf32> to vector<17x8xbf16>
    %58 = vector.extract_strided_slice %6 {offsets = [0, 1, 0], sizes = [17, 1, 8], strides = [1, 1, 1]} : vector<17x4x8xbf16> to vector<17x1x8xbf16>
    %59 = vector.shape_cast %58 : vector<17x1x8xbf16> to vector<17x8xbf16>
    %60 = vector.extract_strided_slice %8 {offsets = [0, 1, 0], sizes = [17, 1, 8], strides = [1, 1, 1]} : vector<17x4x8xbf16> to vector<17x1x8xbf16>
    %61 = vector.shape_cast %60 : vector<17x1x8xbf16> to vector<17x8xbf16>
    "tpu.trace_start"() <{level = 10 : i32, message = "qd,kd->qk"}> : () -> ()
    %cst_38 = arith.constant dense<0.000000e+00> : vector<17x17xf32>
    %62 = tpu.matmul %57, %59, %cst_38 {dimension_numbers = #tpu.dot_dimension_numbers<[1], [1], [0], [0], [0, 0, 1, 0], [], []>} : vector<17x8xbf16>, vector<17x8xbf16>, vector<17x17xf32> -> vector<17x17xf32>
    "tpu.trace_stop"() : () -> ()
    %c1 = arith.constant 1 : index
    %c0_39 = arith.constant 0 : index
    %c0_40 = arith.constant 0 : index
    %63 = vector.load %arg7[%c1, %c0_39, %c0_40] : memref<4x17x1xf32, #tpu.memory_space<vmem>>, vector<1x17x1xf32>
    %64 = vector.shape_cast %63 : vector<1x17x1xf32> to vector<17x1xf32>
    %cst_41 = arith.constant dense<0xFF800000> : vector<17xf32>
    %65 = vector.multi_reduction <maximumf>, %62, %cst_41 [1] : vector<17x17xf32> to vector<17xf32>
    %66 = vector.shape_cast %65 : vector<17xf32> to vector<17x1xf32>
    %67 = arith.maximumf %64, %66 : vector<17x1xf32>
    %68 = arith.subf %64, %67 : vector<17x1xf32>
    %69 = math.exp %68 : vector<17x1xf32>
    %70 = vector.broadcast %67 : vector<17x1xf32> to vector<17x17xf32>
    %71 = arith.subf %62, %70 : vector<17x17xf32>
    %72 = math.exp %71 : vector<17x17xf32>
    %c1_42 = arith.constant 1 : index
    %c0_43 = arith.constant 0 : index
    %c0_44 = arith.constant 0 : index
    %73 = vector.load %arg8[%c1_42, %c0_43, %c0_44] : memref<4x17x1xf32, #tpu.memory_space<vmem>>, vector<1x17x1xf32>
    %74 = vector.shape_cast %73 : vector<1x17x1xf32> to vector<17x1xf32>
    %75 = arith.mulf %69, %74 : vector<17x1xf32>
    %cst_45 = arith.constant dense<0.000000e+00> : vector<17xf32>
    %76 = vector.multi_reduction <add>, %72, %cst_45 [1] : vector<17x17xf32> to vector<17xf32>
    %77 = vector.shape_cast %76 : vector<17xf32> to vector<17x1xf32>
    %78 = arith.addf %75, %77 : vector<17x1xf32>
    %c1_46 = arith.constant 1 : index
    %c0_47 = arith.constant 0 : index
    %c0_48 = arith.constant 0 : index
    %79 = vector.load %arg8[%c1_46, %c0_47, %c0_48] : memref<4x17x1xf32, #tpu.memory_space<vmem>>, vector<1x17x1xf32>
    %80 = vector.shape_cast %79 : vector<1x17x1xf32> to vector<17x1xf32>
    %81 = vector.shape_cast %78 : vector<17x1xf32> to vector<1x17x1xf32>
    tpu.vector_store %arg8[%c1_46, %c0_47, %c0_48], %81 {strides = array<i32>} : memref<4x17x1xf32, #tpu.memory_space<vmem>>, vector<1x17x1xf32>,
    %c1_49 = arith.constant 1 : index
    %c0_50 = arith.constant 0 : index
    %c0_51 = arith.constant 0 : index
    %82 = vector.load %arg9[%c1_49, %c0_50, %c0_51] : memref<4x17x8xf32, #tpu.memory_space<vmem>>, vector<1x17x8xf32>
    %83 = vector.shape_cast %82 : vector<1x17x8xf32> to vector<17x8xf32>
    %84 = vector.broadcast %69 : vector<17x1xf32> to vector<17x8xf32>
    %85 = arith.mulf %84, %83 : vector<17x8xf32>
    %86 = arith.truncf %72 : vector<17x17xf32> to vector<17x17xbf16>
    "tpu.trace_start"() <{level = 10 : i32, message = "qk,kd->qd"}> : () -> ()
    %cst_52 = arith.constant dense<0.000000e+00> : vector<17x8xf32>
    %87 = tpu.matmul %86, %61, %cst_52 {dimension_numbers = #tpu.dot_dimension_numbers<[1], [0], [0], [1], [0, 0, 1, 1], [], []>} : vector<17x17xbf16>, vector<17x8xbf16>, vector<17x8xf32> -> vector<17x8xf32>
    "tpu.trace_stop"() : () -> ()
    %88 = arith.addf %85, %87 : vector<17x8xf32>
    %c1_53 = arith.constant 1 : index
    %c0_54 = arith.constant 0 : index
    %c0_55 = arith.constant 0 : index
    %89 = vector.load %arg9[%c1_53, %c0_54, %c0_55] : memref<4x17x8xf32, #tpu.memory_space<vmem>>, vector<1x17x8xf32>
    %90 = vector.shape_cast %89 : vector<1x17x8xf32> to vector<17x8xf32>
    %91 = vector.shape_cast %88 : vector<17x8xf32> to vector<1x17x8xf32>
    tpu.vector_store %arg9[%c1_53, %c0_54, %c0_55], %91 {strides = array<i32>} : memref<4x17x8xf32, #tpu.memory_space<vmem>>, vector<1x17x8xf32>,
    %c1_56 = arith.constant 1 : index
    %c0_57 = arith.constant 0 : index
    %c0_58 = arith.constant 0 : index
    %92 = vector.load %arg7[%c1_56, %c0_57, %c0_58] : memref<4x17x1xf32, #tpu.memory_space<vmem>>, vector<1x17x1xf32>
    %93 = vector.shape_cast %92 : vector<1x17x1xf32> to vector<17x1xf32>
    %94 = vector.shape_cast %67 : vector<17x1xf32> to vector<1x17x1xf32>
    tpu.vector_store %arg7[%c1_56, %c0_57, %c0_58], %94 {strides = array<i32>} : memref<4x17x1xf32, #tpu.memory_space<vmem>>, vector<1x17x1xf32>,
    %95 = vector.extract_strided_slice %4 {offsets = [0, 2, 0], sizes = [17, 1, 8], strides = [1, 1, 1]} : vector<17x4x8xbf16> to vector<17x1x8xbf16>
    %96 = vector.shape_cast %95 : vector<17x1x8xbf16> to vector<17x8xbf16>
    %97 = arith.extf %96 : vector<17x8xbf16> to vector<17x8xf32>
    %cst_59 = arith.constant 0.353553385 : f32
    %98 = vector.broadcast %cst_59 : f32 to vector<17x8xf32>
    %99 = arith.mulf %97, %98 : vector<17x8xf32>
    %100 = arith.truncf %99 : vector<17x8xf32> to vector<17x8xbf16>
    %101 = vector.extract_strided_slice %6 {offsets = [0, 2, 0], sizes = [17, 1, 8], strides = [1, 1, 1]} : vector<17x4x8xbf16> to vector<17x1x8xbf16>
    %102 = vector.shape_cast %101 : vector<17x1x8xbf16> to vector<17x8xbf16>
    %103 = vector.extract_strided_slice %8 {offsets = [0, 2, 0], sizes = [17, 1, 8], strides = [1, 1, 1]} : vector<17x4x8xbf16> to vector<17x1x8xbf16>
    %104 = vector.shape_cast %103 : vector<17x1x8xbf16> to vector<17x8xbf16>
    "tpu.trace_start"() <{level = 10 : i32, message = "qd,kd->qk"}> : () -> ()
    %cst_60 = arith.constant dense<0.000000e+00> : vector<17x17xf32>
    %105 = tpu.matmul %100, %102, %cst_60 {dimension_numbers = #tpu.dot_dimension_numbers<[1], [1], [0], [0], [0, 0, 1, 0], [], []>} : vector<17x8xbf16>, vector<17x8xbf16>, vector<17x17xf32> -> vector<17x17xf32>
    "tpu.trace_stop"() : () -> ()
    %c2 = arith.constant 2 : index
    %c0_61 = arith.constant 0 : index
    %c0_62 = arith.constant 0 : index
    %106 = vector.load %arg7[%c2, %c0_61, %c0_62] : memref<4x17x1xf32, #tpu.memory_space<vmem>>, vector<1x17x1xf32>
    %107 = vector.shape_cast %106 : vector<1x17x1xf32> to vector<17x1xf32>
    %cst_63 = arith.constant dense<0xFF800000> : vector<17xf32>
    %108 = vector.multi_reduction <maximumf>, %105, %cst_63 [1] : vector<17x17xf32> to vector<17xf32>
    %109 = vector.shape_cast %108 : vector<17xf32> to vector<17x1xf32>
    %110 = arith.maximumf %107, %109 : vector<17x1xf32>
    %111 = arith.subf %107, %110 : vector<17x1xf32>
    %112 = math.exp %111 : vector<17x1xf32>
    %113 = vector.broadcast %110 : vector<17x1xf32> to vector<17x17xf32>
    %114 = arith.subf %105, %113 : vector<17x17xf32>
    %115 = math.exp %114 : vector<17x17xf32>
    %c2_64 = arith.constant 2 : index
    %c0_65 = arith.constant 0 : index
    %c0_66 = arith.constant 0 : index
    %116 = vector.load %arg8[%c2_64, %c0_65, %c0_66] : memref<4x17x1xf32, #tpu.memory_space<vmem>>, vector<1x17x1xf32>
    %117 = vector.shape_cast %116 : vector<1x17x1xf32> to vector<17x1xf32>
    %118 = arith.mulf %112, %117 : vector<17x1xf32>
    %cst_67 = arith.constant dense<0.000000e+00> : vector<17xf32>
    %119 = vector.multi_reduction <add>, %115, %cst_67 [1] : vector<17x17xf32> to vector<17xf32>
    %120 = vector.shape_cast %119 : vector<17xf32> to vector<17x1xf32>
    %121 = arith.addf %118, %120 : vector<17x1xf32>
    %c2_68 = arith.constant 2 : index
    %c0_69 = arith.constant 0 : index
    %c0_70 = arith.constant 0 : index
    %122 = vector.load %arg8[%c2_68, %c0_69, %c0_70] : memref<4x17x1xf32, #tpu.memory_space<vmem>>, vector<1x17x1xf32>
    %123 = vector.shape_cast %122 : vector<1x17x1xf32> to vector<17x1xf32>
    %124 = vector.shape_cast %121 : vector<17x1xf32> to vector<1x17x1xf32>
    tpu.vector_store %arg8[%c2_68, %c0_69, %c0_70], %124 {strides = array<i32>} : memref<4x17x1xf32, #tpu.memory_space<vmem>>, vector<1x17x1xf32>,
    %c2_71 = arith.constant 2 : index
    %c0_72 = arith.constant 0 : index
    %c0_73 = arith.constant 0 : index
    %125 = vector.load %arg9[%c2_71, %c0_72, %c0_73] : memref<4x17x8xf32, #tpu.memory_space<vmem>>, vector<1x17x8xf32>
    %126 = vector.shape_cast %125 : vector<1x17x8xf32> to vector<17x8xf32>
    %127 = vector.broadcast %112 : vector<17x1xf32> to vector<17x8xf32>
    %128 = arith.mulf %127, %126 : vector<17x8xf32>
    %129 = arith.truncf %115 : vector<17x17xf32> to vector<17x17xbf16>
    "tpu.trace_start"() <{level = 10 : i32, message = "qk,kd->qd"}> : () -> ()
    %cst_74 = arith.constant dense<0.000000e+00> : vector<17x8xf32>
    %130 = tpu.matmul %129, %104, %cst_74 {dimension_numbers = #tpu.dot_dimension_numbers<[1], [0], [0], [1], [0, 0, 1, 1], [], []>} : vector<17x17xbf16>, vector<17x8xbf16>, vector<17x8xf32> -> vector<17x8xf32>
    "tpu.trace_stop"() : () -> ()
    %131 = arith.addf %128, %130 : vector<17x8xf32>
    %c2_75 = arith.constant 2 : index
    %c0_76 = arith.constant 0 : index
    %c0_77 = arith.constant 0 : index
    %132 = vector.load %arg9[%c2_75, %c0_76, %c0_77] : memref<4x17x8xf32, #tpu.memory_space<vmem>>, vector<1x17x8xf32>
    %133 = vector.shape_cast %132 : vector<1x17x8xf32> to vector<17x8xf32>
    %134 = vector.shape_cast %131 : vector<17x8xf32> to vector<1x17x8xf32>
    tpu.vector_store %arg9[%c2_75, %c0_76, %c0_77], %134 {strides = array<i32>} : memref<4x17x8xf32, #tpu.memory_space<vmem>>, vector<1x17x8xf32>,
    %c2_78 = arith.constant 2 : index
    %c0_79 = arith.constant 0 : index
    %c0_80 = arith.constant 0 : index
    %135 = vector.load %arg7[%c2_78, %c0_79, %c0_80] : memref<4x17x1xf32, #tpu.memory_space<vmem>>, vector<1x17x1xf32>
    %136 = vector.shape_cast %135 : vector<1x17x1xf32> to vector<17x1xf32>
    %137 = vector.shape_cast %110 : vector<17x1xf32> to vector<1x17x1xf32>
    tpu.vector_store %arg7[%c2_78, %c0_79, %c0_80], %137 {strides = array<i32>} : memref<4x17x1xf32, #tpu.memory_space<vmem>>, vector<1x17x1xf32>,
    %138 = vector.extract_strided_slice %4 {offsets = [0, 3, 0], sizes = [17, 1, 8], strides = [1, 1, 1]} : vector<17x4x8xbf16> to vector<17x1x8xbf16>
    %139 = vector.shape_cast %138 : vector<17x1x8xbf16> to vector<17x8xbf16>
    %140 = arith.extf %139 : vector<17x8xbf16> to vector<17x8xf32>
    %cst_81 = arith.constant 0.353553385 : f32
    %141 = vector.broadcast %cst_81 : f32 to vector<17x8xf32>
    %142 = arith.mulf %140, %141 : vector<17x8xf32>
    %143 = arith.truncf %142 : vector<17x8xf32> to vector<17x8xbf16>
    %144 = vector.extract_strided_slice %6 {offsets = [0, 3, 0], sizes = [17, 1, 8], strides = [1, 1, 1]} : vector<17x4x8xbf16> to vector<17x1x8xbf16>
    %145 = vector.shape_cast %144 : vector<17x1x8xbf16> to vector<17x8xbf16>
    %146 = vector.extract_strided_slice %8 {offsets = [0, 3, 0], sizes = [17, 1, 8], strides = [1, 1, 1]} : vector<17x4x8xbf16> to vector<17x1x8xbf16>
    %147 = vector.shape_cast %146 : vector<17x1x8xbf16> to vector<17x8xbf16>
    "tpu.trace_start"() <{level = 10 : i32, message = "qd,kd->qk"}> : () -> ()
    %cst_82 = arith.constant dense<0.000000e+00> : vector<17x17xf32>
    %148 = tpu.matmul %143, %145, %cst_82 {dimension_numbers = #tpu.dot_dimension_numbers<[1], [1], [0], [0], [0, 0, 1, 0], [], []>} : vector<17x8xbf16>, vector<17x8xbf16>, vector<17x17xf32> -> vector<17x17xf32>
    "tpu.trace_stop"() : () -> ()
    %c3 = arith.constant 3 : index
    %c0_83 = arith.constant 0 : index
    %c0_84 = arith.constant 0 : index
    %149 = vector.load %arg7[%c3, %c0_83, %c0_84] : memref<4x17x1xf32, #tpu.memory_space<vmem>>, vector<1x17x1xf32>
    %150 = vector.shape_cast %149 : vector<1x17x1xf32> to vector<17x1xf32>
    %cst_85 = arith.constant dense<0xFF800000> : vector<17xf32>
    %151 = vector.multi_reduction <maximumf>, %148, %cst_85 [1] : vector<17x17xf32> to vector<17xf32>
    %152 = vector.shape_cast %151 : vector<17xf32> to vector<17x1xf32>
    %153 = arith.maximumf %150, %152 : vector<17x1xf32>
    %154 = arith.subf %150, %153 : vector<17x1xf32>
    %155 = math.exp %154 : vector<17x1xf32>
    %156 = vector.broadcast %153 : vector<17x1xf32> to vector<17x17xf32>
    %157 = arith.subf %148, %156 : vector<17x17xf32>
    %158 = math.exp %157 : vector<17x17xf32>
    %c3_86 = arith.constant 3 : index
    %c0_87 = arith.constant 0 : index
    %c0_88 = arith.constant 0 : index
    %159 = vector.load %arg8[%c3_86, %c0_87, %c0_88] : memref<4x17x1xf32, #tpu.memory_space<vmem>>, vector<1x17x1xf32>
    %160 = vector.shape_cast %159 : vector<1x17x1xf32> to vector<17x1xf32>
    %161 = arith.mulf %155, %160 : vector<17x1xf32>
    %cst_89 = arith.constant dense<0.000000e+00> : vector<17xf32>
    %162 = vector.multi_reduction <add>, %158, %cst_89 [1] : vector<17x17xf32> to vector<17xf32>
    %163 = vector.shape_cast %162 : vector<17xf32> to vector<17x1xf32>
    %164 = arith.addf %161, %163 : vector<17x1xf32>
    %c3_90 = arith.constant 3 : index
    %c0_91 = arith.constant 0 : index
    %c0_92 = arith.constant 0 : index
    %165 = vector.load %arg8[%c3_90, %c0_91, %c0_92] : memref<4x17x1xf32, #tpu.memory_space<vmem>>, vector<1x17x1xf32>
    %166 = vector.shape_cast %165 : vector<1x17x1xf32> to vector<17x1xf32>
    %167 = vector.shape_cast %164 : vector<17x1xf32> to vector<1x17x1xf32>
    tpu.vector_store %arg8[%c3_90, %c0_91, %c0_92], %167 {strides = array<i32>} : memref<4x17x1xf32, #tpu.memory_space<vmem>>, vector<1x17x1xf32>,
    %c3_93 = arith.constant 3 : index
    %c0_94 = arith.constant 0 : index
    %c0_95 = arith.constant 0 : index
    %168 = vector.load %arg9[%c3_93, %c0_94, %c0_95] : memref<4x17x8xf32, #tpu.memory_space<vmem>>, vector<1x17x8xf32>
    %169 = vector.shape_cast %168 : vector<1x17x8xf32> to vector<17x8xf32>
    %170 = vector.broadcast %155 : vector<17x1xf32> to vector<17x8xf32>
    %171 = arith.mulf %170, %169 : vector<17x8xf32>
    %172 = arith.truncf %158 : vector<17x17xf32> to vector<17x17xbf16>
    "tpu.trace_start"() <{level = 10 : i32, message = "qk,kd->qd"}> : () -> ()
    %cst_96 = arith.constant dense<0.000000e+00> : vector<17x8xf32>
    %173 = tpu.matmul %172, %147, %cst_96 {dimension_numbers = #tpu.dot_dimension_numbers<[1], [0], [0], [1], [0, 0, 1, 1], [], []>} : vector<17x17xbf16>, vector<17x8xbf16>, vector<17x8xf32> -> vector<17x8xf32>
    "tpu.trace_stop"() : () -> ()
    %174 = arith.addf %171, %173 : vector<17x8xf32>
    %c3_97 = arith.constant 3 : index
    %c0_98 = arith.constant 0 : index
    %c0_99 = arith.constant 0 : index
    %175 = vector.load %arg9[%c3_97, %c0_98, %c0_99] : memref<4x17x8xf32, #tpu.memory_space<vmem>>, vector<1x17x8xf32>
    %176 = vector.shape_cast %175 : vector<1x17x8xf32> to vector<17x8xf32>
    %177 = vector.shape_cast %174 : vector<17x8xf32> to vector<1x17x8xf32>
    tpu.vector_store %arg9[%c3_97, %c0_98, %c0_99], %177 {strides = array<i32>} : memref<4x17x8xf32, #tpu.memory_space<vmem>>, vector<1x17x8xf32>,
    %c3_100 = arith.constant 3 : index
    %c0_101 = arith.constant 0 : index
    %c0_102 = arith.constant 0 : index
    %178 = vector.load %arg7[%c3_100, %c0_101, %c0_102] : memref<4x17x1xf32, #tpu.memory_space<vmem>>, vector<1x17x1xf32>
    %179 = vector.shape_cast %178 : vector<1x17x1xf32> to vector<17x1xf32>
    %180 = vector.shape_cast %153 : vector<17x1xf32> to vector<1x17x1xf32>
    tpu.vector_store %arg7[%c3_100, %c0_101, %c0_102], %180 {strides = array<i32>} : memref<4x17x1xf32, #tpu.memory_space<vmem>>, vector<1x17x1xf32>,
    %c0_i32_103 = arith.constant 0 : i32
    %181 = arith.cmpi eq, %arg2, %c0_i32_103 : i32
    %182 = arith.extui %181 : i1 to i32
    %c0_i32_104 = arith.constant 0 : i32
    %183 = arith.cmpi ne, %182, %c0_i32_104 : i32
    scf.if %183 {
      %c0_105 = arith.constant 0 : index
      %c0_106 = arith.constant 0 : index
      %c0_107 = arith.constant 0 : index
      %184 = vector.load %arg9[%c0_105, %c0_106, %c0_107] : memref<4x17x8xf32, #tpu.memory_space<vmem>>, vector<1x17x8xf32>
      %185 = vector.shape_cast %184 : vector<1x17x8xf32> to vector<17x8xf32>
      %c0_108 = arith.constant 0 : index
      %c0_109 = arith.constant 0 : index
      %c0_110 = arith.constant 0 : index
      %186 = vector.load %arg8[%c0_108, %c0_109, %c0_110] : memref<4x17x1xf32, #tpu.memory_space<vmem>>, vector<1x17x1xf32>
      %187 = vector.shape_cast %186 : vector<1x17x1xf32> to vector<17x1xf32>
      %188 = tpu.reciprocal %187 {approx = true} : vector<17x1xf32> -> vector<17x1xf32>
      %189 = vector.broadcast %188 : vector<17x1xf32> to vector<17x8xf32>
      %190 = arith.mulf %185, %189 : vector<17x8xf32>
      %191 = arith.truncf %190 : vector<17x8xf32> to vector<17x8xbf16>
      %c0_111 = arith.constant 0 : index
      %c0_112 = arith.constant 0 : index
      %c0_113 = arith.constant 0 : index
      %192 = vector.load %arg6[%c0_111, %c0_112, %c0_113] : memref<1x17x32xbf16, #tpu.memory_space<vmem>>, vector<1x17x8xbf16>
      %193 = vector.shape_cast %192 : vector<1x17x8xbf16> to vector<17x8xbf16>
      %194 = vector.shape_cast %191 : vector<17x8xbf16> to vector<1x17x8xbf16>
      tpu.vector_store %arg6[%c0_111, %c0_112, %c0_113], %194 {strides = array<i32>} : memref<1x17x32xbf16, #tpu.memory_space<vmem>>, vector<1x17x8xbf16>,
      %c1_114 = arith.constant 1 : index
      %c0_115 = arith.constant 0 : index
      %c0_116 = arith.constant 0 : index
      %195 = vector.load %arg9[%c1_114, %c0_115, %c0_116] : memref<4x17x8xf32, #tpu.memory_space<vmem>>, vector<1x17x8xf32>
      %196 = vector.shape_cast %195 : vector<1x17x8xf32> to vector<17x8xf32>
      %c1_117 = arith.constant 1 : index
      %c0_118 = arith.constant 0 : index
      %c0_119 = arith.constant 0 : index
      %197 = vector.load %arg8[%c1_117, %c0_118, %c0_119] : memref<4x17x1xf32, #tpu.memory_space<vmem>>, vector<1x17x1xf32>
      %198 = vector.shape_cast %197 : vector<1x17x1xf32> to vector<17x1xf32>
      %199 = tpu.reciprocal %198 {approx = true} : vector<17x1xf32> -> vector<17x1xf32>
      %200 = vector.broadcast %199 : vector<17x1xf32> to vector<17x8xf32>
      %201 = arith.mulf %196, %200 : vector<17x8xf32>
      %202 = arith.truncf %201 : vector<17x8xf32> to vector<17x8xbf16>
      %c0_120 = arith.constant 0 : index
      %c0_121 = arith.constant 0 : index
      %c8 = arith.constant 8 : index
      %203 = vector.load %arg6[%c0_120, %c0_121, %c8] : memref<1x17x32xbf16, #tpu.memory_space<vmem>>, vector<1x17x8xbf16>
      %204 = vector.shape_cast %203 : vector<1x17x8xbf16> to vector<17x8xbf16>
      %205 = vector.shape_cast %202 : vector<17x8xbf16> to vector<1x17x8xbf16>
      tpu.vector_store %arg6[%c0_120, %c0_121, %c8], %205 {strides = array<i32>} : memref<1x17x32xbf16, #tpu.memory_space<vmem>>, vector<1x17x8xbf16>,
      %c2_122 = arith.constant 2 : index
      %c0_123 = arith.constant 0 : index
      %c0_124 = arith.constant 0 : index
      %206 = vector.load %arg9[%c2_122, %c0_123, %c0_124] : memref<4x17x8xf32, #tpu.memory_space<vmem>>, vector<1x17x8xf32>
      %207 = vector.shape_cast %206 : vector<1x17x8xf32> to vector<17x8xf32>
      %c2_125 = arith.constant 2 : index
      %c0_126 = arith.constant 0 : index
      %c0_127 = arith.constant 0 : index
      %208 = vector.load %arg8[%c2_125, %c0_126, %c0_127] : memref<4x17x1xf32, #tpu.memory_space<vmem>>, vector<1x17x1xf32>
      %209 = vector.shape_cast %208 : vector<1x17x1xf32> to vector<17x1xf32>
      %210 = tpu.reciprocal %209 {approx = true} : vector<17x1xf32> -> vector<17x1xf32>
      %211 = vector.broadcast %210 : vector<17x1xf32> to vector<17x8xf32>
      %212 = arith.mulf %207, %211 : vector<17x8xf32>
      %213 = arith.truncf %212 : vector<17x8xf32> to vector<17x8xbf16>
      %c0_128 = arith.constant 0 : index
      %c0_129 = arith.constant 0 : index
      %c16 = arith.constant 16 : index
      %214 = vector.load %arg6[%c0_128, %c0_129, %c16] : memref<1x17x32xbf16, #tpu.memory_space<vmem>>, vector<1x17x8xbf16>
      %215 = vector.shape_cast %214 : vector<1x17x8xbf16> to vector<17x8xbf16>
      %216 = vector.shape_cast %213 : vector<17x8xbf16> to vector<1x17x8xbf16>
      tpu.vector_store %arg6[%c0_128, %c0_129, %c16], %216 {strides = array<i32>} : memref<1x17x32xbf16, #tpu.memory_space<vmem>>, vector<1x17x8xbf16>,
      %c3_130 = arith.constant 3 : index
      %c0_131 = arith.constant 0 : index
      %c0_132 = arith.constant 0 : index
      %217 = vector.load %arg9[%c3_130, %c0_131, %c0_132] : memref<4x17x8xf32, #tpu.memory_space<vmem>>, vector<1x17x8xf32>
      %218 = vector.shape_cast %217 : vector<1x17x8xf32> to vector<17x8xf32>
      %c3_133 = arith.constant 3 : index
      %c0_134 = arith.constant 0 : index
      %c0_135 = arith.constant 0 : index
      %219 = vector.load %arg8[%c3_133, %c0_134, %c0_135] : memref<4x17x1xf32, #tpu.memory_space<vmem>>, vector<1x17x1xf32>
      %220 = vector.shape_cast %219 : vector<1x17x1xf32> to vector<17x1xf32>
      %221 = tpu.reciprocal %220 {approx = true} : vector<17x1xf32> -> vector<17x1xf32>
      %222 = vector.broadcast %221 : vector<17x1xf32> to vector<17x8xf32>
      %223 = arith.mulf %218, %222 : vector<17x8xf32>
      %224 = arith.truncf %223 : vector<17x8xf32> to vector<17x8xbf16>
      %c0_136 = arith.constant 0 : index
      %c0_137 = arith.constant 0 : index
      %c24 = arith.constant 24 : index
      %225 = vector.load %arg6[%c0_136, %c0_137, %c24] : memref<1x17x32xbf16, #tpu.memory_space<vmem>>, vector<1x17x8xbf16>
      %226 = vector.shape_cast %225 : vector<1x17x8xbf16> to vector<17x8xbf16>
      %227 = vector.shape_cast %224 : vector<17x8xbf16> to vector<1x17x8xbf16>
      tpu.vector_store %arg6[%c0_136, %c0_137, %c24], %227 {strides = array<i32>} : memref<1x17x32xbf16, #tpu.memory_space<vmem>>, vector<1x17x8xbf16>,
    } else {
    }
    return
  }
  func.func @transform_0(%arg0: i32, %arg1: i32, %arg2: i32) -> (i32, i32, i32, i32, i32) {
    %c0_i32 = arith.constant 0 : i32
    %c0_i32_0 = arith.constant 0 : i32
    %c0_i32_1 = arith.constant 0 : i32
    %c0_i32_2 = arith.constant 0 : i32
    return %arg0, %arg1, %c0_i32, %c0_i32_0, %c0_i32_1 : i32, i32, i32, i32, i32
  }
  func.func @transform_1(%arg0: i32, %arg1: i32, %arg2: i32) -> (i32, i32, i32, i32, i32) {
    %c1_i32 = arith.constant 1 : i32
    %c0_i32 = arith.constant 0 : i32
    %c0_i32_0 = arith.constant 0 : i32
    %c0_i32_1 = arith.constant 0 : i32
    return %arg0, %arg2, %c1_i32, %c0_i32, %c0_i32_0 : i32, i32, i32, i32, i32
  }
  func.func @transform_2(%arg0: i32, %arg1: i32, %arg2: i32) -> (i32, i32, i32, i32, i32) {
    %c2_i32 = arith.constant 2 : i32
    %c0_i32 = arith.constant 0 : i32
    %c0_i32_0 = arith.constant 0 : i32
    %c0_i32_1 = arith.constant 0 : i32
    return %arg0, %arg2, %c2_i32, %c0_i32, %c0_i32_0 : i32, i32, i32, i32, i32
  }
  func.func @transform_3(%arg0: i32, %arg1: i32, %arg2: i32) -> (i32, i32, i32) {
    %c0_i32 = arith.constant 0 : i32
    %c0_i32_0 = arith.constant 0 : i32
    return %arg0, %arg1, %c0_i32 : i32, i32, i32
  }
}

module attributes {stable_mosaic.version = 11 : i64} {
  func.func @_mlp_kernel(%arg0: i32, %arg1: memref<34x32xbf16, #tpu.memory_space<vmem>>, %arg2: memref<1x32xf32, #tpu.memory_space<vmem>>, %arg3: memref<1x32xf32, #tpu.memory_space<vmem>>, %arg4: memref<32x128xbf16, #tpu.memory_space<vmem>>, %arg5: memref<1x128xf32, #tpu.memory_space<vmem>>, %arg6: memref<128x32xbf16, #tpu.memory_space<vmem>>, %arg7: memref<1x32xf32, #tpu.memory_space<vmem>>, %arg8: memref<34x32xbf16, #tpu.memory_space<vmem>>) attributes {dimension_semantics = [#tpu.dimension_semantics<parallel>], iteration_bounds = array<i64: 1>, scalar_prefetch = 0 : i64, scratch_operands = 0 : i64, tpu.core_type = #tpu.core_type<tc>, window_params = [{transform_indices = @transform_0, window_bounds = array<i64: 34, 32>}, {pipeline_mode = #tpu.pipeline_mode<synchronous>, transform_indices = @transform_1, window_bounds = array<i64: 1, 32>}, {pipeline_mode = #tpu.pipeline_mode<synchronous>, transform_indices = @transform_2, window_bounds = array<i64: 1, 32>}, {pipeline_mode = #tpu.pipeline_mode<synchronous>, transform_indices = @transform_3, window_bounds = array<i64: 32, 128>}, {pipeline_mode = #tpu.pipeline_mode<synchronous>, transform_indices = @transform_4, window_bounds = array<i64: 1, 128>}, {pipeline_mode = #tpu.pipeline_mode<synchronous>, transform_indices = @transform_5, window_bounds = array<i64: 128, 32>}, {pipeline_mode = #tpu.pipeline_mode<synchronous>, transform_indices = @transform_6, window_bounds = array<i64: 1, 32>}, {transform_indices = @transform_7, window_bounds = array<i64: 34, 32>}]} {
    %c0 = arith.constant 0 : index
    %c0_0 = arith.constant 0 : index
    %0 = vector.load %arg1[%c0, %c0_0] : memref<34x32xbf16, #tpu.memory_space<vmem>>, vector<34x32xbf16>
    %1 = arith.extf %0 : vector<34x32xbf16> to vector<34x32xf32>
    %cst = arith.constant dense<0.000000e+00> : vector<34xf32>
    %2 = vector.multi_reduction <add>, %1, %cst [1] : vector<34x32xf32> to vector<34xf32>
    %3 = vector.shape_cast %2 : vector<34xf32> to vector<34x1xf32>
    %cst_1 = arith.constant 3.200000e+01 : f32
    %4 = vector.broadcast %cst_1 : f32 to vector<34x1xf32>
    %5 = arith.divf %3, %4 : vector<34x1xf32>
    %6 = vector.broadcast %5 : vector<34x1xf32> to vector<34x32xf32>
    %7 = arith.subf %1, %6 : vector<34x32xf32>
    %8 = arith.mulf %7, %7 : vector<34x32xf32>
    %cst_2 = arith.constant dense<0.000000e+00> : vector<34xf32>
    %9 = vector.multi_reduction <add>, %8, %cst_2 [1] : vector<34x32xf32> to vector<34xf32>
    %10 = vector.shape_cast %9 : vector<34xf32> to vector<34x1xf32>
    %cst_3 = arith.constant 3.200000e+01 : f32
    %11 = vector.broadcast %cst_3 : f32 to vector<34x1xf32>
    %12 = arith.divf %10, %11 : vector<34x1xf32>
    %cst_4 = arith.constant 9.99999997E-7 : f32
    %13 = vector.broadcast %cst_4 : f32 to vector<34x1xf32>
    %14 = arith.addf %12, %13 : vector<34x1xf32>
    %15 = math.rsqrt %14 : vector<34x1xf32>
    %16 = vector.broadcast %15 : vector<34x1xf32> to vector<34x32xf32>
    %17 = arith.mulf %7, %16 : vector<34x32xf32>
    %c0_5 = arith.constant 0 : index
    %c0_6 = arith.constant 0 : index
    %18 = vector.load %arg2[%c0_5, %c0_6] : memref<1x32xf32, #tpu.memory_space<vmem>>, vector<1x32xf32>
    %19 = vector.broadcast %18 : vector<1x32xf32> to vector<34x32xf32>
    %20 = arith.mulf %17, %19 : vector<34x32xf32>
    %c0_7 = arith.constant 0 : index
    %c0_8 = arith.constant 0 : index
    %21 = vector.load %arg3[%c0_7, %c0_8] : memref<1x32xf32, #tpu.memory_space<vmem>>, vector<1x32xf32>
    %22 = vector.broadcast %21 : vector<1x32xf32> to vector<34x32xf32>
    %23 = arith.addf %20, %22 : vector<34x32xf32>
    %24 = arith.truncf %23 : vector<34x32xf32> to vector<34x32xbf16>
    %c0_9 = arith.constant 0 : index
    %c0_10 = arith.constant 0 : index
    %25 = vector.load %arg4[%c0_9, %c0_10] : memref<32x128xbf16, #tpu.memory_space<vmem>>, vector<32x128xbf16>
    %cst_11 = arith.constant dense<0.000000e+00> : vector<34x128xf32>
    %26 = tpu.matmul %24, %25, %cst_11 {dimension_numbers = #tpu.dot_dimension_numbers<[1], [0], [0], [1], [0, 0, 1, 1], [], []>} : vector<34x32xbf16>, vector<32x128xbf16>, vector<34x128xf32> -> vector<34x128xf32>
    %c0_12 = arith.constant 0 : index
    %c0_13 = arith.constant 0 : index
    %27 = vector.load %arg5[%c0_12, %c0_13] : memref<1x128xf32, #tpu.memory_space<vmem>>, vector<1x128xf32>
    %28 = vector.broadcast %27 : vector<1x128xf32> to vector<34x128xf32>
    %29 = arith.addf %26, %28 : vector<34x128xf32>
    %30 = arith.mulf %29, %29 : vector<34x128xf32>
    %31 = arith.mulf %29, %30 : vector<34x128xf32>
    %cst_14 = arith.constant 4.471500e-02 : f32
    %32 = vector.broadcast %cst_14 : f32 to vector<34x128xf32>
    %33 = arith.mulf %32, %31 : vector<34x128xf32>
    %34 = arith.addf %29, %33 : vector<34x128xf32>
    %cst_15 = arith.constant 0.797884583 : f32
    %35 = vector.broadcast %cst_15 : f32 to vector<34x128xf32>
    %36 = arith.mulf %35, %34 : vector<34x128xf32>
    %37 = math.tanh %36 : vector<34x128xf32>
    %cst_16 = arith.constant 1.000000e+00 : f32
    %38 = vector.broadcast %cst_16 : f32 to vector<34x128xf32>
    %39 = arith.addf %38, %37 : vector<34x128xf32>
    %cst_17 = arith.constant 5.000000e-01 : f32
    %40 = vector.broadcast %cst_17 : f32 to vector<34x128xf32>
    %41 = arith.mulf %40, %39 : vector<34x128xf32>
    %42 = arith.mulf %29, %41 : vector<34x128xf32>
    %43 = arith.truncf %42 : vector<34x128xf32> to vector<34x128xbf16>
    %c0_18 = arith.constant 0 : index
    %c0_19 = arith.constant 0 : index
    %44 = vector.load %arg6[%c0_18, %c0_19] : memref<128x32xbf16, #tpu.memory_space<vmem>>, vector<128x32xbf16>
    %cst_20 = arith.constant dense<0.000000e+00> : vector<34x32xf32>
    %45 = tpu.matmul %43, %44, %cst_20 {dimension_numbers = #tpu.dot_dimension_numbers<[1], [0], [0], [1], [0, 0, 1, 1], [], []>} : vector<34x128xbf16>, vector<128x32xbf16>, vector<34x32xf32> -> vector<34x32xf32>
    %c0_21 = arith.constant 0 : index
    %c0_22 = arith.constant 0 : index
    %46 = vector.load %arg7[%c0_21, %c0_22] : memref<1x32xf32, #tpu.memory_space<vmem>>, vector<1x32xf32>
    %47 = vector.broadcast %46 : vector<1x32xf32> to vector<34x32xf32>
    %48 = arith.addf %45, %47 : vector<34x32xf32>
    %49 = arith.addf %1, %48 : vector<34x32xf32>
    %50 = arith.truncf %49 : vector<34x32xf32> to vector<34x32xbf16>
    %c0_23 = arith.constant 0 : index
    %c0_24 = arith.constant 0 : index
    %51 = vector.load %arg8[%c0_23, %c0_24] : memref<34x32xbf16, #tpu.memory_space<vmem>>, vector<34x32xbf16>
    tpu.vector_store %arg8[%c0_23, %c0_24], %50 {strides = array<i32>} : memref<34x32xbf16, #tpu.memory_space<vmem>>, vector<34x32xbf16>,
    return
  }
  func.func @transform_0(%arg0: i32) -> (i32, i32) {
    %c0_i32 = arith.constant 0 : i32
    %c0_i32_0 = arith.constant 0 : i32
    return %arg0, %c0_i32 : i32, i32
  }
  func.func @transform_1(%arg0: i32) -> (i32, i32) {
    %c0_i32 = arith.constant 0 : i32
    %c0_i32_0 = arith.constant 0 : i32
    %c0_i32_1 = arith.constant 0 : i32
    return %c0_i32, %c0_i32_0 : i32, i32
  }
  func.func @transform_2(%arg0: i32) -> (i32, i32) {
    %c0_i32 = arith.constant 0 : i32
    %c0_i32_0 = arith.constant 0 : i32
    %c0_i32_1 = arith.constant 0 : i32
    return %c0_i32, %c0_i32_0 : i32, i32
  }
  func.func @transform_3(%arg0: i32) -> (i32, i32) {
    %c0_i32 = arith.constant 0 : i32
    %c0_i32_0 = arith.constant 0 : i32
    %c0_i32_1 = arith.constant 0 : i32
    return %c0_i32, %c0_i32_0 : i32, i32
  }
  func.func @transform_4(%arg0: i32) -> (i32, i32) {
    %c0_i32 = arith.constant 0 : i32
    %c0_i32_0 = arith.constant 0 : i32
    %c0_i32_1 = arith.constant 0 : i32
    return %c0_i32, %c0_i32_0 : i32, i32
  }
  func.func @transform_5(%arg0: i32) -> (i32, i32) {
    %c0_i32 = arith.constant 0 : i32
    %c0_i32_0 = arith.constant 0 : i32
    %c0_i32_1 = arith.constant 0 : i32
    return %c0_i32, %c0_i32_0 : i32, i32
  }
  func.func @transform_6(%arg0: i32) -> (i32, i32) {
    %c0_i32 = arith.constant 0 : i32
    %c0_i32_0 = arith.constant 0 : i32
    %c0_i32_1 = arith.constant 0 : i32
    return %c0_i32, %c0_i32_0 : i32, i32
  }
  func.func @transform_7(%arg0: i32) -> (i32, i32) {
    %c0_i32 = arith.constant 0 : i32
    %c0_i32_0 = arith.constant 0 : i32
    return %arg0, %c0_i32 : i32, i32
  }
}

module attributes {stable_mosaic.version = 11 : i64} {
  func.func @_layernorm_kernel(%arg0: i32, %arg1: memref<34x32xbf16, #tpu.memory_space<vmem>>, %arg2: memref<1x32xf32, #tpu.memory_space<vmem>>, %arg3: memref<1x32xf32, #tpu.memory_space<vmem>>, %arg4: memref<34x32xbf16, #tpu.memory_space<vmem>>) attributes {dimension_semantics = [#tpu.dimension_semantics<parallel>], iteration_bounds = array<i64: 1>, scalar_prefetch = 0 : i64, scratch_operands = 0 : i64, tpu.core_type = #tpu.core_type<tc>, window_params = [{transform_indices = @transform_0, window_bounds = array<i64: 34, 32>}, {pipeline_mode = #tpu.pipeline_mode<synchronous>, transform_indices = @transform_1, window_bounds = array<i64: 1, 32>}, {pipeline_mode = #tpu.pipeline_mode<synchronous>, transform_indices = @transform_2, window_bounds = array<i64: 1, 32>}, {transform_indices = @transform_3, window_bounds = array<i64: 34, 32>}]} {
    %c0 = arith.constant 0 : index
    %c0_0 = arith.constant 0 : index
    %0 = vector.load %arg1[%c0, %c0_0] : memref<34x32xbf16, #tpu.memory_space<vmem>>, vector<34x32xbf16>
    %1 = arith.extf %0 : vector<34x32xbf16> to vector<34x32xf32>
    %cst = arith.constant dense<0.000000e+00> : vector<34xf32>
    %2 = vector.multi_reduction <add>, %1, %cst [1] : vector<34x32xf32> to vector<34xf32>
    %3 = vector.shape_cast %2 : vector<34xf32> to vector<34x1xf32>
    %cst_1 = arith.constant 3.200000e+01 : f32
    %4 = vector.broadcast %cst_1 : f32 to vector<34x1xf32>
    %5 = arith.divf %3, %4 : vector<34x1xf32>
    %6 = vector.broadcast %5 : vector<34x1xf32> to vector<34x32xf32>
    %7 = arith.subf %1, %6 : vector<34x32xf32>
    %8 = arith.mulf %7, %7 : vector<34x32xf32>
    %cst_2 = arith.constant dense<0.000000e+00> : vector<34xf32>
    %9 = vector.multi_reduction <add>, %8, %cst_2 [1] : vector<34x32xf32> to vector<34xf32>
    %10 = vector.shape_cast %9 : vector<34xf32> to vector<34x1xf32>
    %cst_3 = arith.constant 3.200000e+01 : f32
    %11 = vector.broadcast %cst_3 : f32 to vector<34x1xf32>
    %12 = arith.divf %10, %11 : vector<34x1xf32>
    %cst_4 = arith.constant 9.99999997E-7 : f32
    %13 = vector.broadcast %cst_4 : f32 to vector<34x1xf32>
    %14 = arith.addf %12, %13 : vector<34x1xf32>
    %15 = math.rsqrt %14 : vector<34x1xf32>
    %16 = vector.broadcast %15 : vector<34x1xf32> to vector<34x32xf32>
    %17 = arith.mulf %7, %16 : vector<34x32xf32>
    %c0_5 = arith.constant 0 : index
    %c0_6 = arith.constant 0 : index
    %18 = vector.load %arg2[%c0_5, %c0_6] : memref<1x32xf32, #tpu.memory_space<vmem>>, vector<1x32xf32>
    %19 = vector.broadcast %18 : vector<1x32xf32> to vector<34x32xf32>
    %20 = arith.mulf %17, %19 : vector<34x32xf32>
    %c0_7 = arith.constant 0 : index
    %c0_8 = arith.constant 0 : index
    %21 = vector.load %arg3[%c0_7, %c0_8] : memref<1x32xf32, #tpu.memory_space<vmem>>, vector<1x32xf32>
    %22 = vector.broadcast %21 : vector<1x32xf32> to vector<34x32xf32>
    %23 = arith.addf %20, %22 : vector<34x32xf32>
    %24 = arith.truncf %23 : vector<34x32xf32> to vector<34x32xbf16>
    %c0_9 = arith.constant 0 : index
    %c0_10 = arith.constant 0 : index
    %25 = vector.load %arg4[%c0_9, %c0_10] : memref<34x32xbf16, #tpu.memory_space<vmem>>, vector<34x32xbf16>
    tpu.vector_store %arg4[%c0_9, %c0_10], %24 {strides = array<i32>} : memref<34x32xbf16, #tpu.memory_space<vmem>>, vector<34x32xbf16>,
    return
  }
  func.func @transform_0(%arg0: i32) -> (i32, i32) {
    %c0_i32 = arith.constant 0 : i32
    %c0_i32_0 = arith.constant 0 : i32
    return %arg0, %c0_i32 : i32, i32
  }
  func.func @transform_1(%arg0: i32) -> (i32, i32) {
    %c0_i32 = arith.constant 0 : i32
    %c0_i32_0 = arith.constant 0 : i32
    %c0_i32_1 = arith.constant 0 : i32
    return %c0_i32, %c0_i32_0 : i32, i32
  }
  func.func @transform_2(%arg0: i32) -> (i32, i32) {
    %c0_i32 = arith.constant 0 : i32
    %c0_i32_0 = arith.constant 0 : i32
    %c0_i32_1 = arith.constant 0 : i32
    return %c0_i32, %c0_i32_0 : i32, i32
  }
  func.func @transform_3(%arg0: i32) -> (i32, i32) {
    %c0_i32 = arith.constant 0 : i32
    %c0_i32_0 = arith.constant 0 : i32
    return %arg0, %c0_i32 : i32, i32
  }
}

module attributes {stable_mosaic.version = 11 : i64} {
  func.func @kernel(%arg0: i32, %arg1: i32, %arg2: i32, %arg3: memref<34x32xbf16, #tpu.memory_space<vmem>>, %arg4: memref<32x32xbf16, #tpu.memory_space<vmem>>, %arg5: memref<1x32xf32, #tpu.memory_space<vmem>>, %arg6: memref<34x32xbf16, #tpu.memory_space<vmem>>, %arg7: memref<34x32xbf16, #tpu.memory_space<vmem>>, %arg8: memref<34x32xf32, #tpu.memory_space<vmem>>) attributes {dimension_semantics = [#tpu.dimension_semantics<parallel>, #tpu.dimension_semantics<parallel>, #tpu.dimension_semantics<arbitrary>], iteration_bounds = array<i64: 1, 1, 1>, scalar_prefetch = 0 : i64, scratch_operands = 1 : i64, tpu.core_type = #tpu.core_type<tc>, window_params = [{transform_indices = @transform_0, window_bounds = array<i64: 34, 32>}, {transform_indices = @transform_1, window_bounds = array<i64: 32, 32>}, {transform_indices = @transform_2, window_bounds = array<i64: 1, 32>}, {transform_indices = @transform_3, window_bounds = array<i64: 34, 32>}, {transform_indices = @transform_4, window_bounds = array<i64: 34, 32>}]} {
    %c0_i32 = arith.constant 0 : i32
    %0 = arith.cmpi eq, %arg2, %c0_i32 : i32
    %1 = arith.extui %0 : i1 to i32
    %c0_i32_0 = arith.constant 0 : i32
    %2 = arith.cmpi ne, %1, %c0_i32_0 : i32
    scf.if %2 {
      %cst_10 = arith.constant 0.000000e+00 : f32
      %12 = vector.broadcast %cst_10 : f32 to vector<34x32xf32>
      %c0_11 = arith.constant 0 : index
      %c0_12 = arith.constant 0 : index
      %13 = vector.load %arg8[%c0_11, %c0_12] : memref<34x32xf32, #tpu.memory_space<vmem>>, vector<34x32xf32>
      tpu.vector_store %arg8[%c0_11, %c0_12], %12 {strides = array<i32>} : memref<34x32xf32, #tpu.memory_space<vmem>>, vector<34x32xf32>,
    } else {
    }
    %c0 = arith.constant 0 : index
    %c0_1 = arith.constant 0 : index
    %3 = vector.load %arg8[%c0, %c0_1] : memref<34x32xf32, #tpu.memory_space<vmem>>, vector<34x32xf32>
    %c0_2 = arith.constant 0 : index
    %c0_3 = arith.constant 0 : index
    %4 = vector.load %arg3[%c0_2, %c0_3] : memref<34x32xbf16, #tpu.memory_space<vmem>>, vector<34x32xbf16>
    %c0_4 = arith.constant 0 : index
    %c0_5 = arith.constant 0 : index
    %5 = vector.load %arg4[%c0_4, %c0_5] : memref<32x32xbf16, #tpu.memory_space<vmem>>, vector<32x32xbf16>
    %cst = arith.constant dense<0.000000e+00> : vector<34x32xf32>
    %6 = tpu.matmul %4, %5, %cst {dimension_numbers = #tpu.dot_dimension_numbers<[1], [0], [0], [1], [0, 0, 1, 1], [], []>} : vector<34x32xbf16>, vector<32x32xbf16>, vector<34x32xf32> -> vector<34x32xf32>
    %7 = arith.addf %3, %6 : vector<34x32xf32>
    %c0_6 = arith.constant 0 : index
    %c0_7 = arith.constant 0 : index
    %8 = vector.load %arg8[%c0_6, %c0_7] : memref<34x32xf32, #tpu.memory_space<vmem>>, vector<34x32xf32>
    tpu.vector_store %arg8[%c0_6, %c0_7], %7 {strides = array<i32>} : memref<34x32xf32, #tpu.memory_space<vmem>>, vector<34x32xf32>,
    %c0_i32_8 = arith.constant 0 : i32
    %9 = arith.cmpi eq, %arg2, %c0_i32_8 : i32
    %10 = arith.extui %9 : i1 to i32
    %c0_i32_9 = arith.constant 0 : i32
    %11 = arith.cmpi ne, %10, %c0_i32_9 : i32
    scf.if %11 {
      %c0_10 = arith.constant 0 : index
      %c0_11 = arith.constant 0 : index
      %12 = vector.load %arg8[%c0_10, %c0_11] : memref<34x32xf32, #tpu.memory_space<vmem>>, vector<34x32xf32>
      %c0_12 = arith.constant 0 : index
      %c0_13 = arith.constant 0 : index
      %13 = vector.load %arg5[%c0_12, %c0_13] : memref<1x32xf32, #tpu.memory_space<vmem>>, vector<1x32xf32>
      %14 = vector.broadcast %13 : vector<1x32xf32> to vector<34x32xf32>
      %15 = arith.addf %12, %14 : vector<34x32xf32>
      %c0_14 = arith.constant 0 : index
      %c0_15 = arith.constant 0 : index
      %16 = vector.load %arg6[%c0_14, %c0_15] : memref<34x32xbf16, #tpu.memory_space<vmem>>, vector<34x32xbf16>
      %17 = arith.extf %16 : vector<34x32xbf16> to vector<34x32xf32>
      %18 = arith.addf %15, %17 : vector<34x32xf32>
      %19 = arith.truncf %18 : vector<34x32xf32> to vector<34x32xbf16>
      %c0_16 = arith.constant 0 : index
      %c0_17 = arith.constant 0 : index
      %20 = vector.load %arg7[%c0_16, %c0_17] : memref<34x32xbf16, #tpu.memory_space<vmem>>, vector<34x32xbf16>
      tpu.vector_store %arg7[%c0_16, %c0_17], %19 {strides = array<i32>} : memref<34x32xbf16, #tpu.memory_space<vmem>>, vector<34x32xbf16>,
    } else {
    }
    return
  }
  func.func @transform_0(%arg0: i32, %arg1: i32, %arg2: i32) -> (i32, i32) {
    %c0_i32 = arith.constant 0 : i32
    return %arg0, %arg2 : i32, i32
  }
  func.func @transform_1(%arg0: i32, %arg1: i32, %arg2: i32) -> (i32, i32) {
    %c0_i32 = arith.constant 0 : i32
    return %arg2, %arg1 : i32, i32
  }
  func.func @transform_2(%arg0: i32, %arg1: i32, %arg2: i32) -> (i32, i32) {
    %c0_i32 = arith.constant 0 : i32
    %c0_i32_0 = arith.constant 0 : i32
    return %c0_i32, %arg1 : i32, i32
  }
  func.func @transform_3(%arg0: i32, %arg1: i32, %arg2: i32) -> (i32, i32) {
    %c0_i32 = arith.constant 0 : i32
    return %arg0, %arg1 : i32, i32
  }
  func.func @transform_4(%arg0: i32, %arg1: i32, %arg2: i32) -> (i32, i32) {
    %c0_i32 = arith.constant 0 : i32
    return %arg0, %arg1 : i32, i32
  }
}

module attributes {stable_mosaic.version = 11 : i64} {
  func.func @kernel(%arg0: i32, %arg1: i32, %arg2: i32, %arg3: memref<34x32xbf16, #tpu.memory_space<vmem>>, %arg4: memref<32x32xbf16, #tpu.memory_space<vmem>>, %arg5: memref<1x32xf32, #tpu.memory_space<vmem>>, %arg6: memref<34x32xbf16, #tpu.memory_space<vmem>>, %arg7: memref<34x32xf32, #tpu.memory_space<vmem>>) attributes {dimension_semantics = [#tpu.dimension_semantics<parallel>, #tpu.dimension_semantics<parallel>, #tpu.dimension_semantics<arbitrary>], iteration_bounds = array<i64: 1, 1, 1>, scalar_prefetch = 0 : i64, scratch_operands = 1 : i64, tpu.core_type = #tpu.core_type<tc>, window_params = [{transform_indices = @transform_0, window_bounds = array<i64: 34, 32>}, {transform_indices = @transform_1, window_bounds = array<i64: 32, 32>}, {transform_indices = @transform_2, window_bounds = array<i64: 1, 32>}, {transform_indices = @transform_3, window_bounds = array<i64: 34, 32>}]} {
    %c0_i32 = arith.constant 0 : i32
    %0 = arith.cmpi eq, %arg2, %c0_i32 : i32
    %1 = arith.extui %0 : i1 to i32
    %c0_i32_0 = arith.constant 0 : i32
    %2 = arith.cmpi ne, %1, %c0_i32_0 : i32
    scf.if %2 {
      %cst_10 = arith.constant 0.000000e+00 : f32
      %12 = vector.broadcast %cst_10 : f32 to vector<34x32xf32>
      %c0_11 = arith.constant 0 : index
      %c0_12 = arith.constant 0 : index
      %13 = vector.load %arg7[%c0_11, %c0_12] : memref<34x32xf32, #tpu.memory_space<vmem>>, vector<34x32xf32>
      tpu.vector_store %arg7[%c0_11, %c0_12], %12 {strides = array<i32>} : memref<34x32xf32, #tpu.memory_space<vmem>>, vector<34x32xf32>,
    } else {
    }
    %c0 = arith.constant 0 : index
    %c0_1 = arith.constant 0 : index
    %3 = vector.load %arg7[%c0, %c0_1] : memref<34x32xf32, #tpu.memory_space<vmem>>, vector<34x32xf32>
    %c0_2 = arith.constant 0 : index
    %c0_3 = arith.constant 0 : index
    %4 = vector.load %arg3[%c0_2, %c0_3] : memref<34x32xbf16, #tpu.memory_space<vmem>>, vector<34x32xbf16>
    %c0_4 = arith.constant 0 : index
    %c0_5 = arith.constant 0 : index
    %5 = vector.load %arg4[%c0_4, %c0_5] : memref<32x32xbf16, #tpu.memory_space<vmem>>, vector<32x32xbf16>
    %cst = arith.constant dense<0.000000e+00> : vector<34x32xf32>
    %6 = tpu.matmul %4, %5, %cst {dimension_numbers = #tpu.dot_dimension_numbers<[1], [0], [0], [1], [0, 0, 1, 1], [], []>} : vector<34x32xbf16>, vector<32x32xbf16>, vector<34x32xf32> -> vector<34x32xf32>
    %7 = arith.addf %3, %6 : vector<34x32xf32>
    %c0_6 = arith.constant 0 : index
    %c0_7 = arith.constant 0 : index
    %8 = vector.load %arg7[%c0_6, %c0_7] : memref<34x32xf32, #tpu.memory_space<vmem>>, vector<34x32xf32>
    tpu.vector_store %arg7[%c0_6, %c0_7], %7 {strides = array<i32>} : memref<34x32xf32, #tpu.memory_space<vmem>>, vector<34x32xf32>,
    %c0_i32_8 = arith.constant 0 : i32
    %9 = arith.cmpi eq, %arg2, %c0_i32_8 : i32
    %10 = arith.extui %9 : i1 to i32
    %c0_i32_9 = arith.constant 0 : i32
    %11 = arith.cmpi ne, %10, %c0_i32_9 : i32
    scf.if %11 {
      %c0_10 = arith.constant 0 : index
      %c0_11 = arith.constant 0 : index
      %12 = vector.load %arg7[%c0_10, %c0_11] : memref<34x32xf32, #tpu.memory_space<vmem>>, vector<34x32xf32>
      %c0_12 = arith.constant 0 : index
      %c0_13 = arith.constant 0 : index
      %13 = vector.load %arg5[%c0_12, %c0_13] : memref<1x32xf32, #tpu.memory_space<vmem>>, vector<1x32xf32>
      %14 = vector.broadcast %13 : vector<1x32xf32> to vector<34x32xf32>
      %15 = arith.addf %12, %14 : vector<34x32xf32>
      %16 = arith.truncf %15 : vector<34x32xf32> to vector<34x32xbf16>
      %c0_14 = arith.constant 0 : index
      %c0_15 = arith.constant 0 : index
      %17 = vector.load %arg6[%c0_14, %c0_15] : memref<34x32xbf16, #tpu.memory_space<vmem>>, vector<34x32xbf16>
      tpu.vector_store %arg6[%c0_14, %c0_15], %16 {strides = array<i32>} : memref<34x32xbf16, #tpu.memory_space<vmem>>, vector<34x32xbf16>,
    } else {
    }
    return
  }
  func.func @transform_0(%arg0: i32, %arg1: i32, %arg2: i32) -> (i32, i32) {
    %c0_i32 = arith.constant 0 : i32
    return %arg0, %arg2 : i32, i32
  }
  func.func @transform_1(%arg0: i32, %arg1: i32, %arg2: i32) -> (i32, i32) {
    %c0_i32 = arith.constant 0 : i32
    return %arg2, %arg1 : i32, i32
  }
  func.func @transform_2(%arg0: i32, %arg1: i32, %arg2: i32) -> (i32, i32) {
    %c0_i32 = arith.constant 0 : i32
    %c0_i32_0 = arith.constant 0 : i32
    return %c0_i32, %arg1 : i32, i32
  }
  func.func @transform_3(%arg0: i32, %arg1: i32, %arg2: i32) -> (i32, i32) {
    %c0_i32 = arith.constant 0 : i32
    return %arg0, %arg1 : i32, i32
  }
}

module attributes {stable_mosaic.version = 11 : i64} {
  func.func @_ln_matmul_kernel(%arg0: i32, %arg1: i32, %arg2: memref<34x32xbf16, #tpu.memory_space<vmem>>, %arg3: memref<1x32xf32, #tpu.memory_space<vmem>>, %arg4: memref<1x32xf32, #tpu.memory_space<vmem>>, %arg5: memref<32x48xbf16, #tpu.memory_space<vmem>>, %arg6: memref<1x48xf32, #tpu.memory_space<vmem>>, %arg7: memref<34x48xf32, #tpu.memory_space<vmem>>) attributes {dimension_semantics = [#tpu.dimension_semantics<parallel>, #tpu.dimension_semantics<parallel>], iteration_bounds = array<i64: 1, 1>, scalar_prefetch = 0 : i64, scratch_operands = 0 : i64, tpu.core_type = #tpu.core_type<tc>, window_params = [{transform_indices = @transform_0, window_bounds = array<i64: 34, 32>}, {pipeline_mode = #tpu.pipeline_mode<synchronous>, transform_indices = @transform_1, window_bounds = array<i64: 1, 32>}, {pipeline_mode = #tpu.pipeline_mode<synchronous>, transform_indices = @transform_2, window_bounds = array<i64: 1, 32>}, {transform_indices = @transform_3, window_bounds = array<i64: 32, 48>}, {transform_indices = @transform_4, window_bounds = array<i64: 1, 48>}, {transform_indices = @transform_5, window_bounds = array<i64: 34, 48>}]} {
    %c0 = arith.constant 0 : index
    %c0_0 = arith.constant 0 : index
    %0 = vector.load %arg2[%c0, %c0_0] : memref<34x32xbf16, #tpu.memory_space<vmem>>, vector<34x32xbf16>
    %1 = arith.extf %0 : vector<34x32xbf16> to vector<34x32xf32>
    %cst = arith.constant dense<0.000000e+00> : vector<34xf32>
    %2 = vector.multi_reduction <add>, %1, %cst [1] : vector<34x32xf32> to vector<34xf32>
    %3 = vector.shape_cast %2 : vector<34xf32> to vector<34x1xf32>
    %cst_1 = arith.constant 3.200000e+01 : f32
    %4 = vector.broadcast %cst_1 : f32 to vector<34x1xf32>
    %5 = arith.divf %3, %4 : vector<34x1xf32>
    %6 = vector.broadcast %5 : vector<34x1xf32> to vector<34x32xf32>
    %7 = arith.subf %1, %6 : vector<34x32xf32>
    %8 = arith.mulf %7, %7 : vector<34x32xf32>
    %cst_2 = arith.constant dense<0.000000e+00> : vector<34xf32>
    %9 = vector.multi_reduction <add>, %8, %cst_2 [1] : vector<34x32xf32> to vector<34xf32>
    %10 = vector.shape_cast %9 : vector<34xf32> to vector<34x1xf32>
    %cst_3 = arith.constant 3.200000e+01 : f32
    %11 = vector.broadcast %cst_3 : f32 to vector<34x1xf32>
    %12 = arith.divf %10, %11 : vector<34x1xf32>
    %cst_4 = arith.constant 9.99999997E-7 : f32
    %13 = vector.broadcast %cst_4 : f32 to vector<34x1xf32>
    %14 = arith.addf %12, %13 : vector<34x1xf32>
    %15 = math.rsqrt %14 : vector<34x1xf32>
    %16 = vector.broadcast %15 : vector<34x1xf32> to vector<34x32xf32>
    %17 = arith.mulf %7, %16 : vector<34x32xf32>
    %c0_5 = arith.constant 0 : index
    %c0_6 = arith.constant 0 : index
    %18 = vector.load %arg3[%c0_5, %c0_6] : memref<1x32xf32, #tpu.memory_space<vmem>>, vector<1x32xf32>
    %19 = vector.broadcast %18 : vector<1x32xf32> to vector<34x32xf32>
    %20 = arith.mulf %17, %19 : vector<34x32xf32>
    %c0_7 = arith.constant 0 : index
    %c0_8 = arith.constant 0 : index
    %21 = vector.load %arg4[%c0_7, %c0_8] : memref<1x32xf32, #tpu.memory_space<vmem>>, vector<1x32xf32>
    %22 = vector.broadcast %21 : vector<1x32xf32> to vector<34x32xf32>
    %23 = arith.addf %20, %22 : vector<34x32xf32>
    %24 = arith.truncf %23 : vector<34x32xf32> to vector<34x32xbf16>
    %c0_9 = arith.constant 0 : index
    %c0_10 = arith.constant 0 : index
    %25 = vector.load %arg5[%c0_9, %c0_10] : memref<32x48xbf16, #tpu.memory_space<vmem>>, vector<32x48xbf16>
    %cst_11 = arith.constant dense<0.000000e+00> : vector<34x48xf32>
    %26 = tpu.matmul %24, %25, %cst_11 {dimension_numbers = #tpu.dot_dimension_numbers<[1], [0], [0], [1], [0, 0, 1, 1], [], []>} : vector<34x32xbf16>, vector<32x48xbf16>, vector<34x48xf32> -> vector<34x48xf32>
    %c0_12 = arith.constant 0 : index
    %c0_13 = arith.constant 0 : index
    %27 = vector.load %arg6[%c0_12, %c0_13] : memref<1x48xf32, #tpu.memory_space<vmem>>, vector<1x48xf32>
    %28 = vector.broadcast %27 : vector<1x48xf32> to vector<34x48xf32>
    %29 = arith.addf %26, %28 : vector<34x48xf32>
    %c0_14 = arith.constant 0 : index
    %c0_15 = arith.constant 0 : index
    %30 = vector.load %arg7[%c0_14, %c0_15] : memref<34x48xf32, #tpu.memory_space<vmem>>, vector<34x48xf32>
    tpu.vector_store %arg7[%c0_14, %c0_15], %29 {strides = array<i32>} : memref<34x48xf32, #tpu.memory_space<vmem>>, vector<34x48xf32>,
    return
  }
  func.func @transform_0(%arg0: i32, %arg1: i32) -> (i32, i32) {
    %c0_i32 = arith.constant 0 : i32
    %c0_i32_0 = arith.constant 0 : i32
    return %arg0, %c0_i32 : i32, i32
  }
  func.func @transform_1(%arg0: i32, %arg1: i32) -> (i32, i32) {
    %c0_i32 = arith.constant 0 : i32
    %c0_i32_0 = arith.constant 0 : i32
    %c0_i32_1 = arith.constant 0 : i32
    return %c0_i32, %c0_i32_0 : i32, i32
  }
  func.func @transform_2(%arg0: i32, %arg1: i32) -> (i32, i32) {
    %c0_i32 = arith.constant 0 : i32
    %c0_i32_0 = arith.constant 0 : i32
    %c0_i32_1 = arith.constant 0 : i32
    return %c0_i32, %c0_i32_0 : i32, i32
  }
  func.func @transform_3(%arg0: i32, %arg1: i32) -> (i32, i32) {
    %c0_i32 = arith.constant 0 : i32
    %c0_i32_0 = arith.constant 0 : i32
    return %c0_i32, %arg1 : i32, i32
  }
  func.func @transform_4(%arg0: i32, %arg1: i32) -> (i32, i32) {
    %c0_i32 = arith.constant 0 : i32
    %c0_i32_0 = arith.constant 0 : i32
    return %c0_i32, %arg1 : i32, i32
  }
  func.func @transform_5(%arg0: i32, %arg1: i32) -> (i32, i32) {
    %c0_i32 = arith.constant 0 : i32
    return %arg0, %arg1 : i32, i32
  }
}

</mosaic_0001>

<llo_original>
// kernel: encoder_decoder_forward.16
$region0: #{encoder_decoder_forward.16}
  #allocation0 [shape = 'u32[]', space=smem, size = 0x4, offset = 0x4, fixed_abs, tag = 'smem constant byte address 0x4 - core index']
  #allocation1 [shape = 'u32[144,128]{1,0:T(1,128)}', space=vmem, size = 0x12000, scoped, tag = 'internal scratch']
  #allocation2 [shape = 'f32[32,32]{1,0:T(8,128)}', space=vmem, size = 0x4000, scoped, tag = 'scratch operand']
  %s0 = inlined_call_operand.vmem [shape: bf16[32,48], index: 0, kind: input, shape index: {}]
  %s1 = inlined_call_operand.vmem [shape: bf16[48,32], index: 1, kind: input, shape index: {}]
  %s2 = inlined_call_operand.vmem [shape: f32[1,32], index: 2, kind: input, shape index: {}]
  %s3 = inlined_call_operand.vmem [shape: bf16[32,32], index: 3, kind: output, shape index: {}]
  %s4 = sld [smem:[#allocation0]]
  $region30: #{encoder_decoder_forward.16} parent=0
    _
  %s6 = ssub.s32 1, %s4
  %s7 = scalar_select 0, %s6, %s4
  // Predicated region
  $region2: #{encoder_decoder_forward.16} parent=0 // pred_check
    _
  $region3: #{encoder_decoder_forward.16} parent=0 // pred_check_branch
    %9 = sbr.rel (0) target = $region5
  $region4: #{encoder_decoder_forward.16} parent=0 // pred_region
    _
  $region5: #{encoder_decoder_forward.16} parent=0 // pred_fallthru
    _
  // Predicated region
  $region6: #{encoder_decoder_forward.16} parent=0 // pred_check
    _
  $region7: #{encoder_decoder_forward.16} parent=0 // pred_check_branch
    %11 = sbr.rel (0) target = $region9
  $region8: #{encoder_decoder_forward.16} parent=0 // pred_region
    _
  $region9: #{encoder_decoder_forward.16} parent=0 // pred_fallthru
    _
  // Predicated region
  $region10: #{encoder_decoder_forward.16} parent=0 // pred_check
    _
  $region11: #{encoder_decoder_forward.16} parent=0 // pred_check_branch
    %13 = sbr.rel (0) target = $region13
  $region12: #{encoder_decoder_forward.16} parent=0 // pred_region
    _
  $region13: #{encoder_decoder_forward.16} parent=0 // pred_fallthru
    _
  %p15 = scmp.eq.s32.totalorder 0, 0
  // Predicated region
  $region14: #{encoder_decoder_forward.16} parent=0 // pred_check
    %p16 = pneg %p15
  $region15: #{encoder_decoder_forward.16} parent=0 // pred_check_branch
    %18 = sbr.rel (%p16) target = $region17
  $region16: #{encoder_decoder_forward.16} parent=0 // pred_region
    %vm19 = vcmask 261120
    %20 = vst.msk [vmem:[#allocation2] sm:$0xff] %vm19, 0.0
    %21 = vst.msk [vmem:[#allocation2 + $0x8] sm:$0xff] %vm19, 0.0
    %22 = vst.msk [vmem:[#allocation2 + $0x10] sm:$0xff] %vm19, 0.0
    %23 = vst.msk [vmem:[#allocation2 + $0x18] sm:$0xff] %vm19, 0.0
  $region17: #{encoder_decoder_forward.16} parent=0 // pred_fallthru
    _
  %v24 = vld [vmem:[#allocation2] sm:$0xff]
  %v25 = vld [vmem:[#allocation2 + $0x8] sm:$0xff]
  %v26 = vld [vmem:[#allocation2 + $0x10] sm:$0xff]
  %v27 = vld [vmem:[#allocation2 + $0x18] sm:$0xff]
  %v28 = vld [vmem:[%s0] sm:$0xf]
  %v29 = vld [vmem:[%s0 + $0x4] sm:$0xf]
  %v30 = vld [vmem:[%s0 + $0x8] sm:$0xf]
  %v31 = vld [vmem:[%s0 + $0xc] sm:$0xf]
  %v32 = vld [vmem:[%s1] sm:$0xf]
  %v33 = vld [vmem:[%s1 + $0x4] sm:$0xf]
  %v34 = vld [vmem:[%s1 + $0x8] sm:$0xf]
  %v35 = vld [vmem:[%s1 + $0xc] sm:$0xf]
  %v36 = vld [vmem:[%s1 + $0x10] sm:$0xf]
  %v37 = vld [vmem:[%s1 + $0x14] sm:$0xf]
  %v42 = vunpack.c.l.b16 %v28
  %v43 = vunpack.c.l.b16 %v29
  %v44 = vunpack.c.l.b16 %v30
  %v45 = vunpack.c.l.b16 %v31
  %v46 = vpack.c.b16 %v43, %v42
  %v47 = vpack.c.b16 %v45, %v44
  %v54 = vunpack.c.l.b16 %v32
  %v55 = vunpack.c.l.b16 %v33
  %v56 = vunpack.c.l.b16 %v34
  %v57 = vunpack.c.l.b16 %v35
  %v58 = vunpack.c.l.b16 %v36
  %v59 = vunpack.c.l.b16 %v37
  %v60 = vpack.c.b16 %v55, %v54
  %v61 = vpack.c.b16 %v57, %v56
  %v62 = vpack.c.b16 %v59, %v58
  %vm66 = vcmask 392192
  %v68 = vsel %vm66, %v46, 0
  %v71 = vsel %vm66, %v47, 0
  %73 = vmatprep.subr.bf16.mxu0 0
  %74 = vmatpush1.bf16.msra.mxu0 %v60
  %75 = vmatprep.subr.bf16.mxu0 0
  %76 = vmatpush1.bf16.msra.mxu0 %v61
  %77 = vmatprep.subr.bf16.mxu0 0
  %78 = vmatpush1.bf16.msra.mxu0 %v62
  %79 = vmatprep.subr.bf16.mxu0 0
  %80 = vmatpush1.bf16.msra.mxu0 0
  %81 = vmatprep.subr.bf16.mxu0 0
  %82 = vmatpush1.bf16.msra.mxu0 0
  %83 = vmatprep.subr.bf16.mxu0 0
  %84 = vmatpush1.bf16.msra.mxu0 0
  %85 = vmatprep.subr.bf16.mxu0 0
  %86 = vmatpush1.bf16.msra.mxu0 0
  %87 = vmatprep.subr.bf16.mxu0 0
  %88 = vmatpush1.bf16.msra.mxu0 0
  %89 = vmatprep.subr.bf16.mxu0 0
  %90 = vmatpush1.bf16.msra.mxu0 0
  %91 = vmatprep.subr.bf16.mxu0 0
  %92 = vmatpush1.bf16.msra.mxu0 0
  %93 = vmatprep.subr.bf16.mxu0 0
  %94 = vmatpush1.bf16.msra.mxu0 0
  %95 = vmatprep.subr.bf16.mxu0 0
  %96 = vmatpush1.bf16.msra.mxu0 0
  %97 = vmatprep.subr.bf16.mxu0 0
  %98 = vmatpush1.bf16.msra.mxu0 0
  %99 = vmatprep.subr.bf16.mxu0 0
  %100 = vmatpush1.bf16.msra.mxu0 0
  %101 = vmatprep.subr.bf16.mxu0 0
  %102 = vmatpush1.bf16.msra.mxu0 0
  %103 = vmatprep.subr.bf16.mxu0 0
  %104 = vmatpush1.bf16.msra.mxu0 0
  %105 = vmatprep.mubr.bf16.mxu0 0
  %106 = vmatmul.mubr.bf16.gmra.mrb[0].mxu0 %v68
  %v107 = vpop.f32.mrb[0].mxu0
  %v108 = vadd.f32 0.0, %v107
  %v109 = vpop.f32.mrb[0].mxu0
  %v110 = vpop.f32.mrb[0].mxu0
  %v111 = vadd.f32 0.0, %v110
  %v112 = vpop.f32.mrb[0].mxu0
  %113 = vmatprep.mubr.bf16.mxu0 0
  %114 = vmatmul.mubr.bf16.gmra.mrb[0].mxu0 %v71
  %v115 = vpop.f32.mrb[0].mxu0
  %v116 = vadd.f32 0.0, %v115
  %v117 = vpop.f32.mrb[0].mxu0
  %v118 = vpop.f32.mrb[0].mxu0
  %v119 = vadd.f32 0.0, %v118
  %v120 = vpop.f32.mrb[0].mxu0
  %121 = vdwg.mxu0
  %v122 = vadd.f32 %v24, %v108
  %v123 = vadd.f32 %v25, %v111
  %v124 = vadd.f32 %v26, %v116
  %v125 = vadd.f32 %v27, %v119
  %vm126 = vcmask 261120
  %127 = vst.msk [vmem:[#allocation2] sm:$0xff] %vm126, %v122
  %128 = vst.msk [vmem:[#allocation2 + $0x8] sm:$0xff] %vm126, %v123
  %129 = vst.msk [vmem:[#allocation2 + $0x10] sm:$0xff] %vm126, %v124
  %130 = vst.msk [vmem:[#allocation2 + $0x18] sm:$0xff] %vm126, %v125
  // Predicated region
  $region18: #{encoder_decoder_forward.16} parent=0 // pred_check
    %p131 = pneg %p15
  $region19: #{encoder_decoder_forward.16} parent=0 // pred_check_branch
    %133 = sbr.rel (%p131) target = $region21
  $region20: #{encoder_decoder_forward.16} parent=0 // pred_region
    %v134 = vld [vmem:[#allocation2] sm:$0xff]
    %v135 = vld [vmem:[#allocation2 + $0x8] sm:$0xff]
    %v136 = vld [vmem:[#allocation2 + $0x10] sm:$0xff]
    %v137 = vld [vmem:[#allocation2 + $0x18] sm:$0xff]
    %v138 = vld [vmem:[%s2] sm:$0x1]
    %v140 = vlaneseq
    %v141 = vshrl.u32 %v140, 7
    %v142 = vsub.s32 0, %v141
    %v143 = vrot.slane %v138, %v142
    %v145 = vadd.f32 %v134, %v143
    %v146 = vadd.f32 %v135, %v143
    %v147 = vadd.f32 %v136, %v143
    %v148 = vadd.f32 %v137, %v143
    %v149 = vpack.c.bf16 %v146, %v145
    %v150 = vpack.c.bf16 %v148, %v147
    %v153 = vunpack.c.l.b16 %v149
    %v154 = vunpack.c.h.b16 %v149
    %v155 = vunpack.c.l.b16 %v150
    %v156 = vunpack.c.h.b16 %v150
    %v157 = vpack.c.b16 %v153, %v153
    %v158 = vpack.c.b16 %v154, %v154
    %v159 = vpack.c.b16 %v155, %v155
    %v160 = vpack.c.b16 %v156, %v156
    %vm165 = vcmask 257024
    %166 = vst.msk [vmem:[%s3] sm:$0xf] %vm165, %v157
    %167 = vst.msk [vmem:[%s3 + $0x4] sm:$0xf] %vm165, %v158
    %168 = vst.msk [vmem:[%s3 + $0x8] sm:$0xf] %vm165, %v159
    %169 = vst.msk [vmem:[%s3 + $0xc] sm:$0xf] %vm165, %v160
  $region21: #{encoder_decoder_forward.16} parent=0 // pred_fallthru
    _
  // Predicated region
  $region22: #{encoder_decoder_forward.16} parent=0 // pred_check
    _
  $region23: #{encoder_decoder_forward.16} parent=0 // pred_check_branch
    %171 = sbr.rel (0) target = $region25
  $region24: #{encoder_decoder_forward.16} parent=0 // pred_region
    _
  $region25: #{encoder_decoder_forward.16} parent=0 // pred_fallthru
    _
  // Predicated region
  $region26: #{encoder_decoder_forward.16} parent=0 // pred_check
    _
  $region27: #{encoder_decoder_forward.16} parent=0 // pred_check_branch
    %173 = sbr.rel (0) target = $region29
  $region28: #{encoder_decoder_forward.16} parent=0 // pred_region
    _
  $region29: #{encoder_decoder_forward.16} parent=0 // pred_fallthru
    _

// kernel: encoder_decoder_forward.17
$region0: #{encoder_decoder_forward.17}
  #allocation0 [shape = 'u32[]', space=smem, size = 0x4, offset = 0x4, fixed_abs, tag = 'smem constant byte address 0x4 - core index']
  #allocation1 [shape = 'u32[144,128]{1,0:T(1,128)}', space=vmem, size = 0x12000, scoped, tag = 'internal scratch']
  %s0 = inlined_call_operand.vmem [shape: bf16[34,32], index: 0, kind: input, shape index: {}]
  %s1 = inlined_call_operand.vmem [shape: f32[1,32], index: 1, kind: input, shape index: {}]
  %s2 = inlined_call_operand.vmem [shape: f32[1,32], index: 2, kind: input, shape index: {}]
  %s3 = inlined_call_operand.vmem [shape: bf16[32,96], index: 3, kind: input, shape index: {}]
  %s4 = inlined_call_operand.vmem [shape: f32[1,96], index: 4, kind: input, shape index: {}]
  %s5 = inlined_call_operand.vmem [shape: bf16[34,96], index: 5, kind: output, shape index: {}]
  %s6 = sld [smem:[#allocation0]]
  $region30: #{encoder_decoder_forward.17} parent=0
    _
  %s8 = ssub.s32 1, %s6
  %s9 = scalar_select 0, %s8, %s6
  // Predicated region
  $region2: #{encoder_decoder_forward.17} parent=0 // pred_check
    _
  $region3: #{encoder_decoder_forward.17} parent=0 // pred_check_branch
    %11 = sbr.rel (0) target = $region5
  $region4: #{encoder_decoder_forward.17} parent=0 // pred_region
    _
  $region5: #{encoder_decoder_forward.17} parent=0 // pred_fallthru
    _
  // Predicated region
  $region6: #{encoder_decoder_forward.17} parent=0 // pred_check
    _
  $region7: #{encoder_decoder_forward.17} parent=0 // pred_check_branch
    %13 = sbr.rel (0) target = $region9
  $region8: #{encoder_decoder_forward.17} parent=0 // pred_region
    _
  $region9: #{encoder_decoder_forward.17} parent=0 // pred_fallthru
    _
  // Predicated region
  $region10: #{encoder_decoder_forward.17} parent=0 // pred_check
    _
  $region11: #{encoder_decoder_forward.17} parent=0 // pred_check_branch
    %15 = sbr.rel (0) target = $region13
  $region12: #{encoder_decoder_forward.17} parent=0 // pred_region
    _
  $region13: #{encoder_decoder_forward.17} parent=0 // pred_fallthru
    _
  // Predicated region
  $region14: #{encoder_decoder_forward.17} parent=0 // pred_check
    _
  $region15: #{encoder_decoder_forward.17} parent=0 // pred_check_branch
    %17 = sbr.rel (0) target = $region17
  $region16: #{encoder_decoder_forward.17} parent=0 // pred_region
    _
  $region17: #{encoder_decoder_forward.17} parent=0 // pred_fallthru
    _
  // Predicated region
  $region18: #{encoder_decoder_forward.17} parent=0 // pred_check
    _
  $region19: #{encoder_decoder_forward.17} parent=0 // pred_check_branch
    %19 = sbr.rel (0) target = $region21
  $region20: #{encoder_decoder_forward.17} parent=0 // pred_region
    _
  $region21: #{encoder_decoder_forward.17} parent=0 // pred_fallthru
    _
  %v21 = vld [vmem:[%s0] sm:$0xf]
  %v22 = vld [vmem:[%s0 + $0x4] sm:$0xf]
  %v23 = vld [vmem:[%s0 + $0x8] sm:$0xf]
  %v24 = vld [vmem:[%s0 + $0xc] sm:$0xf]
  %v25 = vld [vmem:[%s0 + $0x10] sm:$0x1]
  %v26 = vunpack.c.l.bf16 %v21
  %v27 = vunpack.c.l.bf16 %v22
  %v28 = vunpack.c.l.bf16 %v23
  %v29 = vunpack.c.l.bf16 %v24
  %v30 = vunpack.c.l.bf16 %v25
  %vm31 = vcmask 261120
  %v32 = vsel %vm31, %v26, 0.0
  %33 = vadd.xlane.f32.xlu0 %v32
  %v34 = vpop.xlane.xlu0 %33
  %v35 = vsel %vm31, %v27, 0.0
  %36 = vadd.xlane.f32.xlu0 %v35
  %v37 = vpop.xlane.xlu0 %36
  %v38 = vsel %vm31, %v28, 0.0
  %39 = vadd.xlane.f32.xlu0 %v38
  %v40 = vpop.xlane.xlu0 %39
  %v41 = vsel %vm31, %v29, 0.0
  %42 = vadd.xlane.f32.xlu0 %v41
  %v43 = vpop.xlane.xlu0 %42
  %vm44 = vcmask 254976
  %v45 = vsel %vm44, %v30, 0.0
  %46 = vadd.xlane.f32.xlu0 %v45
  %v47 = vpop.xlane.xlu0 %46
  %v48 = vrcp.pop 32.0
  %v49 = vmul.f32 %v34, %v48
  %v50 = vmul.f32 %v37, %v48
  %v51 = vmul.f32 %v40, %v48
  %v52 = vmul.f32 %v43, %v48
  %v53 = vmul.f32 %v47, %v48
  %v54 = vsub.f32 %v26, %v49
  %v55 = vsub.f32 %v27, %v50
  %v56 = vsub.f32 %v28, %v51
  %v57 = vsub.f32 %v29, %v52
  %v58 = vsub.f32 %v30, %v53
  %v59 = vmul.f32 %v54, %v54
  %v60 = vmul.f32 %v55, %v55
  %v61 = vmul.f32 %v56, %v56
  %v62 = vmul.f32 %v57, %v57
  %v63 = vmul.f32 %v58, %v58
  %v64 = vsel %vm31, %v59, 0.0
  %65 = vadd.xlane.f32.xlu0 %v64
  %v66 = vpop.xlane.xlu0 %65
  %v67 = vsel %vm31, %v60, 0.0
  %68 = vadd.xlane.f32.xlu0 %v67
  %v69 = vpop.xlane.xlu0 %68
  %v70 = vsel %vm31, %v61, 0.0
  %71 = vadd.xlane.f32.xlu0 %v70
  %v72 = vpop.xlane.xlu0 %71
  %v73 = vsel %vm31, %v62, 0.0
  %74 = vadd.xlane.f32.xlu0 %v73
  %v75 = vpop.xlane.xlu0 %74
  %v76 = vsel %vm44, %v63, 0.0
  %77 = vadd.xlane.f32.xlu0 %v76
  %v78 = vpop.xlane.xlu0 %77
  %v79 = vmul.f32 %v66, %v48
  %v80 = vmul.f32 %v69, %v48
  %v81 = vmul.f32 %v72, %v48
  %v82 = vmul.f32 %v75, %v48
  %v83 = vmul.f32 %v78, %v48
  %v84 = vadd.f32 %v79, 1e-06
  %v85 = vadd.f32 %v80, 1e-06
  %v86 = vadd.f32 %v81, 1e-06
  %v87 = vadd.f32 %v82, 1e-06
  %v88 = vadd.f32 %v83, 1e-06
  %v89 = vrsqrt.pop %v84
  %v90 = vrsqrt.pop %v85
  %v91 = vrsqrt.pop %v86
  %v92 = vrsqrt.pop %v87
  %v93 = vrsqrt.pop %v88
  %v94 = vmul.f32 %v54, %v89
  %v95 = vmul.f32 %v55, %v90
  %v96 = vmul.f32 %v56, %v91
  %v97 = vmul.f32 %v57, %v92
  %v98 = vmul.f32 %v58, %v93
  %v99 = vld [vmem:[%s1] sm:$0x1]
  %v101 = vlaneseq
  %v102 = vshrl.u32 %v101, 7
  %v103 = vsub.s32 0, %v102
  %v104 = vrot.slane %v99, %v103
  %v106 = vmul.f32 %v94, %v104
  %v107 = vmul.f32 %v95, %v104
  %v108 = vmul.f32 %v96, %v104
  %v109 = vmul.f32 %v97, %v104
  %v110 = vmul.f32 %v98, %v104
  %v111 = vld [vmem:[%s2] sm:$0x1]
  %v113 = vlaneseq
  %v114 = vshrl.u32 %v113, 7
  %v115 = vsub.s32 0, %v114
  %v116 = vrot.slane %v111, %v115
  %v118 = vadd.f32 %v106, %v116
  %v119 = vadd.f32 %v107, %v116
  %v120 = vadd.f32 %v108, %v116
  %v121 = vadd.f32 %v109, %v116
  %v122 = vadd.f32 %v110, %v116
  %v123 = vpack.c.bf16 %v119, %v118
  %v124 = vpack.c.bf16 %v121, %v120
  %v125 = vpack.c.bf16 %v122, %v122
  %v126 = vld [vmem:[%s3] sm:$0xf]
  %v127 = vld [vmem:[%s3 + $0x4] sm:$0xf]
  %v128 = vld [vmem:[%s3 + $0x8] sm:$0xf]
  %v129 = vld [vmem:[%s3 + $0xc] sm:$0xf]
  %v130 = vld [vmem:[%s4] sm:$0x1]
  %v132 = vlaneseq
  %v133 = vshrl.u32 %v132, 7
  %v134 = vsub.s32 0, %v133
  %v135 = vrot.slane %v130, %v134
  %v141 = vunpack.c.l.b16 %v126
  %v142 = vunpack.c.l.b16 %v127
  %v143 = vunpack.c.l.b16 %v128
  %v144 = vunpack.c.l.b16 %v129
  %v145 = vpack.c.b16 %v142, %v141
  %v146 = vpack.c.b16 %v144, %v143
  %v150 = vsel %vm31, %v123, 0
  %v153 = vsel %vm31, %v124, 0
  %v156 = vsel %vm31, %v125, 0
  %158 = vmatprep.subr.bf16.mxu0 0
  %159 = vmatpush1.bf16.msra.mxu0 %v145
  %160 = vmatprep.subr.bf16.mxu0 0
  %161 = vmatpush1.bf16.msra.mxu0 %v146
  %162 = vmatprep.subr.bf16.mxu0 0
  %163 = vmatpush1.bf16.msra.mxu0 0
  %164 = vmatprep.subr.bf16.mxu0 0
  %165 = vmatpush1.bf16.msra.mxu0 0
  %166 = vmatprep.subr.bf16.mxu0 0
  %167 = vmatpush1.bf16.msra.mxu0 0
  %168 = vmatprep.subr.bf16.mxu0 0
  %169 = vmatpush1.bf16.msra.mxu0 0
  %170 = vmatprep.subr.bf16.mxu0 0
  %171 = vmatpush1.bf16.msra.mxu0 0
  %172 = vmatprep.subr.bf16.mxu0 0
  %173 = vmatpush1.bf16.msra.mxu0 0
  %174 = vmatprep.subr.bf16.mxu0 0
  %175 = vmatpush1.bf16.msra.mxu0 0
  %176 = vmatprep.subr.bf16.mxu0 0
  %177 = vmatpush1.bf16.msra.mxu0 0
  %178 = vmatprep.subr.bf16.mxu0 0
  %179 = vmatpush1.bf16.msra.mxu0 0
  %180 = vmatprep.subr.bf16.mxu0 0
  %181 = vmatpush1.bf16.msra.mxu0 0
  %182 = vmatprep.subr.bf16.mxu0 0
  %183 = vmatpush1.bf16.msra.mxu0 0
  %184 = vmatprep.subr.bf16.mxu0 0
  %185 = vmatpush1.bf16.msra.mxu0 0
  %186 = vmatprep.subr.bf16.mxu0 0
  %187 = vmatpush1.bf16.msra.mxu0 0
  %188 = vmatprep.subr.bf16.mxu0 0
  %189 = vmatpush1.bf16.msra.mxu0 0
  %190 = vmatprep.mubr.bf16.mxu0 0
  %191 = vmatmul.mubr.bf16.gmra.mrb[0].mxu0 %v150
  %v192 = vpop.f32.mrb[0].mxu0
  %v193 = vadd.f32 %v135, %v192
  %v194 = vpop.f32.mrb[0].mxu0
  %v195 = vpop.f32.mrb[0].mxu0
  %v196 = vadd.f32 %v135, %v195
  %v197 = vpop.f32.mrb[0].mxu0
  %198 = vmatprep.mubr.bf16.mxu0 0
  %199 = vmatmul.mubr.bf16.gmra.mrb[0].mxu0 %v153
  %v200 = vpop.f32.mrb[0].mxu0
  %v201 = vadd.f32 %v135, %v200
  %v202 = vpop.f32.mrb[0].mxu0
  %v203 = vpop.f32.mrb[0].mxu0
  %v204 = vadd.f32 %v135, %v203
  %v205 = vpop.f32.mrb[0].mxu0
  %206 = vmatprep.mubr.bf16.mxu0 0
  %207 = vmatmul.mubr.bf16.gmra.mrb[0].mxu0 %v156
  %v208 = vpop.f32.mrb[0].mxu0
  %v209 = vadd.f32 %v135, %v208
  %v210 = vpop.f32.mrb[0].mxu0
  %v211 = vpop.f32.mrb[0].mxu0
  %v212 = vpop.f32.mrb[0].mxu0
  %213 = vdwg.mxu0
  %v214 = vpack.c.bf16 %v196, %v193
  %v215 = vpack.c.bf16 %v204, %v201
  %v216 = vpack.c.bf16 %v209, %v209
  %v220 = vunpack.c.l.b16 %v214
  %v221 = vunpack.c.h.b16 %v214
  %v222 = vunpack.c.l.b16 %v215
  %v223 = vunpack.c.h.b16 %v215
  %v224 = vunpack.c.l.b16 %v216
  %v225 = vpack.c.b16 %v220, %v220
  %v226 = vpack.c.b16 %v221, %v221
  %v227 = vpack.c.b16 %v222, %v222
  %v228 = vpack.c.b16 %v223, %v223
  %v229 = vpack.c.b16 %v224, %v224
  %vm235 = vcmask 781312
  %236 = vst.msk [vmem:[%s5] sm:$0xf] %vm235, %v225
  %237 = vst.msk [vmem:[%s5 + $0x4] sm:$0xf] %vm235, %v226
  %238 = vst.msk [vmem:[%s5 + $0x8] sm:$0xf] %vm235, %v227
  %239 = vst.msk [vmem:[%s5 + $0xc] sm:$0xf] %vm235, %v228
  %vm240 = vcmask 778240
  %241 = vst.msk [vmem:[%s5 + $0x10] sm:$0x1] %vm240, %v229
  // Predicated region
  $region22: #{encoder_decoder_forward.17} parent=0 // pred_check
    _
  $region23: #{encoder_decoder_forward.17} parent=0 // pred_check_branch
    %243 = sbr.rel (0) target = $region25
  $region24: #{encoder_decoder_forward.17} parent=0 // pred_region
    _
  $region25: #{encoder_decoder_forward.17} parent=0 // pred_fallthru
    _
  // Predicated region
  $region26: #{encoder_decoder_forward.17} parent=0 // pred_check
    _
  $region27: #{encoder_decoder_forward.17} parent=0 // pred_check_branch
    %245 = sbr.rel (0) target = $region29
  $region28: #{encoder_decoder_forward.17} parent=0 // pred_region
    _
  $region29: #{encoder_decoder_forward.17} parent=0 // pred_fallthru
    _

// kernel: encoder_decoder_forward.25
$region0: #{encoder_decoder_forward.25}
  #allocation0 [shape = 'u32[]', space=smem, size = 0x4, offset = 0x4, fixed_abs, tag = 'smem constant byte address 0x4 - core index']
  #allocation1 [shape = 'u32[144,128]{1,0:T(1,128)}', space=vmem, size = 0x12000, scoped, tag = 'internal scratch']
  %s0 = inlined_call_operand.vmem [shape: bf16[34,32], index: 0, kind: input, shape index: {}]
  %s1 = inlined_call_operand.vmem [shape: f32[1,32], index: 1, kind: input, shape index: {}]
  %s2 = inlined_call_operand.vmem [shape: f32[1,32], index: 2, kind: input, shape index: {}]
  %s3 = inlined_call_operand.vmem [shape: bf16[34,32], index: 3, kind: output, shape index: {}]
  %s4 = sld [smem:[#allocation0]]
  $region22: #{encoder_decoder_forward.25} parent=0
    _
  %s6 = ssub.s32 1, %s4
  %s7 = scalar_select 0, %s6, %s4
  // Predicated region
  $region2: #{encoder_decoder_forward.25} parent=0 // pred_check
    _
  $region3: #{encoder_decoder_forward.25} parent=0 // pred_check_branch
    %9 = sbr.rel (0) target = $region5
  $region4: #{encoder_decoder_forward.25} parent=0 // pred_region
    _
  $region5: #{encoder_decoder_forward.25} parent=0 // pred_fallthru
    _
  // Predicated region
  $region6: #{encoder_decoder_forward.25} parent=0 // pred_check
    _
  $region7: #{encoder_decoder_forward.25} parent=0 // pred_check_branch
    %11 = sbr.rel (0) target = $region9
  $region8: #{encoder_decoder_forward.25} parent=0 // pred_region
    _
  $region9: #{encoder_decoder_forward.25} parent=0 // pred_fallthru
    _
  // Predicated region
  $region10: #{encoder_decoder_forward.25} parent=0 // pred_check
    _
  $region11: #{encoder_decoder_forward.25} parent=0 // pred_check_branch
    %13 = sbr.rel (0) target = $region13
  $region12: #{encoder_decoder_forward.25} parent=0 // pred_region
    _
  $region13: #{encoder_decoder_forward.25} parent=0 // pred_fallthru
    _
  %v14 = vld [vmem:[%s0] sm:$0xf]
  %v15 = vld [vmem:[%s0 + $0x4] sm:$0xf]
  %v16 = vld [vmem:[%s0 + $0x8] sm:$0xf]
  %v17 = vld [vmem:[%s0 + $0xc] sm:$0xf]
  %v18 = vld [vmem:[%s0 + $0x10] sm:$0x1]
  %v19 = vunpack.c.l.bf16 %v14
  %v20 = vunpack.c.l.bf16 %v15
  %v21 = vunpack.c.l.bf16 %v16
  %v22 = vunpack.c.l.bf16 %v17
  %v23 = vunpack.c.l.bf16 %v18
  %vm24 = vcmask 261120
  %v25 = vsel %vm24, %v19, 0.0
  %26 = vadd.xlane.f32.xlu0 %v25
  %v27 = vpop.xlane.xlu0 %26
  %v28 = vsel %vm24, %v20, 0.0
  %29 = vadd.xlane.f32.xlu0 %v28
  %v30 = vpop.xlane.xlu0 %29
  %v31 = vsel %vm24, %v21, 0.0
  %32 = vadd.xlane.f32.xlu0 %v31
  %v33 = vpop.xlane.xlu0 %32
  %v34 = vsel %vm24, %v22, 0.0
  %35 = vadd.xlane.f32.xlu0 %v34
  %v36 = vpop.xlane.xlu0 %35
  %vm37 = vcmask 254976
  %v38 = vsel %vm37, %v23, 0.0
  %39 = vadd.xlane.f32.xlu0 %v38
  %v40 = vpop.xlane.xlu0 %39
  %v41 = vrcp.pop 32.0
  %v42 = vmul.f32 %v27, %v41
  %v43 = vmul.f32 %v30, %v41
  %v44 = vmul.f32 %v33, %v41
  %v45 = vmul.f32 %v36, %v41
  %v46 = vmul.f32 %v40, %v41
  %v47 = vsub.f32 %v19, %v42
  %v48 = vsub.f32 %v20, %v43
  %v49 = vsub.f32 %v21, %v44
  %v50 = vsub.f32 %v22, %v45
  %v51 = vsub.f32 %v23, %v46
  %v52 = vmul.f32 %v47, %v47
  %v53 = vmul.f32 %v48, %v48
  %v54 = vmul.f32 %v49, %v49
  %v55 = vmul.f32 %v50, %v50
  %v56 = vmul.f32 %v51, %v51
  %v57 = vsel %vm24, %v52, 0.0
  %58 = vadd.xlane.f32.xlu0 %v57
  %v59 = vpop.xlane.xlu0 %58
  %v60 = vsel %vm24, %v53, 0.0
  %61 = vadd.xlane.f32.xlu0 %v60
  %v62 = vpop.xlane.xlu0 %61
  %v63 = vsel %vm24, %v54, 0.0
  %64 = vadd.xlane.f32.xlu0 %v63
  %v65 = vpop.xlane.xlu0 %64
  %v66 = vsel %vm24, %v55, 0.0
  %67 = vadd.xlane.f32.xlu0 %v66
  %v68 = vpop.xlane.xlu0 %67
  %v69 = vsel %vm37, %v56, 0.0
  %70 = vadd.xlane.f32.xlu0 %v69
  %v71 = vpop.xlane.xlu0 %70
  %v72 = vmul.f32 %v59, %v41
  %v73 = vmul.f32 %v62, %v41
  %v74 = vmul.f32 %v65, %v41
  %v75 = vmul.f32 %v68, %v41
  %v76 = vmul.f32 %v71, %v41
  %v77 = vadd.f32 %v72, 1e-06
  %v78 = vadd.f32 %v73, 1e-06
  %v79 = vadd.f32 %v74, 1e-06
  %v80 = vadd.f32 %v75, 1e-06
  %v81 = vadd.f32 %v76, 1e-06
  %v82 = vrsqrt.pop %v77
  %v83 = vrsqrt.pop %v78
  %v84 = vrsqrt.pop %v79
  %v85 = vrsqrt.pop %v80
  %v86 = vrsqrt.pop %v81
  %v87 = vmul.f32 %v47, %v82
  %v88 = vmul.f32 %v48, %v83
  %v89 = vmul.f32 %v49, %v84
  %v90 = vmul.f32 %v50, %v85
  %v91 = vmul.f32 %v51, %v86
  %v92 = vld [vmem:[%s1] sm:$0x1]
  %v94 = vlaneseq
  %v95 = vshrl.u32 %v94, 7
  %v96 = vsub.s32 0, %v95
  %v97 = vrot.slane %v92, %v96
  %v99 = vmul.f32 %v87, %v97
  %v100 = vmul.f32 %v88, %v97
  %v101 = vmul.f32 %v89, %v97
  %v102 = vmul.f32 %v90, %v97
  %v103 = vmul.f32 %v91, %v97
  %v104 = vld [vmem:[%s2] sm:$0x1]
  %v106 = vlaneseq
  %v107 = vshrl.u32 %v106, 7
  %v108 = vsub.s32 0, %v107
  %v109 = vrot.slane %v104, %v108
  %v111 = vadd.f32 %v99, %v109
  %v112 = vadd.f32 %v100, %v109
  %v113 = vadd.f32 %v101, %v109
  %v114 = vadd.f32 %v102, %v109
  %v115 = vadd.f32 %v103, %v109
  %v116 = vpack.c.bf16 %v112, %v111
  %v117 = vpack.c.bf16 %v114, %v113
  %v118 = vpack.c.bf16 %v115, %v115
  %v122 = vunpack.c.l.b16 %v116
  %v123 = vunpack.c.h.b16 %v116
  %v124 = vunpack.c.l.b16 %v117
  %v125 = vunpack.c.h.b16 %v117
  %v126 = vunpack.c.l.b16 %v118
  %v127 = vpack.c.b16 %v122, %v122
  %v128 = vpack.c.b16 %v123, %v123
  %v129 = vpack.c.b16 %v124, %v124
  %v130 = vpack.c.b16 %v125, %v125
  %v131 = vpack.c.b16 %v126, %v126
  %vm137 = vcmask 257024
  %138 = vst.msk [vmem:[%s3] sm:$0xf] %vm137, %v127
  %139 = vst.msk [vmem:[%s3 + $0x4] sm:$0xf] %vm137, %v128
  %140 = vst.msk [vmem:[%s3 + $0x8] sm:$0xf] %vm137, %v129
  %141 = vst.msk [vmem:[%s3 + $0xc] sm:$0xf] %vm137, %v130
  %vm142 = vcmask 253952
  %143 = vst.msk [vmem:[%s3 + $0x10] sm:$0x1] %vm142, %v131
  // Predicated region
  $region14: #{encoder_decoder_forward.25} parent=0 // pred_check
    _
  $region15: #{encoder_decoder_forward.25} parent=0 // pred_check_branch
    %145 = sbr.rel (0) target = $region17
  $region16: #{encoder_decoder_forward.25} parent=0 // pred_region
    _
  $region17: #{encoder_decoder_forward.25} parent=0 // pred_fallthru
    _
  // Predicated region
  $region18: #{encoder_decoder_forward.25} parent=0 // pred_check
    _
  $region19: #{encoder_decoder_forward.25} parent=0 // pred_check_branch
    %147 = sbr.rel (0) target = $region21
  $region20: #{encoder_decoder_forward.25} parent=0 // pred_region
    _
  $region21: #{encoder_decoder_forward.25} parent=0 // pred_fallthru
    _

// kernel: encoder_decoder_forward.20
$region0: #{encoder_decoder_forward.20}
  #allocation0 [shape = 'u32[]', space=smem, size = 0x4, offset = 0x4, fixed_abs, tag = 'smem constant byte address 0x4 - core index']
  #allocation1 [shape = 'u32[144,128]{1,0:T(1,128)}', space=vmem, size = 0x12000, scoped, tag = 'internal scratch']
  %s0 = inlined_call_operand.vmem [shape: bf16[34,32], index: 0, kind: input, shape index: {}]
  %s1 = inlined_call_operand.vmem [shape: f32[1,32], index: 1, kind: input, shape index: {}]
  %s2 = inlined_call_operand.vmem [shape: f32[1,32], index: 2, kind: input, shape index: {}]
  %s3 = inlined_call_operand.vmem [shape: bf16[32,128], index: 3, kind: input, shape index: {}]
  %s4 = inlined_call_operand.vmem [shape: f32[1,128], index: 4, kind: input, shape index: {}]
  %s5 = inlined_call_operand.vmem [shape: bf16[128,32], index: 5, kind: input, shape index: {}]
  %s6 = inlined_call_operand.vmem [shape: f32[1,32], index: 6, kind: input, shape index: {}]
  %s7 = inlined_call_operand.vmem [shape: bf16[34,32], index: 7, kind: output, shape index: {}]
  %s8 = sld [smem:[#allocation0]]
  $region38: #{encoder_decoder_forward.20} parent=0
    _
  %s10 = ssub.s32 1, %s8
  %s11 = scalar_select 0, %s10, %s8
  // Predicated region
  $region2: #{encoder_decoder_forward.20} parent=0 // pred_check
    _
  $region3: #{encoder_decoder_forward.20} parent=0 // pred_check_branch
    %13 = sbr.rel (0) target = $region5
  $region4: #{encoder_decoder_forward.20} parent=0 // pred_region
    _
  $region5: #{encoder_decoder_forward.20} parent=0 // pred_fallthru
    _
  // Predicated region
  $region6: #{encoder_decoder_forward.20} parent=0 // pred_check
    _
  $region7: #{encoder_decoder_forward.20} parent=0 // pred_check_branch
    %15 = sbr.rel (0) target = $region9
  $region8: #{encoder_decoder_forward.20} parent=0 // pred_region
    _
  $region9: #{encoder_decoder_forward.20} parent=0 // pred_fallthru
    _
  // Predicated region
  $region10: #{encoder_decoder_forward.20} parent=0 // pred_check
    _
  $region11: #{encoder_decoder_forward.20} parent=0 // pred_check_branch
    %17 = sbr.rel (0) target = $region13
  $region12: #{encoder_decoder_forward.20} parent=0 // pred_region
    _
  $region13: #{encoder_decoder_forward.20} parent=0 // pred_fallthru
    _
  // Predicated region
  $region14: #{encoder_decoder_forward.20} parent=0 // pred_check
    _
  $region15: #{encoder_decoder_forward.20} parent=0 // pred_check_branch
    %19 = sbr.rel (0) target = $region17
  $region16: #{encoder_decoder_forward.20} parent=0 // pred_region
    _
  $region17: #{encoder_decoder_forward.20} parent=0 // pred_fallthru
    _
  // Predicated region
  $region18: #{encoder_decoder_forward.20} parent=0 // pred_check
    _
  $region19: #{encoder_decoder_forward.20} parent=0 // pred_check_branch
    %21 = sbr.rel (0) target = $region21
  $region20: #{encoder_decoder_forward.20} parent=0 // pred_region
    _
  $region21: #{encoder_decoder_forward.20} parent=0 // pred_fallthru
    _
  // Predicated region
  $region22: #{encoder_decoder_forward.20} parent=0 // pred_check
    _
  $region23: #{encoder_decoder_forward.20} parent=0 // pred_check_branch
    %23 = sbr.rel (0) target = $region25
  $region24: #{encoder_decoder_forward.20} parent=0 // pred_region
    _
  $region25: #{encoder_decoder_forward.20} parent=0 // pred_fallthru
    _
  // Predicated region
  $region26: #{encoder_decoder_forward.20} parent=0 // pred_check
    _
  $region27: #{encoder_decoder_forward.20} parent=0 // pred_check_branch
    %25 = sbr.rel (0) target = $region29
  $region28: #{encoder_decoder_forward.20} parent=0 // pred_region
    _
  $region29: #{encoder_decoder_forward.20} parent=0 // pred_fallthru
    _
  %v27 = vld [vmem:[%s0] sm:$0xf]
  %v28 = vld [vmem:[%s0 + $0x4] sm:$0xf]
  %v29 = vld [vmem:[%s0 + $0x8] sm:$0xf]
  %v30 = vld [vmem:[%s0 + $0xc] sm:$0xf]
  %v31 = vld [vmem:[%s0 + $0x10] sm:$0x1]
  %v32 = vunpack.c.l.bf16 %v27
  %v33 = vunpack.c.l.bf16 %v28
  %v34 = vunpack.c.l.bf16 %v29
  %v35 = vunpack.c.l.bf16 %v30
  %v36 = vunpack.c.l.bf16 %v31
  %vm37 = vcmask 261120
  %v38 = vsel %vm37, %v32, 0.0
  %39 = vadd.xlane.f32.xlu0 %v38
  %v40 = vpop.xlane.xlu0 %39
  %v41 = vsel %vm37, %v33, 0.0
  %42 = vadd.xlane.f32.xlu0 %v41
  %v43 = vpop.xlane.xlu0 %42
  %v44 = vsel %vm37, %v34, 0.0
  %45 = vadd.xlane.f32.xlu0 %v44
  %v46 = vpop.xlane.xlu0 %45
  %v47 = vsel %vm37, %v35, 0.0
  %48 = vadd.xlane.f32.xlu0 %v47
  %v49 = vpop.xlane.xlu0 %48
  %vm50 = vcmask 254976
  %v51 = vsel %vm50, %v36, 0.0
  %52 = vadd.xlane.f32.xlu0 %v51
  %v53 = vpop.xlane.xlu0 %52
  %v54 = vrcp.pop 32.0
  %v55 = vmul.f32 %v40, %v54
  %v56 = vmul.f32 %v43, %v54
  %v57 = vmul.f32 %v46, %v54
  %v58 = vmul.f32 %v49, %v54
  %v59 = vmul.f32 %v53, %v54
  %v60 = vsub.f32 %v32, %v55
  %v61 = vsub.f32 %v33, %v56
  %v62 = vsub.f32 %v34, %v57
  %v63 = vsub.f32 %v35, %v58
  %v64 = vsub.f32 %v36, %v59
  %v65 = vmul.f32 %v60, %v60
  %v66 = vmul.f32 %v61, %v61
  %v67 = vmul.f32 %v62, %v62
  %v68 = vmul.f32 %v63, %v63
  %v69 = vmul.f32 %v64, %v64
  %v70 = vsel %vm37, %v65, 0.0
  %71 = vadd.xlane.f32.xlu0 %v70
  %v72 = vpop.xlane.xlu0 %71
  %v73 = vsel %vm37, %v66, 0.0
  %74 = vadd.xlane.f32.xlu0 %v73
  %v75 = vpop.xlane.xlu0 %74
  %v76 = vsel %vm37, %v67, 0.0
  %77 = vadd.xlane.f32.xlu0 %v76
  %v78 = vpop.xlane.xlu0 %77
  %v79 = vsel %vm37, %v68, 0.0
  %80 = vadd.xlane.f32.xlu0 %v79
  %v81 = vpop.xlane.xlu0 %80
  %v82 = vsel %vm50, %v69, 0.0
  %83 = vadd.xlane.f32.xlu0 %v82
  %v84 = vpop.xlane.xlu0 %83
  %v85 = vmul.f32 %v72, %v54
  %v86 = vmul.f32 %v75, %v54
  %v87 = vmul.f32 %v78, %v54
  %v88 = vmul.f32 %v81, %v54
  %v89 = vmul.f32 %v84, %v54
  %v90 = vadd.f32 %v85, 1e-06
  %v91 = vadd.f32 %v86, 1e-06
  %v92 = vadd.f32 %v87, 1e-06
  %v93 = vadd.f32 %v88, 1e-06
  %v94 = vadd.f32 %v89, 1e-06
  %v95 = vrsqrt.pop %v90
  %v96 = vrsqrt.pop %v91
  %v97 = vrsqrt.pop %v92
  %v98 = vrsqrt.pop %v93
  %v99 = vrsqrt.pop %v94
  %v100 = vmul.f32 %v60, %v95
  %v101 = vmul.f32 %v61, %v96
  %v102 = vmul.f32 %v62, %v97
  %v103 = vmul.f32 %v63, %v98
  %v104 = vmul.f32 %v64, %v99
  %v105 = vld [vmem:[%s1] sm:$0x1]
  %v107 = vlaneseq
  %v108 = vshrl.u32 %v107, 7
  %v109 = vsub.s32 0, %v108
  %v110 = vrot.slane %v105, %v109
  %v112 = vmul.f32 %v100, %v110
  %v113 = vmul.f32 %v101, %v110
  %v114 = vmul.f32 %v102, %v110
  %v115 = vmul.f32 %v103, %v110
  %v116 = vmul.f32 %v104, %v110
  %v117 = vld [vmem:[%s2] sm:$0x1]
  %v119 = vlaneseq
  %v120 = vshrl.u32 %v119, 7
  %v121 = vsub.s32 0, %v120
  %v122 = vrot.slane %v117, %v121
  %v124 = vadd.f32 %v112, %v122
  %v125 = vadd.f32 %v113, %v122
  %v126 = vadd.f32 %v114, %v122
  %v127 = vadd.f32 %v115, %v122
  %v128 = vadd.f32 %v116, %v122
  %v129 = vpack.c.bf16 %v125, %v124
  %v130 = vpack.c.bf16 %v127, %v126
  %v131 = vpack.c.bf16 %v128, %v128
  %v132 = vld [vmem:[%s3] sm:$0xf]
  %v133 = vld [vmem:[%s3 + $0x4] sm:$0xf]
  %v134 = vld [vmem:[%s3 + $0x8] sm:$0xf]
  %v135 = vld [vmem:[%s3 + $0xc] sm:$0xf]
  %v136 = vld [vmem:[%s4] sm:$0x1]
  %v138 = vlaneseq
  %v139 = vshrl.u32 %v138, 7
  %v140 = vsub.s32 0, %v139
  %v141 = vrot.slane %v136, %v140
  %v147 = vunpack.c.l.b16 %v132
  %v148 = vunpack.c.l.b16 %v133
  %v149 = vunpack.c.l.b16 %v134
  %v150 = vunpack.c.l.b16 %v135
  %v151 = vpack.c.b16 %v148, %v147
  %v152 = vpack.c.b16 %v150, %v149
  %v156 = vsel %vm37, %v129, 0
  %v159 = vsel %vm37, %v130, 0
  %v162 = vsel %vm37, %v131, 0
  %164 = vmatprep.subr.bf16.mxu0 0
  %165 = vmatpush1.bf16.msra.mxu0 %v151
  %166 = vmatprep.subr.bf16.mxu0 0
  %167 = vmatpush1.bf16.msra.mxu0 %v152
  %168 = vmatprep.subr.bf16.mxu0 0
  %169 = vmatpush1.bf16.msra.mxu0 0
  %170 = vmatprep.subr.bf16.mxu0 0
  %171 = vmatpush1.bf16.msra.mxu0 0
  %172 = vmatprep.subr.bf16.mxu0 0
  %173 = vmatpush1.bf16.msra.mxu0 0
  %174 = vmatprep.subr.bf16.mxu0 0
  %175 = vmatpush1.bf16.msra.mxu0 0
  %176 = vmatprep.subr.bf16.mxu0 0
  %177 = vmatpush1.bf16.msra.mxu0 0
  %178 = vmatprep.subr.bf16.mxu0 0
  %179 = vmatpush1.bf16.msra.mxu0 0
  %180 = vmatprep.subr.bf16.mxu0 0
  %181 = vmatpush1.bf16.msra.mxu0 0
  %182 = vmatprep.subr.bf16.mxu0 0
  %183 = vmatpush1.bf16.msra.mxu0 0
  %184 = vmatprep.subr.bf16.mxu0 0
  %185 = vmatpush1.bf16.msra.mxu0 0
  %186 = vmatprep.subr.bf16.mxu0 0
  %187 = vmatpush1.bf16.msra.mxu0 0
  %188 = vmatprep.subr.bf16.mxu0 0
  %189 = vmatpush1.bf16.msra.mxu0 0
  %190 = vmatprep.subr.bf16.mxu0 0
  %191 = vmatpush1.bf16.msra.mxu0 0
  %192 = vmatprep.subr.bf16.mxu0 0
  %193 = vmatpush1.bf16.msra.mxu0 0
  %194 = vmatprep.subr.bf16.mxu0 0
  %195 = vmatpush1.bf16.msra.mxu0 0
  %196 = vmatprep.mubr.bf16.mxu0 0
  %197 = vmatmul.mubr.bf16.gmra.mrb[0].mxu0 %v156
  %v198 = vpop.f32.mrb[0].mxu0
  %v199 = vadd.f32 %v141, %v198
  %v200 = vpop.f32.mrb[0].mxu0
  %v201 = vpop.f32.mrb[0].mxu0
  %v202 = vadd.f32 %v141, %v201
  %v203 = vpop.f32.mrb[0].mxu0
  %204 = vmatprep.mubr.bf16.mxu0 0
  %205 = vmatmul.mubr.bf16.gmra.mrb[0].mxu0 %v159
  %v206 = vpop.f32.mrb[0].mxu0
  %v207 = vadd.f32 %v141, %v206
  %v208 = vpop.f32.mrb[0].mxu0
  %v209 = vpop.f32.mrb[0].mxu0
  %v210 = vadd.f32 %v141, %v209
  %v211 = vpop.f32.mrb[0].mxu0
  %212 = vmatprep.mubr.bf16.mxu0 0
  %213 = vmatmul.mubr.bf16.gmra.mrb[0].mxu0 %v162
  %v214 = vpop.f32.mrb[0].mxu0
  %v215 = vadd.f32 %v141, %v214
  %v216 = vpop.f32.mrb[0].mxu0
  %v217 = vpop.f32.mrb[0].mxu0
  %v218 = vpop.f32.mrb[0].mxu0
  %219 = vdwg.mxu0
  %v220 = vmul.f32 %v199, %v199
  %v221 = vmul.f32 %v202, %v202
  %v222 = vmul.f32 %v207, %v207
  %v223 = vmul.f32 %v210, %v210
  %v224 = vmul.f32 %v215, %v215
  %v225 = vmul.f32 %v199, %v220
  %v226 = vmul.f32 %v202, %v221
  %v227 = vmul.f32 %v207, %v222
  %v228 = vmul.f32 %v210, %v223
  %v229 = vmul.f32 %v215, %v224
  %v230 = vmul.f32 %v225, 0.044715
  %v231 = vmul.f32 %v226, 0.044715
  %v232 = vmul.f32 %v227, 0.044715
  %v233 = vmul.f32 %v228, 0.044715
  %v234 = vmul.f32 %v229, 0.044715
  %v235 = vadd.f32 %v199, %v230
  %v236 = vadd.f32 %v202, %v231
  %v237 = vadd.f32 %v207, %v232
  %v238 = vadd.f32 %v210, %v233
  %v239 = vadd.f32 %v215, %v234
  %v240 = vmul.f32 %v235, 0.7978846
  %v241 = vmul.f32 %v236, 0.7978846
  %v242 = vmul.f32 %v237, 0.7978846
  %v243 = vmul.f32 %v238, 0.7978846
  %v244 = vmul.f32 %v239, 0.7978846
  %v245 = vtanh.pop %v240
  %v246 = vtanh.pop %v241
  %v247 = vtanh.pop %v242
  %v248 = vtanh.pop %v243
  %v249 = vtanh.pop %v244
  %v250 = vadd.f32 %v245, 1.0
  %v251 = vadd.f32 %v246, 1.0
  %v252 = vadd.f32 %v247, 1.0
  %v253 = vadd.f32 %v248, 1.0
  %v254 = vadd.f32 %v249, 1.0
  %v255 = vmul.f32 %v250, 0.5
  %v256 = vmul.f32 %v251, 0.5
  %v257 = vmul.f32 %v252, 0.5
  %v258 = vmul.f32 %v253, 0.5
  %v259 = vmul.f32 %v254, 0.5
  %v260 = vmul.f32 %v199, %v255
  %v261 = vmul.f32 %v202, %v256
  %v262 = vmul.f32 %v207, %v257
  %v263 = vmul.f32 %v210, %v258
  %v264 = vmul.f32 %v215, %v259
  %v265 = vpack.c.bf16 %v261, %v260
  %v266 = vpack.c.bf16 %v263, %v262
  %v267 = vpack.c.bf16 %v264, %v264
  %v268 = vld [vmem:[%s5] sm:$0xf]
  %v269 = vld [vmem:[%s5 + $0x4] sm:$0xf]
  %v270 = vld [vmem:[%s5 + $0x8] sm:$0xf]
  %v271 = vld [vmem:[%s5 + $0xc] sm:$0xf]
  %v272 = vld [vmem:[%s5 + $0x10] sm:$0xf]
  %v273 = vld [vmem:[%s5 + $0x14] sm:$0xf]
  %v274 = vld [vmem:[%s5 + $0x18] sm:$0xf]
  %v275 = vld [vmem:[%s5 + $0x1c] sm:$0xf]
  %v276 = vld [vmem:[%s5 + $0x20] sm:$0xf]
  %v277 = vld [vmem:[%s5 + $0x24] sm:$0xf]
  %v278 = vld [vmem:[%s5 + $0x28] sm:$0xf]
  %v279 = vld [vmem:[%s5 + $0x2c] sm:$0xf]
  %v280 = vld [vmem:[%s5 + $0x30] sm:$0xf]
  %v281 = vld [vmem:[%s5 + $0x34] sm:$0xf]
  %v282 = vld [vmem:[%s5 + $0x38] sm:$0xf]
  %v283 = vld [vmem:[%s5 + $0x3c] sm:$0xf]
  %v284 = vld [vmem:[%s6] sm:$0x1]
  %v286 = vlaneseq
  %v287 = vshrl.u32 %v286, 7
  %v288 = vsub.s32 0, %v287
  %v289 = vrot.slane %v284, %v288
  %v307 = vunpack.c.l.b16 %v268
  %v308 = vunpack.c.l.b16 %v269
  %v309 = vunpack.c.l.b16 %v270
  %v310 = vunpack.c.l.b16 %v271
  %v311 = vunpack.c.l.b16 %v272
  %v312 = vunpack.c.l.b16 %v273
  %v313 = vunpack.c.l.b16 %v274
  %v314 = vunpack.c.l.b16 %v275
  %v315 = vunpack.c.l.b16 %v276
  %v316 = vunpack.c.l.b16 %v277
  %v317 = vunpack.c.l.b16 %v278
  %v318 = vunpack.c.l.b16 %v279
  %v319 = vunpack.c.l.b16 %v280
  %v320 = vunpack.c.l.b16 %v281
  %v321 = vunpack.c.l.b16 %v282
  %v322 = vunpack.c.l.b16 %v283
  %v323 = vpack.c.b16 %v308, %v307
  %v324 = vpack.c.b16 %v310, %v309
  %v325 = vpack.c.b16 %v312, %v311
  %v326 = vpack.c.b16 %v314, %v313
  %v327 = vpack.c.b16 %v316, %v315
  %v328 = vpack.c.b16 %v318, %v317
  %v329 = vpack.c.b16 %v320, %v319
  %v330 = vpack.c.b16 %v322, %v321
  %339 = vmatprep.subr.bf16.mxu0 0
  %340 = vmatpush1.bf16.msra.mxu0 %v323
  %341 = vmatprep.subr.bf16.mxu0 0
  %342 = vmatpush1.bf16.msra.mxu0 %v324
  %343 = vmatprep.subr.bf16.mxu0 0
  %344 = vmatpush1.bf16.msra.mxu0 %v325
  %345 = vmatprep.subr.bf16.mxu0 0
  %346 = vmatpush1.bf16.msra.mxu0 %v326
  %347 = vmatprep.subr.bf16.mxu0 0
  %348 = vmatpush1.bf16.msra.mxu0 %v327
  %349 = vmatprep.subr.bf16.mxu0 0
  %350 = vmatpush1.bf16.msra.mxu0 %v328
  %351 = vmatprep.subr.bf16.mxu0 0
  %352 = vmatpush1.bf16.msra.mxu0 %v329
  %353 = vmatprep.subr.bf16.mxu0 0
  %354 = vmatpush1.bf16.msra.mxu0 %v330
  %355 = vmatprep.subr.bf16.mxu0 0
  %356 = vmatpush1.bf16.msra.mxu0 0
  %357 = vmatprep.subr.bf16.mxu0 0
  %358 = vmatpush1.bf16.msra.mxu0 0
  %359 = vmatprep.subr.bf16.mxu0 0
  %360 = vmatpush1.bf16.msra.mxu0 0
  %361 = vmatprep.subr.bf16.mxu0 0
  %362 = vmatpush1.bf16.msra.mxu0 0
  %363 = vmatprep.subr.bf16.mxu0 0
  %364 = vmatpush1.bf16.msra.mxu0 0
  %365 = vmatprep.subr.bf16.mxu0 0
  %366 = vmatpush1.bf16.msra.mxu0 0
  %367 = vmatprep.subr.bf16.mxu0 0
  %368 = vmatpush1.bf16.msra.mxu0 0
  %369 = vmatprep.subr.bf16.mxu0 0
  %370 = vmatpush1.bf16.msra.mxu0 0
  %371 = vmatprep.mubr.bf16.mxu0 0
  %372 = vmatmul.mubr.bf16.gmra.mrb[0].mxu0 %v265
  %v373 = vpop.f32.mrb[0].mxu0
  %v374 = vadd.f32 %v289, %v373
  %v375 = vpop.f32.mrb[0].mxu0
  %v376 = vpop.f32.mrb[0].mxu0
  %v377 = vadd.f32 %v289, %v376
  %v378 = vpop.f32.mrb[0].mxu0
  %379 = vmatprep.mubr.bf16.mxu0 0
  %380 = vmatmul.mubr.bf16.gmra.mrb[0].mxu0 %v266
  %v381 = vpop.f32.mrb[0].mxu0
  %v382 = vadd.f32 %v289, %v381
  %v383 = vpop.f32.mrb[0].mxu0
  %v384 = vpop.f32.mrb[0].mxu0
  %v385 = vadd.f32 %v289, %v384
  %v386 = vpop.f32.mrb[0].mxu0
  %387 = vmatprep.mubr.bf16.mxu0 0
  %388 = vmatmul.mubr.bf16.gmra.mrb[0].mxu0 %v267
  %v389 = vpop.f32.mrb[0].mxu0
  %v390 = vadd.f32 %v289, %v389
  %v391 = vpop.f32.mrb[0].mxu0
  %v392 = vpop.f32.mrb[0].mxu0
  %v393 = vpop.f32.mrb[0].mxu0
  %394 = vdwg.mxu0
  %v395 = vadd.f32 %v32, %v374
  %v396 = vadd.f32 %v33, %v377
  %v397 = vadd.f32 %v34, %v382
  %v398 = vadd.f32 %v35, %v385
  %v399 = vadd.f32 %v36, %v390
  %v400 = vpack.c.bf16 %v396, %v395
  %v401 = vpack.c.bf16 %v398, %v397
  %v402 = vpack.c.bf16 %v399, %v399
  %v406 = vunpack.c.l.b16 %v400
  %v407 = vunpack.c.h.b16 %v400
  %v408 = vunpack.c.l.b16 %v401
  %v409 = vunpack.c.h.b16 %v401
  %v410 = vunpack.c.l.b16 %v402
  %v411 = vpack.c.b16 %v406, %v406
  %v412 = vpack.c.b16 %v407, %v407
  %v413 = vpack.c.b16 %v408, %v408
  %v414 = vpack.c.b16 %v409, %v409
  %v415 = vpack.c.b16 %v410, %v410
  %vm421 = vcmask 257024
  %422 = vst.msk [vmem:[%s7] sm:$0xf] %vm421, %v411
  %423 = vst.msk [vmem:[%s7 + $0x4] sm:$0xf] %vm421, %v412
  %424 = vst.msk [vmem:[%s7 + $0x8] sm:$0xf] %vm421, %v413
  %425 = vst.msk [vmem:[%s7 + $0xc] sm:$0xf] %vm421, %v414
  %vm426 = vcmask 253952
  %427 = vst.msk [vmem:[%s7 + $0x10] sm:$0x1] %vm426, %v415
  // Predicated region
  $region30: #{encoder_decoder_forward.20} parent=0 // pred_check
    _
  $region31: #{encoder_decoder_forward.20} parent=0 // pred_check_branch
    %429 = sbr.rel (0) target = $region33
  $region32: #{encoder_decoder_forward.20} parent=0 // pred_region
    _
  $region33: #{encoder_decoder_forward.20} parent=0 // pred_fallthru
    _
  // Predicated region
  $region34: #{encoder_decoder_forward.20} parent=0 // pred_check
    _
  $region35: #{encoder_decoder_forward.20} parent=0 // pred_check_branch
    %431 = sbr.rel (0) target = $region37
  $region36: #{encoder_decoder_forward.20} parent=0 // pred_region
    _
  $region37: #{encoder_decoder_forward.20} parent=0 // pred_fallthru
    _

// kernel: encoder_decoder_forward.19
$region0: #{encoder_decoder_forward.19}
  #allocation0 [shape = 'u32[]', space=smem, size = 0x4, offset = 0x4, fixed_abs, tag = 'smem constant byte address 0x4 - core index']
  #allocation1 [shape = 'u32[144,128]{1,0:T(1,128)}', space=vmem, size = 0x12000, scoped, tag = 'internal scratch']
  #allocation2 [shape = 'f32[34,32]{1,0:T(8,128)}', space=vmem, size = 0x5000, scoped, tag = 'scratch operand']
  %s0 = inlined_call_operand.vmem [shape: bf16[34,32], index: 0, kind: input, shape index: {}]
  %s1 = inlined_call_operand.vmem [shape: bf16[32,32], index: 1, kind: input, shape index: {}]
  %s2 = inlined_call_operand.vmem [shape: f32[1,32], index: 2, kind: input, shape index: {}]
  %s3 = inlined_call_operand.vmem [shape: bf16[34,32], index: 3, kind: input, shape index: {}]
  %s4 = inlined_call_operand.vmem [shape: bf16[34,32], index: 4, kind: output, shape index: {}]
  %s5 = sld [smem:[#allocation0]]
  $region34: #{encoder_decoder_forward.19} parent=0
    _
  %s7 = ssub.s32 1, %s5
  %s8 = scalar_select 0, %s7, %s5
  // Predicated region
  $region2: #{encoder_decoder_forward.19} parent=0 // pred_check
    _
  $region3: #{encoder_decoder_forward.19} parent=0 // pred_check_branch
    %10 = sbr.rel (0) target = $region5
  $region4: #{encoder_decoder_forward.19} parent=0 // pred_region
    _
  $region5: #{encoder_decoder_forward.19} parent=0 // pred_fallthru
    _
  // Predicated region
  $region6: #{encoder_decoder_forward.19} parent=0 // pred_check
    _
  $region7: #{encoder_decoder_forward.19} parent=0 // pred_check_branch
    %12 = sbr.rel (0) target = $region9
  $region8: #{encoder_decoder_forward.19} parent=0 // pred_region
    _
  $region9: #{encoder_decoder_forward.19} parent=0 // pred_fallthru
    _
  // Predicated region
  $region10: #{encoder_decoder_forward.19} parent=0 // pred_check
    _
  $region11: #{encoder_decoder_forward.19} parent=0 // pred_check_branch
    %14 = sbr.rel (0) target = $region13
  $region12: #{encoder_decoder_forward.19} parent=0 // pred_region
    _
  $region13: #{encoder_decoder_forward.19} parent=0 // pred_fallthru
    _
  // Predicated region
  $region14: #{encoder_decoder_forward.19} parent=0 // pred_check
    _
  $region15: #{encoder_decoder_forward.19} parent=0 // pred_check_branch
    %16 = sbr.rel (0) target = $region17
  $region16: #{encoder_decoder_forward.19} parent=0 // pred_region
    _
  $region17: #{encoder_decoder_forward.19} parent=0 // pred_fallthru
    _
  %p18 = scmp.eq.s32.totalorder 0, 0
  // Predicated region
  $region18: #{encoder_decoder_forward.19} parent=0 // pred_check
    %p19 = pneg %p18
  $region19: #{encoder_decoder_forward.19} parent=0 // pred_check_branch
    %21 = sbr.rel (%p19) target = $region21
  $region20: #{encoder_decoder_forward.19} parent=0 // pred_region
    %vm22 = vcmask 261120
    %23 = vst.msk [vmem:[#allocation2] sm:$0xff] %vm22, 0.0
    %24 = vst.msk [vmem:[#allocation2 + $0x8] sm:$0xff] %vm22, 0.0
    %25 = vst.msk [vmem:[#allocation2 + $0x10] sm:$0xff] %vm22, 0.0
    %26 = vst.msk [vmem:[#allocation2 + $0x18] sm:$0xff] %vm22, 0.0
    %vm27 = vcmask 254976
    %28 = vst.msk [vmem:[#allocation2 + $0x20] sm:$0x3] %vm27, 0.0
  $region21: #{encoder_decoder_forward.19} parent=0 // pred_fallthru
    _
  %v29 = vld [vmem:[#allocation2] sm:$0xff]
  %v30 = vld [vmem:[#allocation2 + $0x8] sm:$0xff]
  %v31 = vld [vmem:[#allocation2 + $0x10] sm:$0xff]
  %v32 = vld [vmem:[#allocation2 + $0x18] sm:$0xff]
  %v33 = vld [vmem:[#allocation2 + $0x20] sm:$0x3]
  %v34 = vld [vmem:[%s0] sm:$0xf]
  %v35 = vld [vmem:[%s0 + $0x4] sm:$0xf]
  %v36 = vld [vmem:[%s0 + $0x8] sm:$0xf]
  %v37 = vld [vmem:[%s0 + $0xc] sm:$0xf]
  %v38 = vld [vmem:[%s0 + $0x10] sm:$0x1]
  %v39 = vld [vmem:[%s1] sm:$0xf]
  %v40 = vld [vmem:[%s1 + $0x4] sm:$0xf]
  %v41 = vld [vmem:[%s1 + $0x8] sm:$0xf]
  %v42 = vld [vmem:[%s1 + $0xc] sm:$0xf]
  %v48 = vunpack.c.l.b16 %v34
  %v49 = vunpack.c.l.b16 %v35
  %v50 = vunpack.c.l.b16 %v36
  %v51 = vunpack.c.l.b16 %v37
  %v52 = vunpack.c.l.b16 %v38
  %v53 = vpack.c.b16 %v49, %v48
  %v54 = vpack.c.b16 %v51, %v50
  %v55 = vpack.c.b16 %v52, %v52
  %v60 = vunpack.c.l.b16 %v39
  %v61 = vunpack.c.l.b16 %v40
  %v62 = vunpack.c.l.b16 %v41
  %v63 = vunpack.c.l.b16 %v42
  %v64 = vpack.c.b16 %v61, %v60
  %v65 = vpack.c.b16 %v63, %v62
  %vm68 = vcmask 261120
  %v70 = vsel %vm68, %v53, 0
  %v73 = vsel %vm68, %v54, 0
  %v76 = vsel %vm68, %v55, 0
  %78 = vmatprep.subr.bf16.mxu0 0
  %79 = vmatpush1.bf16.msra.mxu0 %v64
  %80 = vmatprep.subr.bf16.mxu0 0
  %81 = vmatpush1.bf16.msra.mxu0 %v65
  %82 = vmatprep.subr.bf16.mxu0 0
  %83 = vmatpush1.bf16.msra.mxu0 0
  %84 = vmatprep.subr.bf16.mxu0 0
  %85 = vmatpush1.bf16.msra.mxu0 0
  %86 = vmatprep.subr.bf16.mxu0 0
  %87 = vmatpush1.bf16.msra.mxu0 0
  %88 = vmatprep.subr.bf16.mxu0 0
  %89 = vmatpush1.bf16.msra.mxu0 0
  %90 = vmatprep.subr.bf16.mxu0 0
  %91 = vmatpush1.bf16.msra.mxu0 0
  %92 = vmatprep.subr.bf16.mxu0 0
  %93 = vmatpush1.bf16.msra.mxu0 0
  %94 = vmatprep.subr.bf16.mxu0 0
  %95 = vmatpush1.bf16.msra.mxu0 0
  %96 = vmatprep.subr.bf16.mxu0 0
  %97 = vmatpush1.bf16.msra.mxu0 0
  %98 = vmatprep.subr.bf16.mxu0 0
  %99 = vmatpush1.bf16.msra.mxu0 0
  %100 = vmatprep.subr.bf16.mxu0 0
  %101 = vmatpush1.bf16.msra.mxu0 0
  %102 = vmatprep.subr.bf16.mxu0 0
  %103 = vmatpush1.bf16.msra.mxu0 0
  %104 = vmatprep.subr.bf16.mxu0 0
  %105 = vmatpush1.bf16.msra.mxu0 0
  %106 = vmatprep.subr.bf16.mxu0 0
  %107 = vmatpush1.bf16.msra.mxu0 0
  %108 = vmatprep.subr.bf16.mxu0 0
  %109 = vmatpush1.bf16.msra.mxu0 0
  %110 = vmatprep.mubr.bf16.mxu0 0
  %111 = vmatmul.mubr.bf16.gmra.mrb[0].mxu0 %v70
  %v112 = vpop.f32.mrb[0].mxu0
  %v113 = vadd.f32 0.0, %v112
  %v114 = vpop.f32.mrb[0].mxu0
  %v115 = vpop.f32.mrb[0].mxu0
  %v116 = vadd.f32 0.0, %v115
  %v117 = vpop.f32.mrb[0].mxu0
  %118 = vmatprep.mubr.bf16.mxu0 0
  %119 = vmatmul.mubr.bf16.gmra.mrb[0].mxu0 %v73
  %v120 = vpop.f32.mrb[0].mxu0
  %v121 = vadd.f32 0.0, %v120
  %v122 = vpop.f32.mrb[0].mxu0
  %v123 = vpop.f32.mrb[0].mxu0
  %v124 = vadd.f32 0.0, %v123
  %v125 = vpop.f32.mrb[0].mxu0
  %126 = vmatprep.mubr.bf16.mxu0 0
  %127 = vmatmul.mubr.bf16.gmra.mrb[0].mxu0 %v76
  %v128 = vpop.f32.mrb[0].mxu0
  %v129 = vadd.f32 0.0, %v128
  %v130 = vpop.f32.mrb[0].mxu0
  %v131 = vpop.f32.mrb[0].mxu0
  %v132 = vpop.f32.mrb[0].mxu0
  %133 = vdwg.mxu0
  %v134 = vadd.f32 %v29, %v113
  %v135 = vadd.f32 %v30, %v116
  %v136 = vadd.f32 %v31, %v121
  %v137 = vadd.f32 %v32, %v124
  %v138 = vadd.f32 %v33, %v129
  %139 = vst.msk [vmem:[#allocation2] sm:$0xff] %vm68, %v134
  %140 = vst.msk [vmem:[#allocation2 + $0x8] sm:$0xff] %vm68, %v135
  %141 = vst.msk [vmem:[#allocation2 + $0x10] sm:$0xff] %vm68, %v136
  %142 = vst.msk [vmem:[#allocation2 + $0x18] sm:$0xff] %vm68, %v137
  %vm143 = vcmask 254976
  %144 = vst.msk [vmem:[#allocation2 + $0x20] sm:$0x3] %vm143, %v138
  // Predicated region
  $region22: #{encoder_decoder_forward.19} parent=0 // pred_check
    %p145 = pneg %p18
  $region23: #{encoder_decoder_forward.19} parent=0 // pred_check_branch
    %147 = sbr.rel (%p145) target = $region25
  $region24: #{encoder_decoder_forward.19} parent=0 // pred_region
    %v148 = vld [vmem:[#allocation2] sm:$0xff]
    %v149 = vld [vmem:[#allocation2 + $0x8] sm:$0xff]
    %v150 = vld [vmem:[#allocation2 + $0x10] sm:$0xff]
    %v151 = vld [vmem:[#allocation2 + $0x18] sm:$0xff]
    %v152 = vld [vmem:[#allocation2 + $0x20] sm:$0x3]
    %v153 = vld [vmem:[%s2] sm:$0x1]
    %v155 = vlaneseq
    %v156 = vshrl.u32 %v155, 7
    %v157 = vsub.s32 0, %v156
    %v158 = vrot.slane %v153, %v157
    %v160 = vadd.f32 %v148, %v158
    %v161 = vadd.f32 %v149, %v158
    %v162 = vadd.f32 %v150, %v158
    %v163 = vadd.f32 %v151, %v158
    %v164 = vadd.f32 %v152, %v158
    %v165 = vld [vmem:[%s3] sm:$0xf]
    %v166 = vld [vmem:[%s3 + $0x4] sm:$0xf]
    %v167 = vld [vmem:[%s3 + $0x8] sm:$0xf]
    %v168 = vld [vmem:[%s3 + $0xc] sm:$0xf]
    %v169 = vld [vmem:[%s3 + $0x10] sm:$0x1]
    %v170 = vunpack.c.l.bf16 %v165
    %v171 = vunpack.c.l.bf16 %v166
    %v172 = vunpack.c.l.bf16 %v167
    %v173 = vunpack.c.l.bf16 %v168
    %v174 = vunpack.c.l.bf16 %v169
    %v175 = vadd.f32 %v160, %v170
    %v176 = vadd.f32 %v161, %v171
    %v177 = vadd.f32 %v162, %v172
    %v178 = vadd.f32 %v163, %v173
    %v179 = vadd.f32 %v164, %v174
    %v180 = vpack.c.bf16 %v176, %v175
    %v181 = vpack.c.bf16 %v178, %v177
    %v182 = vpack.c.bf16 %v179, %v179
    %v186 = vunpack.c.l.b16 %v180
    %v187 = vunpack.c.h.b16 %v180
    %v188 = vunpack.c.l.b16 %v181
    %v189 = vunpack.c.h.b16 %v181
    %v190 = vunpack.c.l.b16 %v182
    %v191 = vpack.c.b16 %v186, %v186
    %v192 = vpack.c.b16 %v187, %v187
    %v193 = vpack.c.b16 %v188, %v188
    %v194 = vpack.c.b16 %v189, %v189
    %v195 = vpack.c.b16 %v190, %v190
    %vm201 = vcmask 257024
    %202 = vst.msk [vmem:[%s4] sm:$0xf] %vm201, %v191
    %203 = vst.msk [vmem:[%s4 + $0x4] sm:$0xf] %vm201, %v192
    %204 = vst.msk [vmem:[%s4 + $0x8] sm:$0xf] %vm201, %v193
    %205 = vst.msk [vmem:[%s4 + $0xc] sm:$0xf] %vm201, %v194
    %vm206 = vcmask 253952
    %207 = vst.msk [vmem:[%s4 + $0x10] sm:$0x1] %vm206, %v195
  $region25: #{encoder_decoder_forward.19} parent=0 // pred_fallthru
    _
  // Predicated region
  $region26: #{encoder_decoder_forward.19} parent=0 // pred_check
    _
  $region27: #{encoder_decoder_forward.19} parent=0 // pred_check_branch
    %209 = sbr.rel (0) target = $region29
  $region28: #{encoder_decoder_forward.19} parent=0 // pred_region
    _
  $region29: #{encoder_decoder_forward.19} parent=0 // pred_fallthru
    _
  // Predicated region
  $region30: #{encoder_decoder_forward.19} parent=0 // pred_check
    _
  $region31: #{encoder_decoder_forward.19} parent=0 // pred_check_branch
    %211 = sbr.rel (0) target = $region33
  $region32: #{encoder_decoder_forward.19} parent=0 // pred_region
    _
  $region33: #{encoder_decoder_forward.19} parent=0 // pred_fallthru
    _

// kernel: encoder_decoder_forward.26
$region0: #{encoder_decoder_forward.26}
  #allocation0 [shape = 'u32[]', space=smem, size = 0x4, offset = 0x4, fixed_abs, tag = 'smem constant byte address 0x4 - core index']
  #allocation1 [shape = 'u32[144,128]{1,0:T(1,128)}', space=vmem, size = 0x12000, scoped, tag = 'internal scratch']
  #allocation2 [shape = 'f32[34,32]{1,0:T(8,128)}', space=vmem, size = 0x5000, scoped, tag = 'scratch operand']
  %s0 = inlined_call_operand.vmem [shape: bf16[34,32], index: 0, kind: input, shape index: {}]
  %s1 = inlined_call_operand.vmem [shape: bf16[32,32], index: 1, kind: input, shape index: {}]
  %s2 = inlined_call_operand.vmem [shape: f32[1,32], index: 2, kind: input, shape index: {}]
  %s3 = inlined_call_operand.vmem [shape: bf16[34,32], index: 3, kind: output, shape index: {}]
  %s4 = sld [smem:[#allocation0]]
  $region30: #{encoder_decoder_forward.26} parent=0
    _
  %s6 = ssub.s32 1, %s4
  %s7 = scalar_select 0, %s6, %s4
  // Predicated region
  $region2: #{encoder_decoder_forward.26} parent=0 // pred_check
    _
  $region3: #{encoder_decoder_forward.26} parent=0 // pred_check_branch
    %9 = sbr.rel (0) target = $region5
  $region4: #{encoder_decoder_forward.26} parent=0 // pred_region
    _
  $region5: #{encoder_decoder_forward.26} parent=0 // pred_fallthru
    _
  // Predicated region
  $region6: #{encoder_decoder_forward.26} parent=0 // pred_check
    _
  $region7: #{encoder_decoder_forward.26} parent=0 // pred_check_branch
    %11 = sbr.rel (0) target = $region9
  $region8: #{encoder_decoder_forward.26} parent=0 // pred_region
    _
  $region9: #{encoder_decoder_forward.26} parent=0 // pred_fallthru
    _
  // Predicated region
  $region10: #{encoder_decoder_forward.26} parent=0 // pred_check
    _
  $region11: #{encoder_decoder_forward.26} parent=0 // pred_check_branch
    %13 = sbr.rel (0) target = $region13
  $region12: #{encoder_decoder_forward.26} parent=0 // pred_region
    _
  $region13: #{encoder_decoder_forward.26} parent=0 // pred_fallthru
    _
  %p15 = scmp.eq.s32.totalorder 0, 0
  // Predicated region
  $region14: #{encoder_decoder_forward.26} parent=0 // pred_check
    %p16 = pneg %p15
  $region15: #{encoder_decoder_forward.26} parent=0 // pred_check_branch
    %18 = sbr.rel (%p16) target = $region17
  $region16: #{encoder_decoder_forward.26} parent=0 // pred_region
    %vm19 = vcmask 261120
    %20 = vst.msk [vmem:[#allocation2] sm:$0xff] %vm19, 0.0
    %21 = vst.msk [vmem:[#allocation2 + $0x8] sm:$0xff] %vm19, 0.0
    %22 = vst.msk [vmem:[#allocation2 + $0x10] sm:$0xff] %vm19, 0.0
    %23 = vst.msk [vmem:[#allocation2 + $0x18] sm:$0xff] %vm19, 0.0
    %vm24 = vcmask 254976
    %25 = vst.msk [vmem:[#allocation2 + $0x20] sm:$0x3] %vm24, 0.0
  $region17: #{encoder_decoder_forward.26} parent=0 // pred_fallthru
    _
  %v26 = vld [vmem:[#allocation2] sm:$0xff]
  %v27 = vld [vmem:[#allocation2 + $0x8] sm:$0xff]
  %v28 = vld [vmem:[#allocation2 + $0x10] sm:$0xff]
  %v29 = vld [vmem:[#allocation2 + $0x18] sm:$0xff]
  %v30 = vld [vmem:[#allocation2 + $0x20] sm:$0x3]
  %v31 = vld [vmem:[%s0] sm:$0xf]
  %v32 = vld [vmem:[%s0 + $0x4] sm:$0xf]
  %v33 = vld [vmem:[%s0 + $0x8] sm:$0xf]
  %v34 = vld [vmem:[%s0 + $0xc] sm:$0xf]
  %v35 = vld [vmem:[%s0 + $0x10] sm:$0x1]
  %v36 = vld [vmem:[%s1] sm:$0xf]
  %v37 = vld [vmem:[%s1 + $0x4] sm:$0xf]
  %v38 = vld [vmem:[%s1 + $0x8] sm:$0xf]
  %v39 = vld [vmem:[%s1 + $0xc] sm:$0xf]
  %v45 = vunpack.c.l.b16 %v31
  %v46 = vunpack.c.l.b16 %v32
  %v47 = vunpack.c.l.b16 %v33
  %v48 = vunpack.c.l.b16 %v34
  %v49 = vunpack.c.l.b16 %v35
  %v50 = vpack.c.b16 %v46, %v45
  %v51 = vpack.c.b16 %v48, %v47
  %v52 = vpack.c.b16 %v49, %v49
  %v57 = vunpack.c.l.b16 %v36
  %v58 = vunpack.c.l.b16 %v37
  %v59 = vunpack.c.l.b16 %v38
  %v60 = vunpack.c.l.b16 %v39
  %v61 = vpack.c.b16 %v58, %v57
  %v62 = vpack.c.b16 %v60, %v59
  %vm65 = vcmask 261120
  %v67 = vsel %vm65, %v50, 0
  %v70 = vsel %vm65, %v51, 0
  %v73 = vsel %vm65, %v52, 0
  %75 = vmatprep.subr.bf16.mxu0 0
  %76 = vmatpush1.bf16.msra.mxu0 %v61
  %77 = vmatprep.subr.bf16.mxu0 0
  %78 = vmatpush1.bf16.msra.mxu0 %v62
  %79 = vmatprep.subr.bf16.mxu0 0
  %80 = vmatpush1.bf16.msra.mxu0 0
  %81 = vmatprep.subr.bf16.mxu0 0
  %82 = vmatpush1.bf16.msra.mxu0 0
  %83 = vmatprep.subr.bf16.mxu0 0
  %84 = vmatpush1.bf16.msra.mxu0 0
  %85 = vmatprep.subr.bf16.mxu0 0
  %86 = vmatpush1.bf16.msra.mxu0 0
  %87 = vmatprep.subr.bf16.mxu0 0
  %88 = vmatpush1.bf16.msra.mxu0 0
  %89 = vmatprep.subr.bf16.mxu0 0
  %90 = vmatpush1.bf16.msra.mxu0 0
  %91 = vmatprep.subr.bf16.mxu0 0
  %92 = vmatpush1.bf16.msra.mxu0 0
  %93 = vmatprep.subr.bf16.mxu0 0
  %94 = vmatpush1.bf16.msra.mxu0 0
  %95 = vmatprep.subr.bf16.mxu0 0
  %96 = vmatpush1.bf16.msra.mxu0 0
  %97 = vmatprep.subr.bf16.mxu0 0
  %98 = vmatpush1.bf16.msra.mxu0 0
  %99 = vmatprep.subr.bf16.mxu0 0
  %100 = vmatpush1.bf16.msra.mxu0 0
  %101 = vmatprep.subr.bf16.mxu0 0
  %102 = vmatpush1.bf16.msra.mxu0 0
  %103 = vmatprep.subr.bf16.mxu0 0
  %104 = vmatpush1.bf16.msra.mxu0 0
  %105 = vmatprep.subr.bf16.mxu0 0
  %106 = vmatpush1.bf16.msra.mxu0 0
  %107 = vmatprep.mubr.bf16.mxu0 0
  %108 = vmatmul.mubr.bf16.gmra.mrb[0].mxu0 %v67
  %v109 = vpop.f32.mrb[0].mxu0
  %v110 = vadd.f32 0.0, %v109
  %v111 = vpop.f32.mrb[0].mxu0
  %v112 = vpop.f32.mrb[0].mxu0
  %v113 = vadd.f32 0.0, %v112
  %v114 = vpop.f32.mrb[0].mxu0
  %115 = vmatprep.mubr.bf16.mxu0 0
  %116 = vmatmul.mubr.bf16.gmra.mrb[0].mxu0 %v70
  %v117 = vpop.f32.mrb[0].mxu0
  %v118 = vadd.f32 0.0, %v117
  %v119 = vpop.f32.mrb[0].mxu0
  %v120 = vpop.f32.mrb[0].mxu0
  %v121 = vadd.f32 0.0, %v120
  %v122 = vpop.f32.mrb[0].mxu0
  %123 = vmatprep.mubr.bf16.mxu0 0
  %124 = vmatmul.mubr.bf16.gmra.mrb[0].mxu0 %v73
  %v125 = vpop.f32.mrb[0].mxu0
  %v126 = vadd.f32 0.0, %v125
  %v127 = vpop.f32.mrb[0].mxu0
  %v128 = vpop.f32.mrb[0].mxu0
  %v129 = vpop.f32.mrb[0].mxu0
  %130 = vdwg.mxu0
  %v131 = vadd.f32 %v26, %v110
  %v132 = vadd.f32 %v27, %v113
  %v133 = vadd.f32 %v28, %v118
  %v134 = vadd.f32 %v29, %v121
  %v135 = vadd.f32 %v30, %v126
  %136 = vst.msk [vmem:[#allocation2] sm:$0xff] %vm65, %v131
  %137 = vst.msk [vmem:[#allocation2 + $0x8] sm:$0xff] %vm65, %v132
  %138 = vst.msk [vmem:[#allocation2 + $0x10] sm:$0xff] %vm65, %v133
  %139 = vst.msk [vmem:[#allocation2 + $0x18] sm:$0xff] %vm65, %v134
  %vm140 = vcmask 254976
  %141 = vst.msk [vmem:[#allocation2 + $0x20] sm:$0x3] %vm140, %v135
  // Predicated region
  $region18: #{encoder_decoder_forward.26} parent=0 // pred_check
    %p142 = pneg %p15
  $region19: #{encoder_decoder_forward.26} parent=0 // pred_check_branch
    %144 = sbr.rel (%p142) target = $region21
  $region20: #{encoder_decoder_forward.26} parent=0 // pred_region
    %v145 = vld [vmem:[#allocation2] sm:$0xff]
    %v146 = vld [vmem:[#allocation2 + $0x8] sm:$0xff]
    %v147 = vld [vmem:[#allocation2 + $0x10] sm:$0xff]
    %v148 = vld [vmem:[#allocation2 + $0x18] sm:$0xff]
    %v149 = vld [vmem:[#allocation2 + $0x20] sm:$0x3]
    %v150 = vld [vmem:[%s2] sm:$0x1]
    %v152 = vlaneseq
    %v153 = vshrl.u32 %v152, 7
    %v154 = vsub.s32 0, %v153
    %v155 = vrot.slane %v150, %v154
    %v157 = vadd.f32 %v145, %v155
    %v158 = vadd.f32 %v146, %v155
    %v159 = vadd.f32 %v147, %v155
    %v160 = vadd.f32 %v148, %v155
    %v161 = vadd.f32 %v149, %v155
    %v162 = vpack.c.bf16 %v158, %v157
    %v163 = vpack.c.bf16 %v160, %v159
    %v164 = vpack.c.bf16 %v161, %v161
    %v168 = vunpack.c.l.b16 %v162
    %v169 = vunpack.c.h.b16 %v162
    %v170 = vunpack.c.l.b16 %v163
    %v171 = vunpack.c.h.b16 %v163
    %v172 = vunpack.c.l.b16 %v164
    %v173 = vpack.c.b16 %v168, %v168
    %v174 = vpack.c.b16 %v169, %v169
    %v175 = vpack.c.b16 %v170, %v170
    %v176 = vpack.c.b16 %v171, %v171
    %v177 = vpack.c.b16 %v172, %v172
    %vm183 = vcmask 257024
    %184 = vst.msk [vmem:[%s3] sm:$0xf] %vm183, %v173
    %185 = vst.msk [vmem:[%s3 + $0x4] sm:$0xf] %vm183, %v174
    %186 = vst.msk [vmem:[%s3 + $0x8] sm:$0xf] %vm183, %v175
    %187 = vst.msk [vmem:[%s3 + $0xc] sm:$0xf] %vm183, %v176
    %vm188 = vcmask 253952
    %189 = vst.msk [vmem:[%s3 + $0x10] sm:$0x1] %vm188, %v177
  $region21: #{encoder_decoder_forward.26} parent=0 // pred_fallthru
    _
  // Predicated region
  $region22: #{encoder_decoder_forward.26} parent=0 // pred_check
    _
  $region23: #{encoder_decoder_forward.26} parent=0 // pred_check_branch
    %191 = sbr.rel (0) target = $region25
  $region24: #{encoder_decoder_forward.26} parent=0 // pred_region
    _
  $region25: #{encoder_decoder_forward.26} parent=0 // pred_fallthru
    _
  // Predicated region
  $region26: #{encoder_decoder_forward.26} parent=0 // pred_check
    _
  $region27: #{encoder_decoder_forward.26} parent=0 // pred_check_branch
    %193 = sbr.rel (0) target = $region29
  $region28: #{encoder_decoder_forward.26} parent=0 // pred_region
    _
  $region29: #{encoder_decoder_forward.26} parent=0 // pred_fallthru
    _

// kernel: encoder_decoder_forward.31
$region0: #{encoder_decoder_forward.31}
  #allocation0 [shape = 'u32[]', space=smem, size = 0x4, offset = 0x4, fixed_abs, tag = 'smem constant byte address 0x4 - core index']
  #allocation1 [shape = 'u32[144,128]{1,0:T(1,128)}', space=vmem, size = 0x12000, scoped, tag = 'internal scratch']
  %s0 = inlined_call_operand.vmem [shape: bf16[34,32], index: 0, kind: input, shape index: {}]
  %s1 = inlined_call_operand.vmem [shape: f32[1,32], index: 1, kind: input, shape index: {}]
  %s2 = inlined_call_operand.vmem [shape: f32[1,32], index: 2, kind: input, shape index: {}]
  %s3 = inlined_call_operand.vmem [shape: bf16[32,48], index: 3, kind: input, shape index: {}]
  %s4 = inlined_call_operand.vmem [shape: f32[1,48], index: 4, kind: input, shape index: {}]
  %s5 = inlined_call_operand.vmem [shape: f32[34,48], index: 5, kind: output, shape index: {}]
  %s6 = sld [smem:[#allocation0]]
  $region30: #{encoder_decoder_forward.31} parent=0
    _
  %s8 = ssub.s32 1, %s6
  %s9 = scalar_select 0, %s8, %s6
  // Predicated region
  $region2: #{encoder_decoder_forward.31} parent=0 // pred_check
    _
  $region3: #{encoder_decoder_forward.31} parent=0 // pred_check_branch
    %11 = sbr.rel (0) target = $region5
  $region4: #{encoder_decoder_forward.31} parent=0 // pred_region
    _
  $region5: #{encoder_decoder_forward.31} parent=0 // pred_fallthru
    _
  // Predicated region
  $region6: #{encoder_decoder_forward.31} parent=0 // pred_check
    _
  $region7: #{encoder_decoder_forward.31} parent=0 // pred_check_branch
    %13 = sbr.rel (0) target = $region9
  $region8: #{encoder_decoder_forward.31} parent=0 // pred_region
    _
  $region9: #{encoder_decoder_forward.31} parent=0 // pred_fallthru
    _
  // Predicated region
  $region10: #{encoder_decoder_forward.31} parent=0 // pred_check
    _
  $region11: #{encoder_decoder_forward.31} parent=0 // pred_check_branch
    %15 = sbr.rel (0) target = $region13
  $region12: #{encoder_decoder_forward.31} parent=0 // pred_region
    _
  $region13: #{encoder_decoder_forward.31} parent=0 // pred_fallthru
    _
  // Predicated region
  $region14: #{encoder_decoder_forward.31} parent=0 // pred_check
    _
  $region15: #{encoder_decoder_forward.31} parent=0 // pred_check_branch
    %17 = sbr.rel (0) target = $region17
  $region16: #{encoder_decoder_forward.31} parent=0 // pred_region
    _
  $region17: #{encoder_decoder_forward.31} parent=0 // pred_fallthru
    _
  // Predicated region
  $region18: #{encoder_decoder_forward.31} parent=0 // pred_check
    _
  $region19: #{encoder_decoder_forward.31} parent=0 // pred_check_branch
    %19 = sbr.rel (0) target = $region21
  $region20: #{encoder_decoder_forward.31} parent=0 // pred_region
    _
  $region21: #{encoder_decoder_forward.31} parent=0 // pred_fallthru
    _
  %v21 = vld [vmem:[%s0] sm:$0xf]
  %v22 = vld [vmem:[%s0 + $0x4] sm:$0xf]
  %v23 = vld [vmem:[%s0 + $0x8] sm:$0xf]
  %v24 = vld [vmem:[%s0 + $0xc] sm:$0xf]
  %v25 = vld [vmem:[%s0 + $0x10] sm:$0x1]
  %v26 = vunpack.c.l.bf16 %v21
  %v27 = vunpack.c.l.bf16 %v22
  %v28 = vunpack.c.l.bf16 %v23
  %v29 = vunpack.c.l.bf16 %v24
  %v30 = vunpack.c.l.bf16 %v25
  %vm31 = vcmask 261120
  %v32 = vsel %vm31, %v26, 0.0
  %33 = vadd.xlane.f32.xlu0 %v32
  %v34 = vpop.xlane.xlu0 %33
  %v35 = vsel %vm31, %v27, 0.0
  %36 = vadd.xlane.f32.xlu0 %v35
  %v37 = vpop.xlane.xlu0 %36
  %v38 = vsel %vm31, %v28, 0.0
  %39 = vadd.xlane.f32.xlu0 %v38
  %v40 = vpop.xlane.xlu0 %39
  %v41 = vsel %vm31, %v29, 0.0
  %42 = vadd.xlane.f32.xlu0 %v41
  %v43 = vpop.xlane.xlu0 %42
  %vm44 = vcmask 254976
  %v45 = vsel %vm44, %v30, 0.0
  %46 = vadd.xlane.f32.xlu0 %v45
  %v47 = vpop.xlane.xlu0 %46
  %v48 = vrcp.pop 32.0
  %v49 = vmul.f32 %v34, %v48
  %v50 = vmul.f32 %v37, %v48
  %v51 = vmul.f32 %v40, %v48
  %v52 = vmul.f32 %v43, %v48
  %v53 = vmul.f32 %v47, %v48
  %v54 = vsub.f32 %v26, %v49
  %v55 = vsub.f32 %v27, %v50
  %v56 = vsub.f32 %v28, %v51
  %v57 = vsub.f32 %v29, %v52
  %v58 = vsub.f32 %v30, %v53
  %v59 = vmul.f32 %v54, %v54
  %v60 = vmul.f32 %v55, %v55
  %v61 = vmul.f32 %v56, %v56
  %v62 = vmul.f32 %v57, %v57
  %v63 = vmul.f32 %v58, %v58
  %v64 = vsel %vm31, %v59, 0.0
  %65 = vadd.xlane.f32.xlu0 %v64
  %v66 = vpop.xlane.xlu0 %65
  %v67 = vsel %vm31, %v60, 0.0
  %68 = vadd.xlane.f32.xlu0 %v67
  %v69 = vpop.xlane.xlu0 %68
  %v70 = vsel %vm31, %v61, 0.0
  %71 = vadd.xlane.f32.xlu0 %v70
  %v72 = vpop.xlane.xlu0 %71
  %v73 = vsel %vm31, %v62, 0.0
  %74 = vadd.xlane.f32.xlu0 %v73
  %v75 = vpop.xlane.xlu0 %74
  %v76 = vsel %vm44, %v63, 0.0
  %77 = vadd.xlane.f32.xlu0 %v76
  %v78 = vpop.xlane.xlu0 %77
  %v79 = vmul.f32 %v66, %v48
  %v80 = vmul.f32 %v69, %v48
  %v81 = vmul.f32 %v72, %v48
  %v82 = vmul.f32 %v75, %v48
  %v83 = vmul.f32 %v78, %v48
  %v84 = vadd.f32 %v79, 1e-06
  %v85 = vadd.f32 %v80, 1e-06
  %v86 = vadd.f32 %v81, 1e-06
  %v87 = vadd.f32 %v82, 1e-06
  %v88 = vadd.f32 %v83, 1e-06
  %v89 = vrsqrt.pop %v84
  %v90 = vrsqrt.pop %v85
  %v91 = vrsqrt.pop %v86
  %v92 = vrsqrt.pop %v87
  %v93 = vrsqrt.pop %v88
  %v94 = vmul.f32 %v54, %v89
  %v95 = vmul.f32 %v55, %v90
  %v96 = vmul.f32 %v56, %v91
  %v97 = vmul.f32 %v57, %v92
  %v98 = vmul.f32 %v58, %v93
  %v99 = vld [vmem:[%s1] sm:$0x1]
  %v101 = vlaneseq
  %v102 = vshrl.u32 %v101, 7
  %v103 = vsub.s32 0, %v102
  %v104 = vrot.slane %v99, %v103
  %v106 = vmul.f32 %v94, %v104
  %v107 = vmul.f32 %v95, %v104
  %v108 = vmul.f32 %v96, %v104
  %v109 = vmul.f32 %v97, %v104
  %v110 = vmul.f32 %v98, %v104
  %v111 = vld [vmem:[%s2] sm:$0x1]
  %v113 = vlaneseq
  %v114 = vshrl.u32 %v113, 7
  %v115 = vsub.s32 0, %v114
  %v116 = vrot.slane %v111, %v115
  %v118 = vadd.f32 %v106, %v116
  %v119 = vadd.f32 %v107, %v116
  %v120 = vadd.f32 %v108, %v116
  %v121 = vadd.f32 %v109, %v116
  %v122 = vadd.f32 %v110, %v116
  %v123 = vpack.c.bf16 %v119, %v118
  %v124 = vpack.c.bf16 %v121, %v120
  %v125 = vpack.c.bf16 %v122, %v122
  %v126 = vld [vmem:[%s3] sm:$0xf]
  %v127 = vld [vmem:[%s3 + $0x4] sm:$0xf]
  %v128 = vld [vmem:[%s3 + $0x8] sm:$0xf]
  %v129 = vld [vmem:[%s3 + $0xc] sm:$0xf]
  %v130 = vld [vmem:[%s4] sm:$0x1]
  %v132 = vlaneseq
  %v133 = vshrl.u32 %v132, 7
  %v134 = vsub.s32 0, %v133
  %v135 = vrot.slane %v130, %v134
  %v141 = vunpack.c.l.b16 %v126
  %v142 = vunpack.c.l.b16 %v127
  %v143 = vunpack.c.l.b16 %v128
  %v144 = vunpack.c.l.b16 %v129
  %v145 = vpack.c.b16 %v142, %v141
  %v146 = vpack.c.b16 %v144, %v143
  %v150 = vsel %vm31, %v123, 0
  %v153 = vsel %vm31, %v124, 0
  %v156 = vsel %vm31, %v125, 0
  %158 = vmatprep.subr.bf16.mxu0 0
  %159 = vmatpush1.bf16.msra.mxu0 %v145
  %160 = vmatprep.subr.bf16.mxu0 0
  %161 = vmatpush1.bf16.msra.mxu0 %v146
  %162 = vmatprep.subr.bf16.mxu0 0
  %163 = vmatpush1.bf16.msra.mxu0 0
  %164 = vmatprep.subr.bf16.mxu0 0
  %165 = vmatpush1.bf16.msra.mxu0 0
  %166 = vmatprep.subr.bf16.mxu0 0
  %167 = vmatpush1.bf16.msra.mxu0 0
  %168 = vmatprep.subr.bf16.mxu0 0
  %169 = vmatpush1.bf16.msra.mxu0 0
  %170 = vmatprep.subr.bf16.mxu0 0
  %171 = vmatpush1.bf16.msra.mxu0 0
  %172 = vmatprep.subr.bf16.mxu0 0
  %173 = vmatpush1.bf16.msra.mxu0 0
  %174 = vmatprep.subr.bf16.mxu0 0
  %175 = vmatpush1.bf16.msra.mxu0 0
  %176 = vmatprep.subr.bf16.mxu0 0
  %177 = vmatpush1.bf16.msra.mxu0 0
  %178 = vmatprep.subr.bf16.mxu0 0
  %179 = vmatpush1.bf16.msra.mxu0 0
  %180 = vmatprep.subr.bf16.mxu0 0
  %181 = vmatpush1.bf16.msra.mxu0 0
  %182 = vmatprep.subr.bf16.mxu0 0
  %183 = vmatpush1.bf16.msra.mxu0 0
  %184 = vmatprep.subr.bf16.mxu0 0
  %185 = vmatpush1.bf16.msra.mxu0 0
  %186 = vmatprep.subr.bf16.mxu0 0
  %187 = vmatpush1.bf16.msra.mxu0 0
  %188 = vmatprep.subr.bf16.mxu0 0
  %189 = vmatpush1.bf16.msra.mxu0 0
  %190 = vmatprep.mubr.bf16.mxu0 0
  %191 = vmatmul.mubr.bf16.gmra.mrb[0].mxu0 %v150
  %v192 = vpop.f32.mrb[0].mxu0
  %v193 = vadd.f32 %v135, %v192
  %v194 = vpop.f32.mrb[0].mxu0
  %v195 = vpop.f32.mrb[0].mxu0
  %v196 = vadd.f32 %v135, %v195
  %v197 = vpop.f32.mrb[0].mxu0
  %198 = vmatprep.mubr.bf16.mxu0 0
  %199 = vmatmul.mubr.bf16.gmra.mrb[0].mxu0 %v153
  %v200 = vpop.f32.mrb[0].mxu0
  %v201 = vadd.f32 %v135, %v200
  %v202 = vpop.f32.mrb[0].mxu0
  %v203 = vpop.f32.mrb[0].mxu0
  %v204 = vadd.f32 %v135, %v203
  %v205 = vpop.f32.mrb[0].mxu0
  %206 = vmatprep.mubr.bf16.mxu0 0
  %207 = vmatmul.mubr.bf16.gmra.mrb[0].mxu0 %v156
  %v208 = vpop.f32.mrb[0].mxu0
  %v209 = vadd.f32 %v135, %v208
  %v210 = vpop.f32.mrb[0].mxu0
  %v211 = vpop.f32.mrb[0].mxu0
  %v212 = vpop.f32.mrb[0].mxu0
  %213 = vdwg.mxu0
  %vm214 = vcmask 392192
  %215 = vst.msk [vmem:[%s5] sm:$0xff] %vm214, %v193
  %216 = vst.msk [vmem:[%s5 + $0x8] sm:$0xff] %vm214, %v196
  %217 = vst.msk [vmem:[%s5 + $0x10] sm:$0xff] %vm214, %v201
  %218 = vst.msk [vmem:[%s5 + $0x18] sm:$0xff] %vm214, %v204
  %vm219 = vcmask 386048
  %220 = vst.msk [vmem:[%s5 + $0x20] sm:$0x3] %vm219, %v209
  // Predicated region
  $region22: #{encoder_decoder_forward.31} parent=0 // pred_check
    _
  $region23: #{encoder_decoder_forward.31} parent=0 // pred_check_branch
    %222 = sbr.rel (0) target = $region25
  $region24: #{encoder_decoder_forward.31} parent=0 // pred_region
    _
  $region25: #{encoder_decoder_forward.31} parent=0 // pred_fallthru
    _
  // Predicated region
  $region26: #{encoder_decoder_forward.31} parent=0 // pred_check
    _
  $region27: #{encoder_decoder_forward.31} parent=0 // pred_check_branch
    %224 = sbr.rel (0) target = $region29
  $region28: #{encoder_decoder_forward.31} parent=0 // pred_region
    _
  $region29: #{encoder_decoder_forward.31} parent=0 // pred_fallthru
    _

// kernel: encoder_decoder_forward.18
$region0: #{encoder_decoder_forward.18}
  #allocation0 [shape = 'u32[]', space=smem, size = 0x4, offset = 0x4, fixed_abs, tag = 'smem constant byte address 0x4 - core index']
  #allocation1 [shape = 'u32[144,128]{1,0:T(1,128)}', space=vmem, size = 0x12000, scoped, tag = 'internal scratch']
  #allocation2 [shape = 'f32[4,17,1]{2,1,0:T(8,128)}', space=vmem, size = 0xc000, scoped, tag = 'scratch operand']
  #allocation3 [shape = 'f32[4,17,1]{2,1,0:T(8,128)}', space=vmem, size = 0xc000, scoped, tag = 'scratch operand']
  #allocation4 [shape = 'f32[4,17,8]{2,1,0:T(8,128)}', space=vmem, size = 0xc000, scoped, tag = 'scratch operand']
  %s0 = inlined_call_operand.vmem [shape: bf16[2,17,3,4,8], index: 0, kind: input, shape index: {}, may-alias: {0,1,2}]
  %s1 = inlined_call_operand.vmem [shape: bf16[2,17,3,4,8], index: 1, kind: input, shape index: {}, may-alias: {0,1,2}]
  %s2 = inlined_call_operand.vmem [shape: bf16[2,17,3,4,8], index: 2, kind: input, shape index: {}, may-alias: {0,1,2}]
  %s3 = inlined_call_operand.vmem [shape: bf16[2,17,32], index: 3, kind: output, shape index: {}]
  %s4 = sld [smem:[#allocation0]]
  $region176: #{encoder_decoder_forward.18} parent=0
    _
  %s6 = ssub.s32 1, %s4
  %s7 = scalar_select 0, %s6, %s4
  $region1: #{encoder_decoder_forward.18} parent=0
    #allocation5 [shape = 'u8[34816]{0}', space=vmem, size = 0x8800, scoped, tag = 'input window, operand 0']
    #allocation6 [shape = 'u8[34816]{0}', space=vmem, size = 0x8800, scoped, tag = 'input window, operand 1']
    #allocation7 [shape = 'u8[34816]{0}', space=vmem, size = 0x8800, scoped, tag = 'input window, operand 2']
    loop: start=0, step=1, limit=4
    $region2: #{encoder_decoder_forward.18} parent=1 // loop_pre_header
      _
    $region3: #{encoder_decoder_forward.18} parent=1 // loop_header
      %s9 = sphi 0, %s13
      %p10 = scmp.ge.s32.totalorder %s9, 4
      %s16 = sphi 0, %s35
      %s17 = sphi 0, %s31
      %s18 = sphi 0, %s27
      %s19 = sphi 0, %s16
      %s20 = sphi 0, %s17
      %s21 = sphi 0, %s18
      %s22 = sphi 0, %s19
      %s23 = sphi 0, %s20
      %s24 = sphi 0, %s21
      %s40 = sphi 0, %s42
      %s43 = sphi 0, %s40
      %s44 = sphi 0, %s43
      %s60 = sphi 0, %s44
      %s68 = sphi 0, %s70
      %s71 = sphi 0, %s68
      %s72 = sphi 0, %s71
      %s88 = sphi 0, %s72
      %s96 = sphi 0, %s98
      %s99 = sphi 0, %s96
      %s100 = sphi 0, %s99
      %s116 = sphi 0, %s100
      %s124 = sphi 0, %s126
      %s127 = sphi 0, %s124
      %s128 = sphi 0, %s127
      %s144 = sphi 0, %s128
    $region4: #{encoder_decoder_forward.18} parent=1 // loop_header_branch
      %12 = sbr.rel (%p10) target = $region8
    $region5: #{encoder_decoder_forward.18} parent=1 // loop_body
      %s14 = ssub.s32 %s9, 1
      %s15 = ssub.s32 %s9, 2
      %s25 = sadd.s32 1, %s18
      %p26 = scmp.ge.s32.totalorder %s25, 1
      %s27 = scalar_select %p26, 0, %s25
      %s28 = sadd.s32 1, %s17
      %s29 = scalar_select %p26, %s28, %s17
      %p30 = scmp.ge.s32.totalorder %s29, 1
      %s31 = scalar_select %p30, 0, %s29
      %s32 = sadd.s32 1, %s16
      %s33 = scalar_select %p30, %s32, %s16
      %p34 = scmp.ge.s32.totalorder %s33, 2
      %s35 = scalar_select %p34, 0, %s33
      %s36 = ssub.s32 %s16, %s35
      %s37 = ssub.s32 %s17, %s31
      %s38 = sor.u32 %s36, %s37
      %p39 = scmp.eq.s32.totalorder %s38, 0
      %s41 = sadd.s32 %s40, 1
      %s42 = scalar_select %p39, %s40, %s41
      %p45 = pneg %p39
      %p46 = scmp.eq.s32.totalorder %s9, 1
      %p47 = por %p45, %p46
      %p48 = scmp.ne.s32.totalorder %s40, %s43
      %p49 = scmp.eq.s32.totalorder %s9, 0
      %p50 = por %p48, %p49
      %p51 = scmp.ne.s32.totalorder %s40, %s43
      %p52 = scmp.eq.s32.totalorder %s14, 1
      %p53 = por %p51, %p52
      %p54 = scmp.ne.s32.totalorder %s43, %s44
      %p55 = scmp.eq.s32.totalorder %s14, 0
      %p56 = por %p54, %p55
      %p57 = scmp.ne.s32.totalorder %s43, %s44
      %p58 = scmp.eq.s32.totalorder %s15, 1
      %p59 = por %p57, %p58
      %p61 = scmp.ne.s32.totalorder %s44, %s60
      %p62 = scmp.eq.s32.totalorder %s15, 0
      %p63 = por %p61, %p62
      %s64 = ssub.s32 %s16, %s35
      %s65 = ssub.s32 %s18, %s27
      %s66 = sor.u32 %s64, %s65
      %p67 = scmp.eq.s32.totalorder %s66, 0
      %s69 = sadd.s32 %s68, 1
      %s70 = scalar_select %p67, %s68, %s69
      %p73 = pneg %p67
      %p74 = scmp.eq.s32.totalorder %s9, 1
      %p75 = por %p73, %p74
      %p76 = scmp.ne.s32.totalorder %s68, %s71
      %p77 = scmp.eq.s32.totalorder %s9, 0
      %p78 = por %p76, %p77
      %p79 = scmp.ne.s32.totalorder %s68, %s71
      %p80 = scmp.eq.s32.totalorder %s14, 1
      %p81 = por %p79, %p80
      %p82 = scmp.ne.s32.totalorder %s71, %s72
      %p83 = scmp.eq.s32.totalorder %s14, 0
      %p84 = por %p82, %p83
      %p85 = scmp.ne.s32.totalorder %s71, %s72
      %p86 = scmp.eq.s32.totalorder %s15, 1
      %p87 = por %p85, %p86
      %p89 = scmp.ne.s32.totalorder %s72, %s88
      %p90 = scmp.eq.s32.totalorder %s15, 0
      %p91 = por %p89, %p90
      %s92 = ssub.s32 %s16, %s35
      %s93 = ssub.s32 %s18, %s27
      %s94 = sor.u32 %s92, %s93
      %p95 = scmp.eq.s32.totalorder %s94, 0
      %s97 = sadd.s32 %s96, 1
      %s98 = scalar_select %p95, %s96, %s97
      %p101 = pneg %p95
      %p102 = scmp.eq.s32.totalorder %s9, 1
      %p103 = por %p101, %p102
      %p104 = scmp.ne.s32.totalorder %s96, %s99
      %p105 = scmp.eq.s32.totalorder %s9, 0
      %p106 = por %p104, %p105
      %p107 = scmp.ne.s32.totalorder %s96, %s99
      %p108 = scmp.eq.s32.totalorder %s14, 1
      %p109 = por %p107, %p108
      %p110 = scmp.ne.s32.totalorder %s99, %s100
      %p111 = scmp.eq.s32.totalorder %s14, 0
      %p112 = por %p110, %p111
      %p113 = scmp.ne.s32.totalorder %s99, %s100
      %p114 = scmp.eq.s32.totalorder %s15, 1
      %p115 = por %p113, %p114
      %p117 = scmp.ne.s32.totalorder %s100, %s116
      %p118 = scmp.eq.s32.totalorder %s15, 0
      %p119 = por %p117, %p118
      %s120 = ssub.s32 %s16, %s35
      %s121 = ssub.s32 %s17, %s31
      %s122 = sor.u32 %s120, %s121
      %p123 = scmp.eq.s32.totalorder %s122, 0
      %s125 = sadd.s32 %s124, 1
      %s126 = scalar_select %p123, %s124, %s125
      %p129 = pneg %p123
      %p130 = scmp.eq.s32.totalorder %s9, 1
      %p131 = por %p129, %p130
      %p132 = scmp.ne.s32.totalorder %s124, %s127
      %p133 = scmp.eq.s32.totalorder %s9, 0
      %p134 = por %p132, %p133
      %p135 = scmp.ne.s32.totalorder %s124, %s127
      %p136 = scmp.eq.s32.totalorder %s14, 1
      %p137 = por %p135, %p136
      %p138 = scmp.ne.s32.totalorder %s127, %s128
      %p139 = scmp.eq.s32.totalorder %s14, 0
      %p140 = por %p138, %p139
      %p141 = scmp.ne.s32.totalorder %s127, %s128
      %p142 = scmp.eq.s32.totalorder %s15, 1
      %p143 = por %p141, %p142
      %p145 = scmp.ne.s32.totalorder %s128, %s144
      %p146 = scmp.eq.s32.totalorder %s15, 0
      %p147 = por %p145, %p146
      %p148 = scmp.le.s32.totalorder 1, %s9
      %p149 = scmp.lt.s32.totalorder %s9, 3
      %p150 = pnand %p148, %p149
      %p151 = pneg %p150
      // Predicated region
      $region9: #{encoder_decoder_forward.18} parent=5 // pred_check
        _
      $region10: #{encoder_decoder_forward.18} parent=5 // pred_check_branch
        %153 = sbr.rel (%p150) target = $region12
      $region11: #{encoder_decoder_forward.18} parent=5 // pred_region
        %s154 = ssub.s32 %s9, 1
      $region12: #{encoder_decoder_forward.18} parent=5 // pred_fallthru
        _
      %p155 = scmp.lt.s32.totalorder %s9, 2
      // Predicated region
      $region13: #{encoder_decoder_forward.18} parent=5 // pred_check
        %p156 = pneg %p155
      $region14: #{encoder_decoder_forward.18} parent=5 // pred_check_branch
        %158 = sbr.rel (%p156) target = $region16
      $region15: #{encoder_decoder_forward.18} parent=5 // pred_region
        // Predicated region
        $region17: #{encoder_decoder_forward.18} parent=15 // pred_check
          %p159 = pneg %p50
        $region18: #{encoder_decoder_forward.18} parent=15 // pred_check_branch
          %161 = sbr.rel (%p159) target = $region20
        $region19: #{encoder_decoder_forward.18} parent=15 // pred_region
          %s162 = sand.u32 %s40, 1
          %s163 = sand.u32 %s40, 1
          %s164 = smul.addr %s163, 34
          %s165 = scalar_lea.vmem [#allocation5], %s164
          %s166 = smul.u32 17, %s17
          %s167 = smul.addr %s166, 3
          %s168 = smul.addr %s16, 51
          %s169 = sadd.s32 %s167, %s168
          %s170 = smul.addr %s169, 2
          %s171 = scalar_lea.vmem %s0, %s170
          // Predicated region
          $region21: #{encoder_decoder_forward.18} parent=19 // pred_check
            _
          $region22: #{encoder_decoder_forward.18} parent=19 // pred_check_branch
            %173 = sbr.rel (0) target = $region24
          $region23: #{encoder_decoder_forward.18} parent=19 // pred_region
            // Predicated region
            $region25: #{encoder_decoder_forward.18} parent=23 // pred_check
              _
            $region26: #{encoder_decoder_forward.18} parent=23 // pred_check_branch
              %175 = sbr.rel target = $region28
            $region27: #{encoder_decoder_forward.18} parent=23 // pred_region
              // Predicated region
              $region40: #{encoder_decoder_forward.18} parent=27 // pred_check
                _
              $region41: #{encoder_decoder_forward.18} parent=27 // pred_check_branch
                %222 = sbr.rel (0) target = $region43
              $region42: #{encoder_decoder_forward.18} parent=27 // pred_region
                loop: start=0, step=1, limit=1
                $region44: #{encoder_decoder_forward.18} parent=42 // loop_pre_header
                  _
                $region45: #{encoder_decoder_forward.18} parent=42 // loop_header
                  %s224 = sphi 0, %s228
                  %p225 = scmp.ge.s32.totalorder %s224, 1
                  %s229 = sphi %s171, %s171
                  %s230 = sphi %s165, %s165
                $region46: #{encoder_decoder_forward.18} parent=42 // loop_header_branch
                  %227 = sbr.rel (%p225) target = $region50
                $region47: #{encoder_decoder_forward.18} parent=42 // loop_body
                  _
                $region48: #{encoder_decoder_forward.18} parent=42 // loop_footer
                  %s228 = sadd.s32 1, %s224
                $region49: #{encoder_decoder_forward.18} parent=42 // loop_footer_branch
                  %223 = sbr.rel target = $region45
                $region50: #{encoder_decoder_forward.18} parent=42 // loop_exit
                  _
                loop: start=0, step=1, limit=1
                $region51: #{encoder_decoder_forward.18} parent=42 // loop_pre_header
                  _
                $region52: #{encoder_decoder_forward.18} parent=42 // loop_header
                  %s233 = sphi 0, %s237
                  %p234 = scmp.ge.s32.totalorder %s233, 1
                  %s238 = sphi %s171, %s171
                  %s239 = sphi %s165, %s165
                $region53: #{encoder_decoder_forward.18} parent=42 // loop_header_branch
                  %236 = sbr.rel (%p234) target = $region57
                $region54: #{encoder_decoder_forward.18} parent=42 // loop_body
                  %v240 = vld [vmem:[%s238] sm:$0x3]
                  %241 = vst [vmem:[%s239] sm:$0x3] %v240
                  %v242 = vld [vmem:[%s238 + $0x6] sm:$0x3]
                  %243 = vst [vmem:[%s239 + $0x2] sm:$0x3] %v242
                  %v244 = vld [vmem:[%s238 + $0xc] sm:$0x3]
                  %245 = vst [vmem:[%s239 + $0x4] sm:$0x3] %v244
                  %v246 = vld [vmem:[%s238 + $0x12] sm:$0x3]
                  %247 = vst [vmem:[%s239 + $0x6] sm:$0x3] %v246
                  %v248 = vld [vmem:[%s238 + $0x18] sm:$0x3]
                  %249 = vst [vmem:[%s239 + $0x8] sm:$0x3] %v248
                  %v250 = vld [vmem:[%s238 + $0x1e] sm:$0x3]
                  %251 = vst [vmem:[%s239 + $0xa] sm:$0x3] %v250
                  %v252 = vld [vmem:[%s238 + $0x24] sm:$0x3]
                  %253 = vst [vmem:[%s239 + $0xc] sm:$0x3] %v252
                  %v254 = vld [vmem:[%s238 + $0x2a] sm:$0x3]
                  %255 = vst [vmem:[%s239 + $0xe] sm:$0x3] %v254
                  %v256 = vld [vmem:[%s238 + $0x30] sm:$0x3]
                  %257 = vst [vmem:[%s239 + $0x10] sm:$0x3] %v256
                  %v258 = vld [vmem:[%s238 + $0x36] sm:$0x3]
                  %259 = vst [vmem:[%s239 + $0x12] sm:$0x3] %v258
                  %v260 = vld [vmem:[%s238 + $0x3c] sm:$0x3]
                  %261 = vst [vmem:[%s239 + $0x14] sm:$0x3] %v260
                  %v262 = vld [vmem:[%s238 + $0x42] sm:$0x3]
                  %263 = vst [vmem:[%s239 + $0x16] sm:$0x3] %v262
                  %v264 = vld [vmem:[%s238 + $0x48] sm:$0x3]
                  %265 = vst [vmem:[%s239 + $0x18] sm:$0x3] %v264
                  %v266 = vld [vmem:[%s238 + $0x4e] sm:$0x3]
                  %267 = vst [vmem:[%s239 + $0x1a] sm:$0x3] %v266
                  %v268 = vld [vmem:[%s238 + $0x54] sm:$0x3]
                  %269 = vst [vmem:[%s239 + $0x1c] sm:$0x3] %v268
                  %v270 = vld [vmem:[%s238 + $0x5a] sm:$0x3]
                  %271 = vst [vmem:[%s239 + $0x1e] sm:$0x3] %v270
                  %v272 = vld [vmem:[%s238 + $0x60] sm:$0x3]
                  %273 = vst [vmem:[%s239 + $0x20] sm:$0x3] %v272
                $region55: #{encoder_decoder_forward.18} parent=42 // loop_footer
                  %s237 = sadd.s32 1, %s233
                $region56: #{encoder_decoder_forward.18} parent=42 // loop_footer_branch
                  %232 = sbr.rel target = $region52
                $region57: #{encoder_decoder_forward.18} parent=42 // loop_exit
                  _
              $region43: #{encoder_decoder_forward.18} parent=27 // pred_fallthru
                _
            $region28: #{encoder_decoder_forward.18} parent=23 // pred_fallthru
              _
            // Predicated region
            $region29: #{encoder_decoder_forward.18} parent=23 // pred_check
              _
            $region30: #{encoder_decoder_forward.18} parent=23 // pred_check_branch
              %177 = sbr.rel (0) target = $region32
            $region31: #{encoder_decoder_forward.18} parent=23 // pred_region
              loop: start=0, step=1, limit=1
              $region33: #{encoder_decoder_forward.18} parent=31 // loop_pre_header
                _
              $region34: #{encoder_decoder_forward.18} parent=31 // loop_header
                %s180 = sphi 0, %s184
                %p181 = scmp.ge.s32.totalorder %s180, 1
                %s185 = sphi %s171, %s171
                %s186 = sphi %s165, %s165
              $region35: #{encoder_decoder_forward.18} parent=31 // loop_header_branch
                %183 = sbr.rel (%p181) target = $region39
              $region36: #{encoder_decoder_forward.18} parent=31 // loop_body
                %v187 = vld [vmem:[%s185] sm:$0x3]
                %188 = vst [vmem:[%s186] sm:$0x3] %v187
                %v189 = vld [vmem:[%s185 + $0x6] sm:$0x3]
                %190 = vst [vmem:[%s186 + $0x2] sm:$0x3] %v189
                %v191 = vld [vmem:[%s185 + $0xc] sm:$0x3]
                %192 = vst [vmem:[%s186 + $0x4] sm:$0x3] %v191
                %v193 = vld [vmem:[%s185 + $0x12] sm:$0x3]
                %194 = vst [vmem:[%s186 + $0x6] sm:$0x3] %v193
                %v195 = vld [vmem:[%s185 + $0x18] sm:$0x3]
                %196 = vst [vmem:[%s186 + $0x8] sm:$0x3] %v195
                %v197 = vld [vmem:[%s185 + $0x1e] sm:$0x3]
                %198 = vst [vmem:[%s186 + $0xa] sm:$0x3] %v197
                %v199 = vld [vmem:[%s185 + $0x24] sm:$0x3]
                %200 = vst [vmem:[%s186 + $0xc] sm:$0x3] %v199
                %v201 = vld [vmem:[%s185 + $0x2a] sm:$0x3]
                %202 = vst [vmem:[%s186 + $0xe] sm:$0x3] %v201
                %v203 = vld [vmem:[%s185 + $0x30] sm:$0x3]
                %204 = vst [vmem:[%s186 + $0x10] sm:$0x3] %v203
                %v205 = vld [vmem:[%s185 + $0x36] sm:$0x3]
                %206 = vst [vmem:[%s186 + $0x12] sm:$0x3] %v205
                %v207 = vld [vmem:[%s185 + $0x3c] sm:$0x3]
                %208 = vst [vmem:[%s186 + $0x14] sm:$0x3] %v207
                %v209 = vld [vmem:[%s185 + $0x42] sm:$0x3]
                %210 = vst [vmem:[%s186 + $0x16] sm:$0x3] %v209
                %v211 = vld [vmem:[%s185 + $0x48] sm:$0x3]
                %212 = vst [vmem:[%s186 + $0x18] sm:$0x3] %v211
                %v213 = vld [vmem:[%s185 + $0x4e] sm:$0x3]
                %214 = vst [vmem:[%s186 + $0x1a] sm:$0x3] %v213
                %v215 = vld [vmem:[%s185 + $0x54] sm:$0x3]
                %216 = vst [vmem:[%s186 + $0x1c] sm:$0x3] %v215
                %v217 = vld [vmem:[%s185 + $0x5a] sm:$0x3]
                %218 = vst [vmem:[%s186 + $0x1e] sm:$0x3] %v217
                %v219 = vld [vmem:[%s185 + $0x60] sm:$0x3]
                %220 = vst [vmem:[%s186 + $0x20] sm:$0x3] %v219
              $region37: #{encoder_decoder_forward.18} parent=31 // loop_footer
                %s184 = sadd.s32 1, %s180
              $region38: #{encoder_decoder_forward.18} parent=31 // loop_footer_branch
                %179 = sbr.rel target = $region34
              $region39: #{encoder_decoder_forward.18} parent=31 // loop_exit
                _
            $region32: #{encoder_decoder_forward.18} parent=23 // pred_fallthru
              _
          $region24: #{encoder_decoder_forward.18} parent=19 // pred_fallthru
            _
          %274 = vnop
        $region20: #{encoder_decoder_forward.18} parent=15 // pred_fallthru
          _
        // Predicated region
        $region58: #{encoder_decoder_forward.18} parent=15 // pred_check
          %p275 = pneg %p78
        $region59: #{encoder_decoder_forward.18} parent=15 // pred_check_branch
          %277 = sbr.rel (%p275) target = $region61
        $region60: #{encoder_decoder_forward.18} parent=15 // pred_region
          %s278 = sand.u32 %s68, 1
          %s279 = sand.u32 %s68, 1
          %s280 = smul.addr %s279, 34
          %s281 = scalar_lea.vmem [#allocation6], %s280
          %s282 = smul.u32 17, %s18
          %s283 = smul.addr %s282, 3
          %s284 = sadd.s32 1, %s283
          %s285 = smul.addr %s16, 51
          %s286 = sadd.s32 %s284, %s285
          %s287 = smul.addr %s286, 2
          %s288 = scalar_lea.vmem %s1, %s287
          // Predicated region
          $region62: #{encoder_decoder_forward.18} parent=60 // pred_check
            _
          $region63: #{encoder_decoder_forward.18} parent=60 // pred_check_branch
            %290 = sbr.rel (0) target = $region65
          $region64: #{encoder_decoder_forward.18} parent=60 // pred_region
            // Predicated region
            $region66: #{encoder_decoder_forward.18} parent=64 // pred_check
              _
            $region67: #{encoder_decoder_forward.18} parent=64 // pred_check_branch
              %292 = sbr.rel target = $region69
            $region68: #{encoder_decoder_forward.18} parent=64 // pred_region
              // Predicated region
              $region81: #{encoder_decoder_forward.18} parent=68 // pred_check
                _
              $region82: #{encoder_decoder_forward.18} parent=68 // pred_check_branch
                %339 = sbr.rel (0) target = $region84
              $region83: #{encoder_decoder_forward.18} parent=68 // pred_region
                loop: start=0, step=1, limit=1
                $region85: #{encoder_decoder_forward.18} parent=83 // loop_pre_header
                  _
                $region86: #{encoder_decoder_forward.18} parent=83 // loop_header
                  %s341 = sphi 0, %s345
                  %p342 = scmp.ge.s32.totalorder %s341, 1
                  %s346 = sphi %s288, %s288
                  %s347 = sphi %s281, %s281
                $region87: #{encoder_decoder_forward.18} parent=83 // loop_header_branch
                  %344 = sbr.rel (%p342) target = $region91
                $region88: #{encoder_decoder_forward.18} parent=83 // loop_body
                  _
                $region89: #{encoder_decoder_forward.18} parent=83 // loop_footer
                  %s345 = sadd.s32 1, %s341
                $region90: #{encoder_decoder_forward.18} parent=83 // loop_footer_branch
                  %340 = sbr.rel target = $region86
                $region91: #{encoder_decoder_forward.18} parent=83 // loop_exit
                  _
                loop: start=0, step=1, limit=1
                $region92: #{encoder_decoder_forward.18} parent=83 // loop_pre_header
                  _
                $region93: #{encoder_decoder_forward.18} parent=83 // loop_header
                  %s350 = sphi 0, %s354
                  %p351 = scmp.ge.s32.totalorder %s350, 1
                  %s355 = sphi %s288, %s288
                  %s356 = sphi %s281, %s281
                $region94: #{encoder_decoder_forward.18} parent=83 // loop_header_branch
                  %353 = sbr.rel (%p351) target = $region98
                $region95: #{encoder_decoder_forward.18} parent=83 // loop_body
                  %v357 = vld [vmem:[%s355] sm:$0x3]
                  %358 = vst [vmem:[%s356] sm:$0x3] %v357
                  %v359 = vld [vmem:[%s355 + $0x6] sm:$0x3]
                  %360 = vst [vmem:[%s356 + $0x2] sm:$0x3] %v359
                  %v361 = vld [vmem:[%s355 + $0xc] sm:$0x3]
                  %362 = vst [vmem:[%s356 + $0x4] sm:$0x3] %v361
                  %v363 = vld [vmem:[%s355 + $0x12] sm:$0x3]
                  %364 = vst [vmem:[%s356 + $0x6] sm:$0x3] %v363
                  %v365 = vld [vmem:[%s355 + $0x18] sm:$0x3]
                  %366 = vst [vmem:[%s356 + $0x8] sm:$0x3] %v365
                  %v367 = vld [vmem:[%s355 + $0x1e] sm:$0x3]
                  %368 = vst [vmem:[%s356 + $0xa] sm:$0x3] %v367
                  %v369 = vld [vmem:[%s355 + $0x24] sm:$0x3]
                  %370 = vst [vmem:[%s356 + $0xc] sm:$0x3] %v369
                  %v371 = vld [vmem:[%s355 + $0x2a] sm:$0x3]
                  %372 = vst [vmem:[%s356 + $0xe] sm:$0x3] %v371
                  %v373 = vld [vmem:[%s355 + $0x30] sm:$0x3]
                  %374 = vst [vmem:[%s356 + $0x10] sm:$0x3] %v373
                  %v375 = vld [vmem:[%s355 + $0x36] sm:$0x3]
                  %376 = vst [vmem:[%s356 + $0x12] sm:$0x3] %v375
                  %v377 = vld [vmem:[%s355 + $0x3c] sm:$0x3]
                  %378 = vst [vmem:[%s356 + $0x14] sm:$0x3] %v377
                  %v379 = vld [vmem:[%s355 + $0x42] sm:$0x3]
                  %380 = vst [vmem:[%s356 + $0x16] sm:$0x3] %v379
                  %v381 = vld [vmem:[%s355 + $0x48] sm:$0x3]
                  %382 = vst [vmem:[%s356 + $0x18] sm:$0x3] %v381
                  %v383 = vld [vmem:[%s355 + $0x4e] sm:$0x3]
                  %384 = vst [vmem:[%s356 + $0x1a] sm:$0x3] %v383
                  %v385 = vld [vmem:[%s355 + $0x54] sm:$0x3]
                  %386 = vst [vmem:[%s356 + $0x1c] sm:$0x3] %v385
                  %v387 = vld [vmem:[%s355 + $0x5a] sm:$0x3]
                  %388 = vst [vmem:[%s356 + $0x1e] sm:$0x3] %v387
                  %v389 = vld [vmem:[%s355 + $0x60] sm:$0x3]
                  %390 = vst [vmem:[%s356 + $0x20] sm:$0x3] %v389
                $region96: #{encoder_decoder_forward.18} parent=83 // loop_footer
                  %s354 = sadd.s32 1, %s350
                $region97: #{encoder_decoder_forward.18} parent=83 // loop_footer_branch
                  %349 = sbr.rel target = $region93
                $region98: #{encoder_decoder_forward.18} parent=83 // loop_exit
                  _
              $region84: #{encoder_decoder_forward.18} parent=68 // pred_fallthru
                _
            $region69: #{encoder_decoder_forward.18} parent=64 // pred_fallthru
              _
            // Predicated region
            $region70: #{encoder_decoder_forward.18} parent=64 // pred_check
              _
            $region71: #{encoder_decoder_forward.18} parent=64 // pred_check_branch
              %294 = sbr.rel (0) target = $region73
            $region72: #{encoder_decoder_forward.18} parent=64 // pred_region
              loop: start=0, step=1, limit=1
              $region74: #{encoder_decoder_forward.18} parent=72 // loop_pre_header
                _
              $region75: #{encoder_decoder_forward.18} parent=72 // loop_header
                %s297 = sphi 0, %s301
                %p298 = scmp.ge.s32.totalorder %s297, 1
                %s302 = sphi %s288, %s288
                %s303 = sphi %s281, %s281
              $region76: #{encoder_decoder_forward.18} parent=72 // loop_header_branch
                %300 = sbr.rel (%p298) target = $region80
              $region77: #{encoder_decoder_forward.18} parent=72 // loop_body
                %v304 = vld [vmem:[%s302] sm:$0x3]
                %305 = vst [vmem:[%s303] sm:$0x3] %v304
                %v306 = vld [vmem:[%s302 + $0x6] sm:$0x3]
                %307 = vst [vmem:[%s303 + $0x2] sm:$0x3] %v306
                %v308 = vld [vmem:[%s302 + $0xc] sm:$0x3]
                %309 = vst [vmem:[%s303 + $0x4] sm:$0x3] %v308
                %v310 = vld [vmem:[%s302 + $0x12] sm:$0x3]
                %311 = vst [vmem:[%s303 + $0x6] sm:$0x3] %v310
                %v312 = vld [vmem:[%s302 + $0x18] sm:$0x3]
                %313 = vst [vmem:[%s303 + $0x8] sm:$0x3] %v312
                %v314 = vld [vmem:[%s302 + $0x1e] sm:$0x3]
                %315 = vst [vmem:[%s303 + $0xa] sm:$0x3] %v314
                %v316 = vld [vmem:[%s302 + $0x24] sm:$0x3]
                %317 = vst [vmem:[%s303 + $0xc] sm:$0x3] %v316
                %v318 = vld [vmem:[%s302 + $0x2a] sm:$0x3]
                %319 = vst [vmem:[%s303 + $0xe] sm:$0x3] %v318
                %v320 = vld [vmem:[%s302 + $0x30] sm:$0x3]
                %321 = vst [vmem:[%s303 + $0x10] sm:$0x3] %v320
                %v322 = vld [vmem:[%s302 + $0x36] sm:$0x3]
                %323 = vst [vmem:[%s303 + $0x12] sm:$0x3] %v322
                %v324 = vld [vmem:[%s302 + $0x3c] sm:$0x3]
                %325 = vst [vmem:[%s303 + $0x14] sm:$0x3] %v324
                %v326 = vld [vmem:[%s302 + $0x42] sm:$0x3]
                %327 = vst [vmem:[%s303 + $0x16] sm:$0x3] %v326
                %v328 = vld [vmem:[%s302 + $0x48] sm:$0x3]
                %329 = vst [vmem:[%s303 + $0x18] sm:$0x3] %v328
                %v330 = vld [vmem:[%s302 + $0x4e] sm:$0x3]
                %331 = vst [vmem:[%s303 + $0x1a] sm:$0x3] %v330
                %v332 = vld [vmem:[%s302 + $0x54] sm:$0x3]
                %333 = vst [vmem:[%s303 + $0x1c] sm:$0x3] %v332
                %v334 = vld [vmem:[%s302 + $0x5a] sm:$0x3]
                %335 = vst [vmem:[%s303 + $0x1e] sm:$0x3] %v334
                %v336 = vld [vmem:[%s302 + $0x60] sm:$0x3]
                %337 = vst [vmem:[%s303 + $0x20] sm:$0x3] %v336
              $region78: #{encoder_decoder_forward.18} parent=72 // loop_footer
                %s301 = sadd.s32 1, %s297
              $region79: #{encoder_decoder_forward.18} parent=72 // loop_footer_branch
                %296 = sbr.rel target = $region75
              $region80: #{encoder_decoder_forward.18} parent=72 // loop_exit
                _
            $region73: #{encoder_decoder_forward.18} parent=64 // pred_fallthru
              _
          $region65: #{encoder_decoder_forward.18} parent=60 // pred_fallthru
            _
          %391 = vnop
        $region61: #{encoder_decoder_forward.18} parent=15 // pred_fallthru
          _
        // Predicated region
        $region99: #{encoder_decoder_forward.18} parent=15 // pred_check
          %p392 = pneg %p106
        $region100: #{encoder_decoder_forward.18} parent=15 // pred_check_branch
          %394 = sbr.rel (%p392) target = $region102
        $region101: #{encoder_decoder_forward.18} parent=15 // pred_region
          %s395 = sand.u32 %s96, 1
          %s396 = sand.u32 %s96, 1
          %s397 = smul.addr %s396, 34
          %s398 = scalar_lea.vmem [#allocation7], %s397
          %s399 = smul.u32 17, %s18
          %s400 = smul.addr %s399, 3
          %s401 = sadd.s32 2, %s400
          %s402 = smul.addr %s16, 51
          %s403 = sadd.s32 %s401, %s402
          %s404 = smul.addr %s403, 2
          %s405 = scalar_lea.vmem %s2, %s404
          // Predicated region
          $region103: #{encoder_decoder_forward.18} parent=101 // pred_check
            _
          $region104: #{encoder_decoder_forward.18} parent=101 // pred_check_branch
            %407 = sbr.rel (0) target = $region106
          $region105: #{encoder_decoder_forward.18} parent=101 // pred_region
            // Predicated region
            $region107: #{encoder_decoder_forward.18} parent=105 // pred_check
              _
            $region108: #{encoder_decoder_forward.18} parent=105 // pred_check_branch
              %409 = sbr.rel target = $region110
            $region109: #{encoder_decoder_forward.18} parent=105 // pred_region
              // Predicated region
              $region122: #{encoder_decoder_forward.18} parent=109 // pred_check
                _
              $region123: #{encoder_decoder_forward.18} parent=109 // pred_check_branch
                %456 = sbr.rel (0) target = $region125
              $region124: #{encoder_decoder_forward.18} parent=109 // pred_region
                loop: start=0, step=1, limit=1
                $region126: #{encoder_decoder_forward.18} parent=124 // loop_pre_header
                  _
                $region127: #{encoder_decoder_forward.18} parent=124 // loop_header
                  %s458 = sphi 0, %s462
                  %p459 = scmp.ge.s32.totalorder %s458, 1
                  %s463 = sphi %s405, %s405
                  %s464 = sphi %s398, %s398
                $region128: #{encoder_decoder_forward.18} parent=124 // loop_header_branch
                  %461 = sbr.rel (%p459) target = $region132
                $region129: #{encoder_decoder_forward.18} parent=124 // loop_body
                  _
                $region130: #{encoder_decoder_forward.18} parent=124 // loop_footer
                  %s462 = sadd.s32 1, %s458
                $region131: #{encoder_decoder_forward.18} parent=124 // loop_footer_branch
                  %457 = sbr.rel target = $region127
                $region132: #{encoder_decoder_forward.18} parent=124 // loop_exit
                  _
                loop: start=0, step=1, limit=1
                $region133: #{encoder_decoder_forward.18} parent=124 // loop_pre_header
                  _
                $region134: #{encoder_decoder_forward.18} parent=124 // loop_header
                  %s467 = sphi 0, %s471
                  %p468 = scmp.ge.s32.totalorder %s467, 1
                  %s472 = sphi %s405, %s405
                  %s473 = sphi %s398, %s398
                $region135: #{encoder_decoder_forward.18} parent=124 // loop_header_branch
                  %470 = sbr.rel (%p468) target = $region139
                $region136: #{encoder_decoder_forward.18} parent=124 // loop_body
                  %v474 = vld [vmem:[%s472] sm:$0x3]
                  %475 = vst [vmem:[%s473] sm:$0x3] %v474
                  %v476 = vld [vmem:[%s472 + $0x6] sm:$0x3]
                  %477 = vst [vmem:[%s473 + $0x2] sm:$0x3] %v476
                  %v478 = vld [vmem:[%s472 + $0xc] sm:$0x3]
                  %479 = vst [vmem:[%s473 + $0x4] sm:$0x3] %v478
                  %v480 = vld [vmem:[%s472 + $0x12] sm:$0x3]
                  %481 = vst [vmem:[%s473 + $0x6] sm:$0x3] %v480
                  %v482 = vld [vmem:[%s472 + $0x18] sm:$0x3]
                  %483 = vst [vmem:[%s473 + $0x8] sm:$0x3] %v482
                  %v484 = vld [vmem:[%s472 + $0x1e] sm:$0x3]
                  %485 = vst [vmem:[%s473 + $0xa] sm:$0x3] %v484
                  %v486 = vld [vmem:[%s472 + $0x24] sm:$0x3]
                  %487 = vst [vmem:[%s473 + $0xc] sm:$0x3] %v486
                  %v488 = vld [vmem:[%s472 + $0x2a] sm:$0x3]
                  %489 = vst [vmem:[%s473 + $0xe] sm:$0x3] %v488
                  %v490 = vld [vmem:[%s472 + $0x30] sm:$0x3]
                  %491 = vst [vmem:[%s473 + $0x10] sm:$0x3] %v490
                  %v492 = vld [vmem:[%s472 + $0x36] sm:$0x3]
                  %493 = vst [vmem:[%s473 + $0x12] sm:$0x3] %v492
                  %v494 = vld [vmem:[%s472 + $0x3c] sm:$0x3]
                  %495 = vst [vmem:[%s473 + $0x14] sm:$0x3] %v494
                  %v496 = vld [vmem:[%s472 + $0x42] sm:$0x3]
                  %497 = vst [vmem:[%s473 + $0x16] sm:$0x3] %v496
                  %v498 = vld [vmem:[%s472 + $0x48] sm:$0x3]
                  %499 = vst [vmem:[%s473 + $0x18] sm:$0x3] %v498
                  %v500 = vld [vmem:[%s472 + $0x4e] sm:$0x3]
                  %501 = vst [vmem:[%s473 + $0x1a] sm:$0x3] %v500
                  %v502 = vld [vmem:[%s472 + $0x54] sm:$0x3]
                  %503 = vst [vmem:[%s473 + $0x1c] sm:$0x3] %v502
                  %v504 = vld [vmem:[%s472 + $0x5a] sm:$0x3]
                  %505 = vst [vmem:[%s473 + $0x1e] sm:$0x3] %v504
                  %v506 = vld [vmem:[%s472 + $0x60] sm:$0x3]
                  %507 = vst [vmem:[%s473 + $0x20] sm:$0x3] %v506
                $region137: #{encoder_decoder_forward.18} parent=124 // loop_footer
                  %s471 = sadd.s32 1, %s467
                $region138: #{encoder_decoder_forward.18} parent=124 // loop_footer_branch
                  %466 = sbr.rel target = $region134
                $region139: #{encoder_decoder_forward.18} parent=124 // loop_exit
                  _
              $region125: #{encoder_decoder_forward.18} parent=109 // pred_fallthru
                _
            $region110: #{encoder_decoder_forward.18} parent=105 // pred_fallthru
              _
            // Predicated region
            $region111: #{encoder_decoder_forward.18} parent=105 // pred_check
              _
            $region112: #{encoder_decoder_forward.18} parent=105 // pred_check_branch
              %411 = sbr.rel (0) target = $region114
            $region113: #{encoder_decoder_forward.18} parent=105 // pred_region
              loop: start=0, step=1, limit=1
              $region115: #{encoder_decoder_forward.18} parent=113 // loop_pre_header
                _
              $region116: #{encoder_decoder_forward.18} parent=113 // loop_header
                %s414 = sphi 0, %s418
                %p415 = scmp.ge.s32.totalorder %s414, 1
                %s419 = sphi %s405, %s405
                %s420 = sphi %s398, %s398
              $region117: #{encoder_decoder_forward.18} parent=113 // loop_header_branch
                %417 = sbr.rel (%p415) target = $region121
              $region118: #{encoder_decoder_forward.18} parent=113 // loop_body
                %v421 = vld [vmem:[%s419] sm:$0x3]
                %422 = vst [vmem:[%s420] sm:$0x3] %v421
                %v423 = vld [vmem:[%s419 + $0x6] sm:$0x3]
                %424 = vst [vmem:[%s420 + $0x2] sm:$0x3] %v423
                %v425 = vld [vmem:[%s419 + $0xc] sm:$0x3]
                %426 = vst [vmem:[%s420 + $0x4] sm:$0x3] %v425
                %v427 = vld [vmem:[%s419 + $0x12] sm:$0x3]
                %428 = vst [vmem:[%s420 + $0x6] sm:$0x3] %v427
                %v429 = vld [vmem:[%s419 + $0x18] sm:$0x3]
                %430 = vst [vmem:[%s420 + $0x8] sm:$0x3] %v429
                %v431 = vld [vmem:[%s419 + $0x1e] sm:$0x3]
                %432 = vst [vmem:[%s420 + $0xa] sm:$0x3] %v431
                %v433 = vld [vmem:[%s419 + $0x24] sm:$0x3]
                %434 = vst [vmem:[%s420 + $0xc] sm:$0x3] %v433
                %v435 = vld [vmem:[%s419 + $0x2a] sm:$0x3]
                %436 = vst [vmem:[%s420 + $0xe] sm:$0x3] %v435
                %v437 = vld [vmem:[%s419 + $0x30] sm:$0x3]
                %438 = vst [vmem:[%s420 + $0x10] sm:$0x3] %v437
                %v439 = vld [vmem:[%s419 + $0x36] sm:$0x3]
                %440 = vst [vmem:[%s420 + $0x12] sm:$0x3] %v439
                %v441 = vld [vmem:[%s419 + $0x3c] sm:$0x3]
                %442 = vst [vmem:[%s420 + $0x14] sm:$0x3] %v441
                %v443 = vld [vmem:[%s419 + $0x42] sm:$0x3]
                %444 = vst [vmem:[%s420 + $0x16] sm:$0x3] %v443
                %v445 = vld [vmem:[%s419 + $0x48] sm:$0x3]
                %446 = vst [vmem:[%s420 + $0x18] sm:$0x3] %v445
                %v447 = vld [vmem:[%s419 + $0x4e] sm:$0x3]
                %448 = vst [vmem:[%s420 + $0x1a] sm:$0x3] %v447
                %v449 = vld [vmem:[%s419 + $0x54] sm:$0x3]
                %450 = vst [vmem:[%s420 + $0x1c] sm:$0x3] %v449
                %v451 = vld [vmem:[%s419 + $0x5a] sm:$0x3]
                %452 = vst [vmem:[%s420 + $0x1e] sm:$0x3] %v451
                %v453 = vld [vmem:[%s419 + $0x60] sm:$0x3]
                %454 = vst [vmem:[%s420 + $0x20] sm:$0x3] %v453
              $region119: #{encoder_decoder_forward.18} parent=113 // loop_footer
                %s418 = sadd.s32 1, %s414
              $region120: #{encoder_decoder_forward.18} parent=113 // loop_footer_branch
                %413 = sbr.rel target = $region116
              $region121: #{encoder_decoder_forward.18} parent=113 // loop_exit
                _
            $region114: #{encoder_decoder_forward.18} parent=105 // pred_fallthru
              _
          $region106: #{encoder_decoder_forward.18} parent=101 // pred_fallthru
            _
          %508 = vnop
        $region102: #{encoder_decoder_forward.18} parent=15 // pred_fallthru
          _
      $region16: #{encoder_decoder_forward.18} parent=5 // pred_fallthru
        _
      %p509 = scmp.le.s32.totalorder 1, %s9
      %p510 = scmp.lt.s32.totalorder %s9, 3
      %p511 = pnand %p509, %p510
      %p512 = pneg %p511
      // Predicated region
      $region140: #{encoder_decoder_forward.18} parent=5 // pred_check
        _
      $region141: #{encoder_decoder_forward.18} parent=5 // pred_check_branch
        %514 = sbr.rel (%p511) target = $region143
      $region142: #{encoder_decoder_forward.18} parent=5 // pred_region
        %s515 = ssub.s32 %s9, 1
        %s516 = sand.u32 %s43, 1
        %s517 = sand.u32 %s43, 1
        %s518 = smul.addr %s517, 34
        %s519 = scalar_lea.vmem [#allocation5], %s518
        // Predicated region
        $region144: #{encoder_decoder_forward.18} parent=142 // pred_check
          %p520 = pneg %p56
        $region145: #{encoder_decoder_forward.18} parent=142 // pred_check_branch
          %522 = sbr.rel (%p520) target = $region147
        $region146: #{encoder_decoder_forward.18} parent=142 // pred_region
          _
        $region147: #{encoder_decoder_forward.18} parent=142 // pred_fallthru
          _
        %s523 = sand.u32 %s71, 1
        %s524 = sand.u32 %s71, 1
        %s525 = smul.addr %s524, 34
        %s526 = scalar_lea.vmem [#allocation6], %s525
        // Predicated region
        $region148: #{encoder_decoder_forward.18} parent=142 // pred_check
          %p527 = pneg %p84
        $region149: #{encoder_decoder_forward.18} parent=142 // pred_check_branch
          %529 = sbr.rel (%p527) target = $region151
        $region150: #{encoder_decoder_forward.18} parent=142 // pred_region
          _
        $region151: #{encoder_decoder_forward.18} parent=142 // pred_fallthru
          _
        %s530 = sand.u32 %s99, 1
        %s531 = sand.u32 %s99, 1
        %s532 = smul.addr %s531, 34
        %s533 = scalar_lea.vmem [#allocation7], %s532
        // Predicated region
        $region152: #{encoder_decoder_forward.18} parent=142 // pred_check
          %p534 = pneg %p112
        $region153: #{encoder_decoder_forward.18} parent=142 // pred_check_branch
          %536 = sbr.rel (%p534) target = $region155
        $region154: #{encoder_decoder_forward.18} parent=142 // pred_region
          _
        $region155: #{encoder_decoder_forward.18} parent=142 // pred_fallthru
          _
        %s537 = sand.u32 %s43, 1
        %s538 = sand.u32 %s43, 1
        %s539 = smul.addr %s538, 34
        %s540 = scalar_lea.vmem [#allocation5], %s539
        %p541 = pneg %p56
        %p542 = pneg %p53
        %s543 = sand.u32 %s71, 1
        %s544 = sand.u32 %s71, 1
        %s545 = smul.addr %s544, 34
        %s546 = scalar_lea.vmem [#allocation6], %s545
        %p547 = pneg %p84
        %p548 = pneg %p81
        %s549 = sand.u32 %s99, 1
        %s550 = sand.u32 %s99, 1
        %s551 = smul.addr %s550, 34
        %s552 = scalar_lea.vmem [#allocation7], %s551
        %p553 = pneg %p112
        %p554 = pneg %p109
        %p555 = pneg %p140
        %p556 = pneg %p137
        %s557 = smul.u32 3, %s20
        %p558 = scmp.lt.s32.totalorder %s19, 1
        %s559 = scalar_select %p558, %s19, 1
        %p560 = scmp.lt.s32.totalorder %s557, 2
        %s561 = scalar_select %p560, %s557, 2
        %s562 = smul.addr %s559, 3
        %s563 = sadd.s32 %s561, %s562
        %s564 = smul.addr %s563, 4
        %s565 = scalar_lea.vmem %s3, %s564
        %s566 = smul.u32 17, %s20
        %s567 = smul.u32 17, %s21
        %s568 = smul.u32 17, %s21
        %s569 = smul.u32 3, %s20
        %p570 = scmp.lt.s32.totalorder %s19, 1
        %s571 = scalar_select %p570, %s19, 1
        %p572 = scmp.lt.s32.totalorder %s569, 2
        %s573 = scalar_select %p572, %s569, 2
        %s574 = smul.addr %s571, 3
        %s575 = sadd.s32 %s573, %s574
        %s576 = smul.addr %s575, 4
        %s577 = scalar_lea.vmem %s3, %s576
        %s578 = smul.u32 3, %s20
        %p580 = scmp.eq.s32.totalorder %s21, 0
        // Predicated region
        $region156: #{encoder_decoder_forward.18} parent=142 // pred_check
          %p581 = pneg %p580
        $region157: #{encoder_decoder_forward.18} parent=142 // pred_check_branch
          %583 = sbr.rel (%p581) target = $region159
        $region158: #{encoder_decoder_forward.18} parent=142 // pred_region
          %vm584 = vcmask 7168
          %585 = vst.msk [vmem:[#allocation2] sm:$0xff] %vm584, -1e+30
          %586 = vst.msk [vmem:[#allocation2 + $0x8] sm:$0xff] %vm584, -1e+30
          %vm587 = vcmask 0
          %588 = vst.msk [vmem:[#allocation2 + $0x10] sm:$0x1] %vm587, -1e+30
          %589 = vst.msk [vmem:[#allocation2 + $0x18] sm:$0xff] %vm584, -1e+30
          %590 = vst.msk [vmem:[#allocation2 + $0x20] sm:$0xff] %vm584, -1e+30
          %591 = vst.msk [vmem:[#allocation2 + $0x28] sm:$0x1] %vm587, -1e+30
          %592 = vst.msk [vmem:[#allocation2 + $0x30] sm:$0xff] %vm584, -1e+30
          %593 = vst.msk [vmem:[#allocation2 + $0x38] sm:$0xff] %vm584, -1e+30
          %594 = vst.msk [vmem:[#allocation2 + $0x40] sm:$0x1] %vm587, -1e+30
          %595 = vst.msk [vmem:[#allocation2 + $0x48] sm:$0xff] %vm584, -1e+30
          %596 = vst.msk [vmem:[#allocation2 + $0x50] sm:$0xff] %vm584, -1e+30
          %597 = vst.msk [vmem:[#allocation2 + $0x58] sm:$0x1] %vm587, -1e+30
          %598 = vst.msk [vmem:[#allocation3] sm:$0xff] %vm584, 0.0
          %599 = vst.msk [vmem:[#allocation3 + $0x8] sm:$0xff] %vm584, 0.0
          %600 = vst.msk [vmem:[#allocation3 + $0x10] sm:$0x1] %vm587, 0.0
          %601 = vst.msk [vmem:[#allocation3 + $0x18] sm:$0xff] %vm584, 0.0
          %602 = vst.msk [vmem:[#allocation3 + $0x20] sm:$0xff] %vm584, 0.0
          %603 = vst.msk [vmem:[#allocation3 + $0x28] sm:$0x1] %vm587, 0.0
          %604 = vst.msk [vmem:[#allocation3 + $0x30] sm:$0xff] %vm584, 0.0
          %605 = vst.msk [vmem:[#allocation3 + $0x38] sm:$0xff] %vm584, 0.0
          %606 = vst.msk [vmem:[#allocation3 + $0x40] sm:$0x1] %vm587, 0.0
          %607 = vst.msk [vmem:[#allocation3 + $0x48] sm:$0xff] %vm584, 0.0
          %608 = vst.msk [vmem:[#allocation3 + $0x50] sm:$0xff] %vm584, 0.0
          %609 = vst.msk [vmem:[#allocation3 + $0x58] sm:$0x1] %vm587, 0.0
          %vm610 = vcmask 64512
          %611 = vst.msk [vmem:[#allocation4] sm:$0xff] %vm610, 0.0
          %612 = vst.msk [vmem:[#allocation4 + $0x8] sm:$0xff] %vm610, 0.0
          %vm613 = vcmask 57344
          %614 = vst.msk [vmem:[#allocation4 + $0x10] sm:$0x1] %vm613, 0.0
          %615 = vst.msk [vmem:[#allocation4 + $0x18] sm:$0xff] %vm610, 0.0
          %616 = vst.msk [vmem:[#allocation4 + $0x20] sm:$0xff] %vm610, 0.0
          %617 = vst.msk [vmem:[#allocation4 + $0x28] sm:$0x1] %vm613, 0.0
          %618 = vst.msk [vmem:[#allocation4 + $0x30] sm:$0xff] %vm610, 0.0
          %619 = vst.msk [vmem:[#allocation4 + $0x38] sm:$0xff] %vm610, 0.0
          %620 = vst.msk [vmem:[#allocation4 + $0x40] sm:$0x1] %vm613, 0.0
          %621 = vst.msk [vmem:[#allocation4 + $0x48] sm:$0xff] %vm610, 0.0
          %622 = vst.msk [vmem:[#allocation4 + $0x50] sm:$0xff] %vm610, 0.0
          %623 = vst.msk [vmem:[#allocation4 + $0x58] sm:$0x1] %vm613, 0.0
        $region159: #{encoder_decoder_forward.18} parent=142 // pred_fallthru
          _
        %v624 = vld [vmem:[%s519] sm:$0x3]
        %v625 = vld [vmem:[%s519 + $0x2] sm:$0x3]
        %v626 = vld [vmem:[%s519 + $0x4] sm:$0x3]
        %v627 = vld [vmem:[%s519 + $0x6] sm:$0x3]
        %v628 = vld [vmem:[%s519 + $0x8] sm:$0x3]
        %v629 = vld [vmem:[%s519 + $0xa] sm:$0x3]
        %v630 = vld [vmem:[%s519 + $0xc] sm:$0x3]
        %v631 = vld [vmem:[%s519 + $0xe] sm:$0x3]
        %v632 = vld [vmem:[%s519 + $0x10] sm:$0x3]
        %v633 = vld [vmem:[%s519 + $0x12] sm:$0x3]
        %v634 = vld [vmem:[%s519 + $0x14] sm:$0x3]
        %v635 = vld [vmem:[%s519 + $0x16] sm:$0x3]
        %v636 = vld [vmem:[%s519 + $0x18] sm:$0x3]
        %v637 = vld [vmem:[%s519 + $0x1a] sm:$0x3]
        %v638 = vld [vmem:[%s519 + $0x1c] sm:$0x3]
        %v639 = vld [vmem:[%s519 + $0x1e] sm:$0x3]
        %v640 = vld [vmem:[%s519 + $0x20] sm:$0x3]
        %v641 = vld [vmem:[%s526] sm:$0x3]
        %v642 = vld [vmem:[%s526 + $0x2] sm:$0x3]
        %v643 = vld [vmem:[%s526 + $0x4] sm:$0x3]
        %v644 = vld [vmem:[%s526 + $0x6] sm:$0x3]
        %v645 = vld [vmem:[%s526 + $0x8] sm:$0x3]
        %v646 = vld [vmem:[%s526 + $0xa] sm:$0x3]
        %v647 = vld [vmem:[%s526 + $0xc] sm:$0x3]
        %v648 = vld [vmem:[%s526 + $0xe] sm:$0x3]
        %v649 = vld [vmem:[%s526 + $0x10] sm:$0x3]
        %v650 = vld [vmem:[%s526 + $0x12] sm:$0x3]
        %v651 = vld [vmem:[%s526 + $0x14] sm:$0x3]
        %v652 = vld [vmem:[%s526 + $0x16] sm:$0x3]
        %v653 = vld [vmem:[%s526 + $0x18] sm:$0x3]
        %v654 = vld [vmem:[%s526 + $0x1a] sm:$0x3]
        %v655 = vld [vmem:[%s526 + $0x1c] sm:$0x3]
        %v656 = vld [vmem:[%s526 + $0x1e] sm:$0x3]
        %v657 = vld [vmem:[%s526 + $0x20] sm:$0x3]
        %v658 = vld [vmem:[%s533] sm:$0x3]
        %v659 = vld [vmem:[%s533 + $0x2] sm:$0x3]
        %v660 = vld [vmem:[%s533 + $0x4] sm:$0x3]
        %v661 = vld [vmem:[%s533 + $0x6] sm:$0x3]
        %v662 = vld [vmem:[%s533 + $0x8] sm:$0x3]
        %v663 = vld [vmem:[%s533 + $0xa] sm:$0x3]
        %v664 = vld [vmem:[%s533 + $0xc] sm:$0x3]
        %v665 = vld [vmem:[%s533 + $0xe] sm:$0x3]
        %v666 = vld [vmem:[%s533 + $0x10] sm:$0x3]
        %v667 = vld [vmem:[%s533 + $0x12] sm:$0x3]
        %v668 = vld [vmem:[%s533 + $0x14] sm:$0x3]
        %v669 = vld [vmem:[%s533 + $0x16] sm:$0x3]
        %v670 = vld [vmem:[%s533 + $0x18] sm:$0x3]
        %v671 = vld [vmem:[%s533 + $0x1a] sm:$0x3]
        %v672 = vld [vmem:[%s533 + $0x1c] sm:$0x3]
        %v673 = vld [vmem:[%s533 + $0x1e] sm:$0x3]
        %v674 = vld [vmem:[%s533 + $0x20] sm:$0x3]
        %v675 = vunpack.c.l.bf16 %v624
        %v676 = vunpack.c.l.bf16 %v625
        %v677 = vunpack.c.l.bf16 %v626
        %v678 = vunpack.c.l.bf16 %v627
        %v679 = vunpack.c.l.bf16 %v628
        %v680 = vunpack.c.l.bf16 %v629
        %v681 = vunpack.c.l.bf16 %v630
        %v682 = vunpack.c.l.bf16 %v631
        %v683 = vunpack.c.l.bf16 %v632
        %v684 = vunpack.c.l.bf16 %v633
        %v685 = vunpack.c.l.bf16 %v634
        %v686 = vunpack.c.l.bf16 %v635
        %v687 = vunpack.c.l.bf16 %v636
        %v688 = vunpack.c.l.bf16 %v637
        %v689 = vunpack.c.l.bf16 %v638
        %v690 = vunpack.c.l.bf16 %v639
        %v691 = vunpack.c.l.bf16 %v640
        %v692 = vmul.f32 %v675, 0.35355338
        %v693 = vmul.f32 %v676, 0.35355338
        %v694 = vmul.f32 %v677, 0.35355338
        %v695 = vmul.f32 %v678, 0.35355338
        %v696 = vmul.f32 %v679, 0.35355338
        %v697 = vmul.f32 %v680, 0.35355338
        %v698 = vmul.f32 %v681, 0.35355338
        %v699 = vmul.f32 %v682, 0.35355338
        %v700 = vmul.f32 %v683, 0.35355338
        %v701 = vmul.f32 %v684, 0.35355338
        %v702 = vmul.f32 %v685, 0.35355338
        %v703 = vmul.f32 %v686, 0.35355338
        %v704 = vmul.f32 %v687, 0.35355338
        %v705 = vmul.f32 %v688, 0.35355338
        %v706 = vmul.f32 %v689, 0.35355338
        %v707 = vmul.f32 %v690, 0.35355338
        %v708 = vmul.f32 %v691, 0.35355338
        %v709 = vpack.c.bf16 %v692, %v692
        %v710 = vpack.c.bf16 %v693, %v693
        %v711 = vpack.c.bf16 %v694, %v694
        %v712 = vpack.c.bf16 %v695, %v695
        %v713 = vpack.c.bf16 %v696, %v696
        %v714 = vpack.c.bf16 %v697, %v697
        %v715 = vpack.c.bf16 %v698, %v698
        %v716 = vpack.c.bf16 %v699, %v699
        %v717 = vpack.c.bf16 %v700, %v700
        %v718 = vpack.c.bf16 %v701, %v701
        %v719 = vpack.c.bf16 %v702, %v702
        %v720 = vpack.c.bf16 %v703, %v703
        %v721 = vpack.c.bf16 %v704, %v704
        %v722 = vpack.c.bf16 %v705, %v705
        %v723 = vpack.c.bf16 %v706, %v706
        %v724 = vpack.c.bf16 %v707, %v707
        %v725 = vpack.c.bf16 %v708, %v708
        %v743 = vunpack.c.l.b16 %v709
        %v744 = vunpack.c.l.b16 %v710
        %v745 = vunpack.c.l.b16 %v711
        %v746 = vunpack.c.l.b16 %v712
        %v747 = vunpack.c.l.b16 %v713
        %v748 = vunpack.c.l.b16 %v714
        %v749 = vunpack.c.l.b16 %v715
        %v750 = vunpack.c.l.b16 %v716
        %v751 = vunpack.c.l.b16 %v717
        %v752 = vunpack.c.l.b16 %v718
        %v753 = vunpack.c.l.b16 %v719
        %v754 = vunpack.c.l.b16 %v720
        %v755 = vunpack.c.l.b16 %v721
        %v756 = vunpack.c.l.b16 %v722
        %v757 = vunpack.c.l.b16 %v723
        %v758 = vunpack.c.l.b16 %v724
        %v759 = vunpack.c.l.b16 %v725
        %v760 = vrot.slane %v744, 7
        %vm761 = vcmask 1041409
        %v762 = vsel %vm761, %v760, %v743
        %v763 = vrot.slane %v745, 6
        %vm764 = vcmask 1042434
        %v765 = vsel %vm764, %v763, %v762
        %v766 = vrot.slane %v746, 5
        %vm767 = vcmask 1043459
        %v768 = vsel %vm767, %v766, %v765
        %v769 = vrot.slane %v747, 4
        %vm770 = vcmask 1044484
        %v771 = vsel %vm770, %v769, %v768
        %v772 = vrot.slane %v748, 3
        %vm773 = vcmask 1045509
        %v774 = vsel %vm773, %v772, %v771
        %v775 = vrot.slane %v749, 2
        %vm776 = vcmask 1046534
        %v777 = vsel %vm776, %v775, %v774
        %v778 = vrot.slane %v750, 1
        %vm779 = vcmask 1047559
        %v780 = vsel %vm779, %v778, %v777
        %v781 = vrot.slane %v752, 7
        %v782 = vsel %vm761, %v781, %v751
        %v783 = vrot.slane %v753, 6
        %v784 = vsel %vm764, %v783, %v782
        %v785 = vrot.slane %v754, 5
        %v786 = vsel %vm767, %v785, %v784
        %v787 = vrot.slane %v755, 4
        %v788 = vsel %vm770, %v787, %v786
        %v789 = vrot.slane %v756, 3
        %v790 = vsel %vm773, %v789, %v788
        %v791 = vrot.slane %v757, 2
        %v792 = vsel %vm776, %v791, %v790
        %v793 = vrot.slane %v758, 1
        %v794 = vsel %vm779, %v793, %v792
        %v795 = vpack.c.b16 %v794, %v780
        %v796 = vpack.c.b16 %v759, %v759
        %v815 = vunpack.c.l.s4 1983009808
        %v816 = vunpack.c.0.s8 %v815
        %v817 = vlaneseq
        %v818 = vshrl.u32 %v817, 7
        %v819 = vsub.s32 %v816, %v818
        %v820 = vrot.slane %v641, %v819
        %v822 = vunpack.c.l.s4 1983009808
        %v823 = vunpack.c.0.s8 %v822
        %v824 = vlaneseq
        %v825 = vshrl.u32 %v824, 7
        %v826 = vsub.s32 %v823, %v825
        %v827 = vrot.slane %v642, %v826
        %v829 = vunpack.c.l.s4 1983009808
        %v830 = vunpack.c.0.s8 %v829
        %v831 = vlaneseq
        %v832 = vshrl.u32 %v831, 7
        %v833 = vsub.s32 %v830, %v832
        %v834 = vrot.slane %v643, %v833
        %v836 = vunpack.c.l.s4 1983009808
        %v837 = vunpack.c.0.s8 %v836
        %v838 = vlaneseq
        %v839 = vshrl.u32 %v838, 7
        %v840 = vsub.s32 %v837, %v839
        %v841 = vrot.slane %v644, %v840
        %v843 = vunpack.c.l.s4 1983009808
        %v844 = vunpack.c.0.s8 %v843
        %v845 = vlaneseq
        %v846 = vshrl.u32 %v845, 7
        %v847 = vsub.s32 %v844, %v846
        %v848 = vrot.slane %v645, %v847
        %v850 = vunpack.c.l.s4 1983009808
        %v851 = vunpack.c.0.s8 %v850
        %v852 = vlaneseq
        %v853 = vshrl.u32 %v852, 7
        %v854 = vsub.s32 %v851, %v853
        %v855 = vrot.slane %v646, %v854
        %v857 = vunpack.c.l.s4 1983009808
        %v858 = vunpack.c.0.s8 %v857
        %v859 = vlaneseq
        %v860 = vshrl.u32 %v859, 7
        %v861 = vsub.s32 %v858, %v860
        %v862 = vrot.slane %v647, %v861
        %v864 = vunpack.c.l.s4 1983009808
        %v865 = vunpack.c.0.s8 %v864
        %v866 = vlaneseq
        %v867 = vshrl.u32 %v866, 7
        %v868 = vsub.s32 %v865, %v867
        %v869 = vrot.slane %v648, %v868
        %v871 = vunpack.c.l.s4 1983009808
        %v872 = vunpack.c.0.s8 %v871
        %v873 = vlaneseq
        %v874 = vshrl.u32 %v873, 7
        %v875 = vsub.s32 %v872, %v874
        %v876 = vrot.slane %v649, %v875
        %v878 = vunpack.c.l.s4 1983009808
        %v879 = vunpack.c.0.s8 %v878
        %v880 = vlaneseq
        %v881 = vshrl.u32 %v880, 7
        %v882 = vsub.s32 %v879, %v881
        %v883 = vrot.slane %v650, %v882
        %v885 = vunpack.c.l.s4 1983009808
        %v886 = vunpack.c.0.s8 %v885
        %v887 = vlaneseq
        %v888 = vshrl.u32 %v887, 7
        %v889 = vsub.s32 %v886, %v888
        %v890 = vrot.slane %v651, %v889
        %v892 = vunpack.c.l.s4 1983009808
        %v893 = vunpack.c.0.s8 %v892
        %v894 = vlaneseq
        %v895 = vshrl.u32 %v894, 7
        %v896 = vsub.s32 %v893, %v895
        %v897 = vrot.slane %v652, %v896
        %v899 = vunpack.c.l.s4 1983009808
        %v900 = vunpack.c.0.s8 %v899
        %v901 = vlaneseq
        %v902 = vshrl.u32 %v901, 7
        %v903 = vsub.s32 %v900, %v902
        %v904 = vrot.slane %v653, %v903
        %v906 = vunpack.c.l.s4 1983009808
        %v907 = vunpack.c.0.s8 %v906
        %v908 = vlaneseq
        %v909 = vshrl.u32 %v908, 7
        %v910 = vsub.s32 %v907, %v909
        %v911 = vrot.slane %v654, %v910
        %v913 = vunpack.c.l.s4 1983009808
        %v914 = vunpack.c.0.s8 %v913
        %v915 = vlaneseq
        %v916 = vshrl.u32 %v915, 7
        %v917 = vsub.s32 %v914, %v916
        %v918 = vrot.slane %v655, %v917
        %v920 = vunpack.c.l.s4 1983009808
        %v921 = vunpack.c.0.s8 %v920
        %v922 = vlaneseq
        %v923 = vshrl.u32 %v922, 7
        %v924 = vsub.s32 %v921, %v923
        %v925 = vrot.slane %v656, %v924
        %v927 = vunpack.c.l.s4 1983009808
        %v928 = vunpack.c.0.s8 %v927
        %v929 = vlaneseq
        %v930 = vshrl.u32 %v929, 7
        %v931 = vsub.s32 %v928, %v930
        %v932 = vrot.slane %v657, %v931
        %v933 = vunpack.c.l.b16 %v820
        %v934 = vunpack.c.l.b16 %v827
        %v935 = vunpack.c.l.b16 %v834
        %v936 = vunpack.c.l.b16 %v841
        %v937 = vunpack.c.l.b16 %v848
        %v938 = vunpack.c.l.b16 %v855
        %v939 = vunpack.c.l.b16 %v862
        %v940 = vunpack.c.l.b16 %v869
        %v941 = vunpack.c.l.b16 %v876
        %v942 = vunpack.c.l.b16 %v883
        %v943 = vunpack.c.l.b16 %v890
        %v944 = vunpack.c.l.b16 %v897
        %v945 = vunpack.c.l.b16 %v904
        %v946 = vunpack.c.l.b16 %v911
        %v947 = vunpack.c.l.b16 %v918
        %v948 = vunpack.c.l.b16 %v925
        %v949 = vunpack.c.l.b16 %v932
        %v950 = vrot.slane %v934, 7
        %v951 = vsel %vm761, %v950, %v933
        %v952 = vrot.slane %v935, 6
        %v953 = vsel %vm764, %v952, %v951
        %v954 = vrot.slane %v936, 5
        %v955 = vsel %vm767, %v954, %v953
        %v956 = vrot.slane %v937, 4
        %v957 = vsel %vm770, %v956, %v955
        %v958 = vrot.slane %v938, 3
        %v959 = vsel %vm773, %v958, %v957
        %v960 = vrot.slane %v939, 2
        %v961 = vsel %vm776, %v960, %v959
        %v962 = vrot.slane %v940, 1
        %v963 = vsel %vm779, %v962, %v961
        %v964 = vrot.slane %v942, 7
        %v965 = vsel %vm761, %v964, %v941
        %v966 = vrot.slane %v943, 6
        %v967 = vsel %vm764, %v966, %v965
        %v968 = vrot.slane %v944, 5
        %v969 = vsel %vm767, %v968, %v967
        %v970 = vrot.slane %v945, 4
        %v971 = vsel %vm770, %v970, %v969
        %v972 = vrot.slane %v946, 3
        %v973 = vsel %vm773, %v972, %v971
        %v974 = vrot.slane %v947, 2
        %v975 = vsel %vm776, %v974, %v973
        %v976 = vrot.slane %v948, 1
        %v977 = vsel %vm779, %v976, %v975
        %v978 = vpack.c.b16 %v977, %v963
        %v979 = vpack.c.b16 %v949, %v949
        %vm980 = vcmask 64512
        %v982 = vsel %vm980, %v795, 0
        %v985 = vsel %vm980, %v796, 0
        %v988 = vsel %vm980, %v978, 0
        %v991 = vsel %vm980, %v979, 0
        %993 = vmatprep.subr.bf16.mxu0 0
        %994 = vmatpush1.bf16.xpose.msra.mxu0 %v988
        %995 = vmatprep.subr.bf16.mxu0 0
        %996 = vmatpush1.bf16.xpose.msra.mxu0 %v991
        %997 = vmatprep.subr.bf16.mxu0 0
        %998 = vmatpush1.bf16.xpose.msra.mxu0 0
        %999 = vmatprep.subr.bf16.mxu0 0
        %1000 = vmatpush1.bf16.xpose.msra.mxu0 0
        %1001 = vmatprep.subr.bf16.mxu0 0
        %1002 = vmatpush1.bf16.xpose.msra.mxu0 0
        %1003 = vmatprep.subr.bf16.mxu0 0
        %1004 = vmatpush1.bf16.xpose.msra.mxu0 0
        %1005 = vmatprep.subr.bf16.mxu0 0
        %1006 = vmatpush1.bf16.xpose.msra.mxu0 0
        %1007 = vmatprep.subr.bf16.mxu0 0
        %1008 = vmatpush1.bf16.xpose.msra.mxu0 0
        %1009 = vmatprep.subr.bf16.mxu0 0
        %1010 = vmatpush1.bf16.xpose.msra.mxu0 0
        %1011 = vmatprep.subr.bf16.mxu0 0
        %1012 = vmatpush1.bf16.xpose.msra.mxu0 0
        %1013 = vmatprep.subr.bf16.mxu0 0
        %1014 = vmatpush1.bf16.xpose.msra.mxu0 0
        %1015 = vmatprep.subr.bf16.mxu0 0
        %1016 = vmatpush1.bf16.xpose.msra.mxu0 0
        %1017 = vmatprep.subr.bf16.mxu0 0
        %1018 = vmatpush1.bf16.xpose.msra.mxu0 0
        %1019 = vmatprep.subr.bf16.mxu0 0
        %1020 = vmatpush1.bf16.xpose.msra.mxu0 0
        %1021 = vmatprep.subr.bf16.mxu0 0
        %1022 = vmatpush1.bf16.xpose.msra.mxu0 0
        %1023 = vmatprep.subr.bf16.mxu0 0
        %1024 = vmatpush1.bf16.xpose.msra.mxu0 0
        %1025 = vmatprep.mubr.bf16.mxu0 0
        %1026 = vmatmul.mubr.bf16.gmra.mrb[0].mxu0 %v982
        %v1027 = vpop.f32.mrb[0].mxu0
        %v1028 = vadd.f32 0.0, %v1027
        %v1029 = vpop.f32.mrb[0].mxu0
        %v1030 = vpop.f32.mrb[0].mxu0
        %v1031 = vadd.f32 0.0, %v1030
        %v1032 = vpop.f32.mrb[0].mxu0
        %1033 = vmatprep.mubr.bf16.mxu0 0
        %1034 = vmatmul.mubr.bf16.gmra.mrb[0].mxu0 %v985
        %v1035 = vpop.f32.mrb[0].mxu0
        %v1036 = vadd.f32 0.0, %v1035
        %v1037 = vpop.f32.mrb[0].mxu0
        %v1038 = vpop.f32.mrb[0].mxu0
        %v1039 = vpop.f32.mrb[0].mxu0
        %1040 = vdwg.mxu0
        %v1041 = vld [vmem:[#allocation2] sm:$0xff]
        %v1042 = vld [vmem:[#allocation2 + $0x8] sm:$0xff]
        %v1043 = vld [vmem:[#allocation2 + $0x10] sm:$0x1]
        %vm1044 = vcmask 138240
        %v1045 = vsel %vm1044, %v1028, -inf
        %1046 = vmax.xlane.f32.xlu0 %v1045
        %v1047 = vpop.xlane.xlu0 %1046
        %v1048 = vsel %vm1044, %v1031, -inf
        %1049 = vmax.xlane.f32.xlu0 %v1048
        %v1050 = vpop.xlane.xlu0 %1049
        %vm1051 = vcmask 131072
        %v1052 = vsel %vm1051, %v1036, -inf
        %1053 = vmax.xlane.f32.xlu0 %v1052
        %v1054 = vpop.xlane.xlu0 %1053
        %v1055 = vmax.f32 %v1041, %v1047
        %v1056 = vmax.f32 %v1042, %v1050
        %v1057 = vmax.f32 %v1043, %v1054
        %v1058 = vsub.f32 %v1041, %v1055
        %v1059 = vsub.f32 %v1042, %v1056
        %v1060 = vsub.f32 %v1043, %v1057
        %v1061 = vmul.f32 %v1058, 1.442695
        %v1062 = vpow.pop %v1061
        %v1063 = vmul.f32 %v1059, 1.442695
        %v1064 = vpow.pop %v1063
        %v1065 = vmul.f32 %v1060, 1.442695
        %v1066 = vpow.pop %v1065
        %1068 = vset.pattern.permute.xlu0 0
        %1069 = vperm.xlu0 %1068, %v1055
        %v1070 = vpop.permute.xlu0 %1069
        %1073 = vset.pattern.permute.xlu0 0
        %1074 = vperm.xlu0 %1073, %v1056
        %v1075 = vpop.permute.xlu0 %1074
        %1078 = vset.pattern.permute.xlu0 0
        %1079 = vperm.xlu0 %1078, %v1057
        %v1080 = vpop.permute.xlu0 %1079
        %v1082 = vsub.f32 %v1028, %v1070
        %v1083 = vsub.f32 %v1031, %v1075
        %v1084 = vsub.f32 %v1036, %v1080
        %v1085 = vmul.f32 %v1082, 1.442695
        %v1086 = vpow.pop %v1085
        %v1087 = vmul.f32 %v1083, 1.442695
        %v1088 = vpow.pop %v1087
        %v1089 = vmul.f32 %v1084, 1.442695
        %v1090 = vpow.pop %v1089
        %v1091 = vld [vmem:[#allocation3] sm:$0xff]
        %v1092 = vld [vmem:[#allocation3 + $0x8] sm:$0xff]
        %v1093 = vld [vmem:[#allocation3 + $0x10] sm:$0x1]
        %v1094 = vmul.f32 %v1062, %v1091
        %v1095 = vmul.f32 %v1064, %v1092
        %v1096 = vmul.f32 %v1066, %v1093
        %v1097 = vsel %vm1044, %v1086, 0.0
        %1098 = vadd.xlane.f32.xlu0 %v1097
        %v1099 = vpop.xlane.xlu0 %1098
        %v1100 = vsel %vm1044, %v1088, 0.0
        %1101 = vadd.xlane.f32.xlu0 %v1100
        %v1102 = vpop.xlane.xlu0 %1101
        %v1103 = vsel %vm1051, %v1090, 0.0
        %1104 = vadd.xlane.f32.xlu0 %v1103
        %v1105 = vpop.xlane.xlu0 %1104
        %v1106 = vadd.f32 %v1094, %v1099
        %v1107 = vadd.f32 %v1095, %v1102
        %v1108 = vadd.f32 %v1096, %v1105
        %vm1109 = vcmask 7168
        %1110 = vst.msk [vmem:[#allocation3] sm:$0xff] %vm1109, %v1106
        %1111 = vst.msk [vmem:[#allocation3 + $0x8] sm:$0xff] %vm1109, %v1107
        %vm1112 = vcmask 0
        %1113 = vst.msk [vmem:[#allocation3 + $0x10] sm:$0x1] %vm1112, %v1108
        %v1114 = vld [vmem:[#allocation4] sm:$0xff]
        %v1115 = vld [vmem:[#allocation4 + $0x8] sm:$0xff]
        %v1116 = vld [vmem:[#allocation4 + $0x10] sm:$0x1]
        %1118 = vset.pattern.permute.xlu0 0
        %1119 = vperm.xlu0 %1118, %v1062
        %v1120 = vpop.permute.xlu0 %1119
        %1123 = vset.pattern.permute.xlu0 0
        %1124 = vperm.xlu0 %1123, %v1064
        %v1125 = vpop.permute.xlu0 %1124
        %1128 = vset.pattern.permute.xlu0 0
        %1129 = vperm.xlu0 %1128, %v1066
        %v1130 = vpop.permute.xlu0 %1129
        %v1132 = vmul.f32 %v1120, %v1114
        %v1133 = vmul.f32 %v1125, %v1115
        %v1134 = vmul.f32 %v1130, %v1116
        %v1135 = vpack.c.bf16 %v1088, %v1086
        %v1136 = vpack.c.bf16 %v1090, %v1090
        %v1155 = vunpack.c.l.s4 1983009808
        %v1156 = vunpack.c.0.s8 %v1155
        %v1157 = vlaneseq
        %v1158 = vshrl.u32 %v1157, 7
        %v1159 = vsub.s32 %v1156, %v1158
        %v1160 = vrot.slane %v658, %v1159
        %v1162 = vunpack.c.l.s4 1983009808
        %v1163 = vunpack.c.0.s8 %v1162
        %v1164 = vlaneseq
        %v1165 = vshrl.u32 %v1164, 7
        %v1166 = vsub.s32 %v1163, %v1165
        %v1167 = vrot.slane %v659, %v1166
        %v1169 = vunpack.c.l.s4 1983009808
        %v1170 = vunpack.c.0.s8 %v1169
        %v1171 = vlaneseq
        %v1172 = vshrl.u32 %v1171, 7
        %v1173 = vsub.s32 %v1170, %v1172
        %v1174 = vrot.slane %v660, %v1173
        %v1176 = vunpack.c.l.s4 1983009808
        %v1177 = vunpack.c.0.s8 %v1176
        %v1178 = vlaneseq
        %v1179 = vshrl.u32 %v1178, 7
        %v1180 = vsub.s32 %v1177, %v1179
        %v1181 = vrot.slane %v661, %v1180
        %v1183 = vunpack.c.l.s4 1983009808
        %v1184 = vunpack.c.0.s8 %v1183
        %v1185 = vlaneseq
        %v1186 = vshrl.u32 %v1185, 7
        %v1187 = vsub.s32 %v1184, %v1186
        %v1188 = vrot.slane %v662, %v1187
        %v1190 = vunpack.c.l.s4 1983009808
        %v1191 = vunpack.c.0.s8 %v1190
        %v1192 = vlaneseq
        %v1193 = vshrl.u32 %v1192, 7
        %v1194 = vsub.s32 %v1191, %v1193
        %v1195 = vrot.slane %v663, %v1194
        %v1197 = vunpack.c.l.s4 1983009808
        %v1198 = vunpack.c.0.s8 %v1197
        %v1199 = vlaneseq
        %v1200 = vshrl.u32 %v1199, 7
        %v1201 = vsub.s32 %v1198, %v1200
        %v1202 = vrot.slane %v664, %v1201
        %v1204 = vunpack.c.l.s4 1983009808
        %v1205 = vunpack.c.0.s8 %v1204
        %v1206 = vlaneseq
        %v1207 = vshrl.u32 %v1206, 7
        %v1208 = vsub.s32 %v1205, %v1207
        %v1209 = vrot.slane %v665, %v1208
        %v1211 = vunpack.c.l.s4 1983009808
        %v1212 = vunpack.c.0.s8 %v1211
        %v1213 = vlaneseq
        %v1214 = vshrl.u32 %v1213, 7
        %v1215 = vsub.s32 %v1212, %v1214
        %v1216 = vrot.slane %v666, %v1215
        %v1218 = vunpack.c.l.s4 1983009808
        %v1219 = vunpack.c.0.s8 %v1218
        %v1220 = vlaneseq
        %v1221 = vshrl.u32 %v1220, 7
        %v1222 = vsub.s32 %v1219, %v1221
        %v1223 = vrot.slane %v667, %v1222
        %v1225 = vunpack.c.l.s4 1983009808
        %v1226 = vunpack.c.0.s8 %v1225
        %v1227 = vlaneseq
        %v1228 = vshrl.u32 %v1227, 7
        %v1229 = vsub.s32 %v1226, %v1228
        %v1230 = vrot.slane %v668, %v1229
        %v1232 = vunpack.c.l.s4 1983009808
        %v1233 = vunpack.c.0.s8 %v1232
        %v1234 = vlaneseq
        %v1235 = vshrl.u32 %v1234, 7
        %v1236 = vsub.s32 %v1233, %v1235
        %v1237 = vrot.slane %v669, %v1236
        %v1239 = vunpack.c.l.s4 1983009808
        %v1240 = vunpack.c.0.s8 %v1239
        %v1241 = vlaneseq
        %v1242 = vshrl.u32 %v1241, 7
        %v1243 = vsub.s32 %v1240, %v1242
        %v1244 = vrot.slane %v670, %v1243
        %v1246 = vunpack.c.l.s4 1983009808
        %v1247 = vunpack.c.0.s8 %v1246
        %v1248 = vlaneseq
        %v1249 = vshrl.u32 %v1248, 7
        %v1250 = vsub.s32 %v1247, %v1249
        %v1251 = vrot.slane %v671, %v1250
        %v1253 = vunpack.c.l.s4 1983009808
        %v1254 = vunpack.c.0.s8 %v1253
        %v1255 = vlaneseq
        %v1256 = vshrl.u32 %v1255, 7
        %v1257 = vsub.s32 %v1254, %v1256
        %v1258 = vrot.slane %v672, %v1257
        %v1260 = vunpack.c.l.s4 1983009808
        %v1261 = vunpack.c.0.s8 %v1260
        %v1262 = vlaneseq
        %v1263 = vshrl.u32 %v1262, 7
        %v1264 = vsub.s32 %v1261, %v1263
        %v1265 = vrot.slane %v673, %v1264
        %v1267 = vunpack.c.l.s4 1983009808
        %v1268 = vunpack.c.0.s8 %v1267
        %v1269 = vlaneseq
        %v1270 = vshrl.u32 %v1269, 7
        %v1271 = vsub.s32 %v1268, %v1270
        %v1272 = vrot.slane %v674, %v1271
        %v1273 = vunpack.c.l.b16 %v1160
        %v1274 = vunpack.c.l.b16 %v1167
        %v1275 = vunpack.c.l.b16 %v1174
        %v1276 = vunpack.c.l.b16 %v1181
        %v1277 = vunpack.c.l.b16 %v1188
        %v1278 = vunpack.c.l.b16 %v1195
        %v1279 = vunpack.c.l.b16 %v1202
        %v1280 = vunpack.c.l.b16 %v1209
        %v1281 = vunpack.c.l.b16 %v1216
        %v1282 = vunpack.c.l.b16 %v1223
        %v1283 = vunpack.c.l.b16 %v1230
        %v1284 = vunpack.c.l.b16 %v1237
        %v1285 = vunpack.c.l.b16 %v1244
        %v1286 = vunpack.c.l.b16 %v1251
        %v1287 = vunpack.c.l.b16 %v1258
        %v1288 = vunpack.c.l.b16 %v1265
        %v1289 = vunpack.c.l.b16 %v1272
        %v1290 = vrot.slane %v1274, 7
        %v1291 = vsel %vm761, %v1290, %v1273
        %v1292 = vrot.slane %v1275, 6
        %v1293 = vsel %vm764, %v1292, %v1291
        %v1294 = vrot.slane %v1276, 5
        %v1295 = vsel %vm767, %v1294, %v1293
        %v1296 = vrot.slane %v1277, 4
        %v1297 = vsel %vm770, %v1296, %v1295
        %v1298 = vrot.slane %v1278, 3
        %v1299 = vsel %vm773, %v1298, %v1297
        %v1300 = vrot.slane %v1279, 2
        %v1301 = vsel %vm776, %v1300, %v1299
        %v1302 = vrot.slane %v1280, 1
        %v1303 = vsel %vm779, %v1302, %v1301
        %v1304 = vrot.slane %v1282, 7
        %v1305 = vsel %vm761, %v1304, %v1281
        %v1306 = vrot.slane %v1283, 6
        %v1307 = vsel %vm764, %v1306, %v1305
        %v1308 = vrot.slane %v1284, 5
        %v1309 = vsel %vm767, %v1308, %v1307
        %v1310 = vrot.slane %v1285, 4
        %v1311 = vsel %vm770, %v1310, %v1309
        %v1312 = vrot.slane %v1286, 3
        %v1313 = vsel %vm773, %v1312, %v1311
        %v1314 = vrot.slane %v1287, 2
        %v1315 = vsel %vm776, %v1314, %v1313
        %v1316 = vrot.slane %v1288, 1
        %v1317 = vsel %vm779, %v1316, %v1315
        %v1318 = vpack.c.b16 %v1317, %v1303
        %v1319 = vpack.c.b16 %v1289, %v1289
        %v1322 = vsel %vm1044, %v1135, 0
        %v1325 = vsel %vm1044, %v1136, 0
        %vm1327 = vcmask 1040384
        %v1328 = vsel 0, 4294967295, 65535
        %v1329 = vsel %vm1327, %v1328, 0
        %v1331 = vand.u32 %v1319, %v1329
        %1333 = vmatprep.subr.bf16.mxu0 0
        %1334 = vmatpush1.bf16.msra.mxu0 %v1318
        %1335 = vmatprep.subr.bf16.mxu0 0
        %1336 = vmatpush1.bf16.msra.mxu0 %v1331
        %1337 = vmatprep.subr.bf16.mxu0 0
        %1338 = vmatpush1.bf16.msra.mxu0 0
        %1339 = vmatprep.subr.bf16.mxu0 0
        %1340 = vmatpush1.bf16.msra.mxu0 0
        %1341 = vmatprep.subr.bf16.mxu0 0
        %1342 = vmatpush1.bf16.msra.mxu0 0
        %1343 = vmatprep.subr.bf16.mxu0 0
        %1344 = vmatpush1.bf16.msra.mxu0 0
        %1345 = vmatprep.subr.bf16.mxu0 0
        %1346 = vmatpush1.bf16.msra.mxu0 0
        %1347 = vmatprep.subr.bf16.mxu0 0
        %1348 = vmatpush1.bf16.msra.mxu0 0
        %1349 = vmatprep.subr.bf16.mxu0 0
        %1350 = vmatpush1.bf16.msra.mxu0 0
        %1351 = vmatprep.subr.bf16.mxu0 0
        %1352 = vmatpush1.bf16.msra.mxu0 0
        %1353 = vmatprep.subr.bf16.mxu0 0
        %1354 = vmatpush1.bf16.msra.mxu0 0
        %1355 = vmatprep.subr.bf16.mxu0 0
        %1356 = vmatpush1.bf16.msra.mxu0 0
        %1357 = vmatprep.subr.bf16.mxu0 0
        %1358 = vmatpush1.bf16.msra.mxu0 0
        %1359 = vmatprep.subr.bf16.mxu0 0
        %1360 = vmatpush1.bf16.msra.mxu0 0
        %1361 = vmatprep.subr.bf16.mxu0 0
        %1362 = vmatpush1.bf16.msra.mxu0 0
        %1363 = vmatprep.subr.bf16.mxu0 0
        %1364 = vmatpush1.bf16.msra.mxu0 0
        %1365 = vmatprep.mubr.bf16.mxu0 0
        %1366 = vmatmul.mubr.bf16.gmra.mrb[0].mxu0 %v1322
        %v1367 = vpop.f32.mrb[0].mxu0
        %v1368 = vadd.f32 0.0, %v1367
        %v1369 = vpop.f32.mrb[0].mxu0
        %v1370 = vpop.f32.mrb[0].mxu0
        %v1371 = vadd.f32 0.0, %v1370
        %v1372 = vpop.f32.mrb[0].mxu0
        %1373 = vmatprep.mubr.bf16.mxu0 0
        %1374 = vmatmul.mubr.bf16.gmra.mrb[0].mxu0 %v1325
        %v1375 = vpop.f32.mrb[0].mxu0
        %v1376 = vadd.f32 0.0, %v1375
        %v1377 = vpop.f32.mrb[0].mxu0
        %v1378 = vpop.f32.mrb[0].mxu0
        %v1379 = vpop.f32.mrb[0].mxu0
        %1380 = vdwg.mxu0
        %v1381 = vadd.f32 %v1132, %v1368
        %v1382 = vadd.f32 %v1133, %v1371
        %v1383 = vadd.f32 %v1134, %v1376
        %1384 = vst.msk [vmem:[#allocation4] sm:$0xff] %vm980, %v1381
        %1385 = vst.msk [vmem:[#allocation4 + $0x8] sm:$0xff] %vm980, %v1382
        %vm1386 = vcmask 57344
        %1387 = vst.msk [vmem:[#allocation4 + $0x10] sm:$0x1] %vm1386, %v1383
        %1388 = vst.msk [vmem:[#allocation2] sm:$0xff] %vm1109, %v1055
        %1389 = vst.msk [vmem:[#allocation2 + $0x8] sm:$0xff] %vm1109, %v1056
        %1390 = vst.msk [vmem:[#allocation2 + $0x10] sm:$0x1] %vm1112, %v1057
        %v1391 = vrot.slane %v743, 1
        %v1392 = vsel %vm761, %v744, %v1391
        %v1393 = vrot.slane %v745, 7
        %v1394 = vsel %vm764, %v1393, %v1392
        %v1395 = vrot.slane %v746, 6
        %v1396 = vsel %vm767, %v1395, %v1394
        %v1397 = vrot.slane %v747, 5
        %v1398 = vsel %vm770, %v1397, %v1396
        %v1399 = vrot.slane %v748, 4
        %v1400 = vsel %vm773, %v1399, %v1398
        %v1401 = vrot.slane %v749, 3
        %v1402 = vsel %vm776, %v1401, %v1400
        %v1403 = vrot.slane %v750, 2
        %v1404 = vsel %vm779, %v1403, %v1402
        %v1405 = vrot.slane %v751, 1
        %v1406 = vsel %vm761, %v752, %v1405
        %v1407 = vrot.slane %v753, 7
        %v1408 = vsel %vm764, %v1407, %v1406
        %v1409 = vrot.slane %v754, 6
        %v1410 = vsel %vm767, %v1409, %v1408
        %v1411 = vrot.slane %v755, 5
        %v1412 = vsel %vm770, %v1411, %v1410
        %v1413 = vrot.slane %v756, 4
        %v1414 = vsel %vm773, %v1413, %v1412
        %v1415 = vrot.slane %v757, 3
        %v1416 = vsel %vm776, %v1415, %v1414
        %v1417 = vrot.slane %v758, 2
        %v1418 = vsel %vm779, %v1417, %v1416
        %v1419 = vrot.slane %v759, 1
        %v1420 = vpack.c.b16 %v1418, %v1404
        %v1421 = vpack.c.b16 %v1419, %v1419
        %v1422 = vrot.slane %v933, 1
        %v1423 = vsel %vm761, %v934, %v1422
        %v1424 = vrot.slane %v935, 7
        %v1425 = vsel %vm764, %v1424, %v1423
        %v1426 = vrot.slane %v936, 6
        %v1427 = vsel %vm767, %v1426, %v1425
        %v1428 = vrot.slane %v937, 5
        %v1429 = vsel %vm770, %v1428, %v1427
        %v1430 = vrot.slane %v938, 4
        %v1431 = vsel %vm773, %v1430, %v1429
        %v1432 = vrot.slane %v939, 3
        %v1433 = vsel %vm776, %v1432, %v1431
        %v1434 = vrot.slane %v940, 2
        %v1435 = vsel %vm779, %v1434, %v1433
        %v1436 = vrot.slane %v941, 1
        %v1437 = vsel %vm761, %v942, %v1436
        %v1438 = vrot.slane %v943, 7
        %v1439 = vsel %vm764, %v1438, %v1437
        %v1440 = vrot.slane %v944, 6
        %v1441 = vsel %vm767, %v1440, %v1439
        %v1442 = vrot.slane %v945, 5
        %v1443 = vsel %vm770, %v1442, %v1441
        %v1444 = vrot.slane %v946, 4
        %v1445 = vsel %vm773, %v1444, %v1443
        %v1446 = vrot.slane %v947, 3
        %v1447 = vsel %vm776, %v1446, %v1445
        %v1448 = vrot.slane %v948, 2
        %v1449 = vsel %vm779, %v1448, %v1447
        %v1450 = vrot.slane %v949, 1
        %v1451 = vpack.c.b16 %v1449, %v1435
        %v1452 = vpack.c.b16 %v1450, %v1450
        %v1454 = vsel %vm980, %v1420, 0
        %v1457 = vsel %vm980, %v1421, 0
        %v1460 = vsel %vm980, %v1451, 0
        %v1463 = vsel %vm980, %v1452, 0
        %1465 = vmatprep.subr.bf16.mxu0 0
        %1466 = vmatpush1.bf16.xpose.msra.mxu0 %v1460
        %1467 = vmatprep.subr.bf16.mxu0 0
        %1468 = vmatpush1.bf16.xpose.msra.mxu0 %v1463
        %1469 = vmatprep.subr.bf16.mxu0 0
        %1470 = vmatpush1.bf16.xpose.msra.mxu0 0
        %1471 = vmatprep.subr.bf16.mxu0 0
        %1472 = vmatpush1.bf16.xpose.msra.mxu0 0
        %1473 = vmatprep.subr.bf16.mxu0 0
        %1474 = vmatpush1.bf16.xpose.msra.mxu0 0
        %1475 = vmatprep.subr.bf16.mxu0 0
        %1476 = vmatpush1.bf16.xpose.msra.mxu0 0
        %1477 = vmatprep.subr.bf16.mxu0 0
        %1478 = vmatpush1.bf16.xpose.msra.mxu0 0
        %1479 = vmatprep.subr.bf16.mxu0 0
        %1480 = vmatpush1.bf16.xpose.msra.mxu0 0
        %1481 = vmatprep.subr.bf16.mxu0 0
        %1482 = vmatpush1.bf16.xpose.msra.mxu0 0
        %1483 = vmatprep.subr.bf16.mxu0 0
        %1484 = vmatpush1.bf16.xpose.msra.mxu0 0
        %1485 = vmatprep.subr.bf16.mxu0 0
        %1486 = vmatpush1.bf16.xpose.msra.mxu0 0
        %1487 = vmatprep.subr.bf16.mxu0 0
        %1488 = vmatpush1.bf16.xpose.msra.mxu0 0
        %1489 = vmatprep.subr.bf16.mxu0 0
        %1490 = vmatpush1.bf16.xpose.msra.mxu0 0
        %1491 = vmatprep.subr.bf16.mxu0 0
        %1492 = vmatpush1.bf16.xpose.msra.mxu0 0
        %1493 = vmatprep.subr.bf16.mxu0 0
        %1494 = vmatpush1.bf16.xpose.msra.mxu0 0
        %1495 = vmatprep.subr.bf16.mxu0 0
        %1496 = vmatpush1.bf16.xpose.msra.mxu0 0
        %1497 = vmatprep.mubr.bf16.mxu0 0
        %1498 = vmatmul.mubr.bf16.gmra.mrb[0].mxu0 %v1454
        %v1499 = vpop.f32.mrb[0].mxu0
        %v1500 = vadd.f32 0.0, %v1499
        %v1501 = vpop.f32.mrb[0].mxu0
        %v1502 = vpop.f32.mrb[0].mxu0
        %v1503 = vadd.f32 0.0, %v1502
        %v1504 = vpop.f32.mrb[0].mxu0
        %1505 = vmatprep.mubr.bf16.mxu0 0
        %1506 = vmatmul.mubr.bf16.gmra.mrb[0].mxu0 %v1457
        %v1507 = vpop.f32.mrb[0].mxu0
        %v1508 = vadd.f32 0.0, %v1507
        %v1509 = vpop.f32.mrb[0].mxu0
        %v1510 = vpop.f32.mrb[0].mxu0
        %v1511 = vpop.f32.mrb[0].mxu0
        %1512 = vdwg.mxu0
        %s1513 = scalar_lea.vmem [#allocation2], 24
        %v1514 = vld [vmem:[%s1513] sm:$0xff]
        %v1515 = vld [vmem:[%s1513 + $0x8] sm:$0xff]
        %v1516 = vld [vmem:[%s1513 + $0x10] sm:$0x1]
        %v1517 = vsel %vm1044, %v1500, -inf
        %1518 = vmax.xlane.f32.xlu0 %v1517
        %v1519 = vpop.xlane.xlu0 %1518
        %v1520 = vsel %vm1044, %v1503, -inf
        %1521 = vmax.xlane.f32.xlu0 %v1520
        %v1522 = vpop.xlane.xlu0 %1521
        %v1523 = vsel %vm1051, %v1508, -inf
        %1524 = vmax.xlane.f32.xlu0 %v1523
        %v1525 = vpop.xlane.xlu0 %1524
        %v1526 = vmax.f32 %v1514, %v1519
        %v1527 = vmax.f32 %v1515, %v1522
        %v1528 = vmax.f32 %v1516, %v1525
        %v1529 = vsub.f32 %v1514, %v1526
        %v1530 = vsub.f32 %v1515, %v1527
        %v1531 = vsub.f32 %v1516, %v1528
        %v1532 = vmul.f32 %v1529, 1.442695
        %v1533 = vpow.pop %v1532
        %v1534 = vmul.f32 %v1530, 1.442695
        %v1535 = vpow.pop %v1534
        %v1536 = vmul.f32 %v1531, 1.442695
        %v1537 = vpow.pop %v1536
        %1539 = vset.pattern.permute.xlu0 0
        %1540 = vperm.xlu0 %1539, %v1526
        %v1541 = vpop.permute.xlu0 %1540
        %1544 = vset.pattern.permute.xlu0 0
        %1545 = vperm.xlu0 %1544, %v1527
        %v1546 = vpop.permute.xlu0 %1545
        %1549 = vset.pattern.permute.xlu0 0
        %1550 = vperm.xlu0 %1549, %v1528
        %v1551 = vpop.permute.xlu0 %1550
        %v1553 = vsub.f32 %v1500, %v1541
        %v1554 = vsub.f32 %v1503, %v1546
        %v1555 = vsub.f32 %v1508, %v1551
        %v1556 = vmul.f32 %v1553, 1.442695
        %v1557 = vpow.pop %v1556
        %v1558 = vmul.f32 %v1554, 1.442695
        %v1559 = vpow.pop %v1558
        %v1560 = vmul.f32 %v1555, 1.442695
        %v1561 = vpow.pop %v1560
        %s1562 = scalar_lea.vmem [#allocation3], 24
        %v1563 = vld [vmem:[%s1562] sm:$0xff]
        %v1564 = vld [vmem:[%s1562 + $0x8] sm:$0xff]
        %v1565 = vld [vmem:[%s1562 + $0x10] sm:$0x1]
        %v1566 = vmul.f32 %v1533, %v1563
        %v1567 = vmul.f32 %v1535, %v1564
        %v1568 = vmul.f32 %v1537, %v1565
        %v1569 = vsel %vm1044, %v1557, 0.0
        %1570 = vadd.xlane.f32.xlu0 %v1569
        %v1571 = vpop.xlane.xlu0 %1570
        %v1572 = vsel %vm1044, %v1559, 0.0
        %1573 = vadd.xlane.f32.xlu0 %v1572
        %v1574 = vpop.xlane.xlu0 %1573
        %v1575 = vsel %vm1051, %v1561, 0.0
        %1576 = vadd.xlane.f32.xlu0 %v1575
        %v1577 = vpop.xlane.xlu0 %1576
        %v1578 = vadd.f32 %v1566, %v1571
        %v1579 = vadd.f32 %v1567, %v1574
        %v1580 = vadd.f32 %v1568, %v1577
        %1581 = vst.msk [vmem:[%s1562] sm:$0xff] %vm1109, %v1578
        %1582 = vst.msk [vmem:[%s1562 + $0x8] sm:$0xff] %vm1109, %v1579
        %1583 = vst.msk [vmem:[%s1562 + $0x10] sm:$0x1] %vm1112, %v1580
        %s1584 = scalar_lea.vmem [#allocation4], 24
        %v1585 = vld [vmem:[%s1584] sm:$0xff]
        %v1586 = vld [vmem:[%s1584 + $0x8] sm:$0xff]
        %v1587 = vld [vmem:[%s1584 + $0x10] sm:$0x1]
        %1589 = vset.pattern.permute.xlu0 0
        %1590 = vperm.xlu0 %1589, %v1533
        %v1591 = vpop.permute.xlu0 %1590
        %1594 = vset.pattern.permute.xlu0 0
        %1595 = vperm.xlu0 %1594, %v1535
        %v1596 = vpop.permute.xlu0 %1595
        %1599 = vset.pattern.permute.xlu0 0
        %1600 = vperm.xlu0 %1599, %v1537
        %v1601 = vpop.permute.xlu0 %1600
        %v1603 = vmul.f32 %v1591, %v1585
        %v1604 = vmul.f32 %v1596, %v1586
        %v1605 = vmul.f32 %v1601, %v1587
        %v1606 = vpack.c.bf16 %v1559, %v1557
        %v1607 = vpack.c.bf16 %v1561, %v1561
        %v1608 = vrot.slane %v1273, 1
        %v1609 = vsel %vm761, %v1274, %v1608
        %v1610 = vrot.slane %v1275, 7
        %v1611 = vsel %vm764, %v1610, %v1609
        %v1612 = vrot.slane %v1276, 6
        %v1613 = vsel %vm767, %v1612, %v1611
        %v1614 = vrot.slane %v1277, 5
        %v1615 = vsel %vm770, %v1614, %v1613
        %v1616 = vrot.slane %v1278, 4
        %v1617 = vsel %vm773, %v1616, %v1615
        %v1618 = vrot.slane %v1279, 3
        %v1619 = vsel %vm776, %v1618, %v1617
        %v1620 = vrot.slane %v1280, 2
        %v1621 = vsel %vm779, %v1620, %v1619
        %v1622 = vrot.slane %v1281, 1
        %v1623 = vsel %vm761, %v1282, %v1622
        %v1624 = vrot.slane %v1283, 7
        %v1625 = vsel %vm764, %v1624, %v1623
        %v1626 = vrot.slane %v1284, 6
        %v1627 = vsel %vm767, %v1626, %v1625
        %v1628 = vrot.slane %v1285, 5
        %v1629 = vsel %vm770, %v1628, %v1627
        %v1630 = vrot.slane %v1286, 4
        %v1631 = vsel %vm773, %v1630, %v1629
        %v1632 = vrot.slane %v1287, 3
        %v1633 = vsel %vm776, %v1632, %v1631
        %v1634 = vrot.slane %v1288, 2
        %v1635 = vsel %vm779, %v1634, %v1633
        %v1636 = vrot.slane %v1289, 1
        %v1637 = vpack.c.b16 %v1635, %v1621
        %v1638 = vpack.c.b16 %v1636, %v1636
        %v1641 = vsel %vm1044, %v1606, 0
        %v1644 = vsel %vm1044, %v1607, 0
        %v1647 = vand.u32 %v1638, %v1329
        %1649 = vmatprep.subr.bf16.mxu0 0
        %1650 = vmatpush1.bf16.msra.mxu0 %v1637
        %1651 = vmatprep.subr.bf16.mxu0 0
        %1652 = vmatpush1.bf16.msra.mxu0 %v1647
        %1653 = vmatprep.subr.bf16.mxu0 0
        %1654 = vmatpush1.bf16.msra.mxu0 0
        %1655 = vmatprep.subr.bf16.mxu0 0
        %1656 = vmatpush1.bf16.msra.mxu0 0
        %1657 = vmatprep.subr.bf16.mxu0 0
        %1658 = vmatpush1.bf16.msra.mxu0 0
        %1659 = vmatprep.subr.bf16.mxu0 0
        %1660 = vmatpush1.bf16.msra.mxu0 0
        %1661 = vmatprep.subr.bf16.mxu0 0
        %1662 = vmatpush1.bf16.msra.mxu0 0
        %1663 = vmatprep.subr.bf16.mxu0 0
        %1664 = vmatpush1.bf16.msra.mxu0 0
        %1665 = vmatprep.subr.bf16.mxu0 0
        %1666 = vmatpush1.bf16.msra.mxu0 0
        %1667 = vmatprep.subr.bf16.mxu0 0
        %1668 = vmatpush1.bf16.msra.mxu0 0
        %1669 = vmatprep.subr.bf16.mxu0 0
        %1670 = vmatpush1.bf16.msra.mxu0 0
        %1671 = vmatprep.subr.bf16.mxu0 0
        %1672 = vmatpush1.bf16.msra.mxu0 0
        %1673 = vmatprep.subr.bf16.mxu0 0
        %1674 = vmatpush1.bf16.msra.mxu0 0
        %1675 = vmatprep.subr.bf16.mxu0 0
        %1676 = vmatpush1.bf16.msra.mxu0 0
        %1677 = vmatprep.subr.bf16.mxu0 0
        %1678 = vmatpush1.bf16.msra.mxu0 0
        %1679 = vmatprep.subr.bf16.mxu0 0
        %1680 = vmatpush1.bf16.msra.mxu0 0
        %1681 = vmatprep.mubr.bf16.mxu0 0
        %1682 = vmatmul.mubr.bf16.gmra.mrb[0].mxu0 %v1641
        %v1683 = vpop.f32.mrb[0].mxu0
        %v1684 = vadd.f32 0.0, %v1683
        %v1685 = vpop.f32.mrb[0].mxu0
        %v1686 = vpop.f32.mrb[0].mxu0
        %v1687 = vadd.f32 0.0, %v1686
        %v1688 = vpop.f32.mrb[0].mxu0
        %1689 = vmatprep.mubr.bf16.mxu0 0
        %1690 = vmatmul.mubr.bf16.gmra.mrb[0].mxu0 %v1644
        %v1691 = vpop.f32.mrb[0].mxu0
        %v1692 = vadd.f32 0.0, %v1691
        %v1693 = vpop.f32.mrb[0].mxu0
        %v1694 = vpop.f32.mrb[0].mxu0
        %v1695 = vpop.f32.mrb[0].mxu0
        %1696 = vdwg.mxu0
        %v1697 = vadd.f32 %v1603, %v1684
        %v1698 = vadd.f32 %v1604, %v1687
        %v1699 = vadd.f32 %v1605, %v1692
        %1700 = vst.msk [vmem:[%s1584] sm:$0xff] %vm980, %v1697
        %1701 = vst.msk [vmem:[%s1584 + $0x8] sm:$0xff] %vm980, %v1698
        %1702 = vst.msk [vmem:[%s1584 + $0x10] sm:$0x1] %vm1386, %v1699
        %1703 = vst.msk [vmem:[%s1513] sm:$0xff] %vm1109, %v1526
        %1704 = vst.msk [vmem:[%s1513 + $0x8] sm:$0xff] %vm1109, %v1527
        %1705 = vst.msk [vmem:[%s1513 + $0x10] sm:$0x1] %vm1112, %v1528
        %v1706 = vrot.slane %v743, 2
        %v1707 = vrot.slane %v744, 1
        %v1708 = vsel %vm761, %v1707, %v1706
        %v1709 = vsel %vm764, %v745, %v1708
        %v1710 = vrot.slane %v746, 7
        %v1711 = vsel %vm767, %v1710, %v1709
        %v1712 = vrot.slane %v747, 6
        %v1713 = vsel %vm770, %v1712, %v1711
        %v1714 = vrot.slane %v748, 5
        %v1715 = vsel %vm773, %v1714, %v1713
        %v1716 = vrot.slane %v749, 4
        %v1717 = vsel %vm776, %v1716, %v1715
        %v1718 = vrot.slane %v750, 3
        %v1719 = vsel %vm779, %v1718, %v1717
        %v1720 = vrot.slane %v751, 2
        %v1721 = vrot.slane %v752, 1
        %v1722 = vsel %vm761, %v1721, %v1720
        %v1723 = vsel %vm764, %v753, %v1722
        %v1724 = vrot.slane %v754, 7
        %v1725 = vsel %vm767, %v1724, %v1723
        %v1726 = vrot.slane %v755, 6
        %v1727 = vsel %vm770, %v1726, %v1725
        %v1728 = vrot.slane %v756, 5
        %v1729 = vsel %vm773, %v1728, %v1727
        %v1730 = vrot.slane %v757, 4
        %v1731 = vsel %vm776, %v1730, %v1729
        %v1732 = vrot.slane %v758, 3
        %v1733 = vsel %vm779, %v1732, %v1731
        %v1734 = vrot.slane %v759, 2
        %v1735 = vpack.c.b16 %v1733, %v1719
        %v1736 = vpack.c.b16 %v1734, %v1734
        %v1737 = vrot.slane %v933, 2
        %v1738 = vrot.slane %v934, 1
        %v1739 = vsel %vm761, %v1738, %v1737
        %v1740 = vsel %vm764, %v935, %v1739
        %v1741 = vrot.slane %v936, 7
        %v1742 = vsel %vm767, %v1741, %v1740
        %v1743 = vrot.slane %v937, 6
        %v1744 = vsel %vm770, %v1743, %v1742
        %v1745 = vrot.slane %v938, 5
        %v1746 = vsel %vm773, %v1745, %v1744
        %v1747 = vrot.slane %v939, 4
        %v1748 = vsel %vm776, %v1747, %v1746
        %v1749 = vrot.slane %v940, 3
        %v1750 = vsel %vm779, %v1749, %v1748
        %v1751 = vrot.slane %v941, 2
        %v1752 = vrot.slane %v942, 1
        %v1753 = vsel %vm761, %v1752, %v1751
        %v1754 = vsel %vm764, %v943, %v1753
        %v1755 = vrot.slane %v944, 7
        %v1756 = vsel %vm767, %v1755, %v1754
        %v1757 = vrot.slane %v945, 6
        %v1758 = vsel %vm770, %v1757, %v1756
        %v1759 = vrot.slane %v946, 5
        %v1760 = vsel %vm773, %v1759, %v1758
        %v1761 = vrot.slane %v947, 4
        %v1762 = vsel %vm776, %v1761, %v1760
        %v1763 = vrot.slane %v948, 3
        %v1764 = vsel %vm779, %v1763, %v1762
        %v1765 = vrot.slane %v949, 2
        %v1766 = vpack.c.b16 %v1764, %v1750
        %v1767 = vpack.c.b16 %v1765, %v1765
        %v1769 = vsel %vm980, %v1735, 0
        %v1772 = vsel %vm980, %v1736, 0
        %v1775 = vsel %vm980, %v1766, 0
        %v1778 = vsel %vm980, %v1767, 0
        %1780 = vmatprep.subr.bf16.mxu0 0
        %1781 = vmatpush1.bf16.xpose.msra.mxu0 %v1775
        %1782 = vmatprep.subr.bf16.mxu0 0
        %1783 = vmatpush1.bf16.xpose.msra.mxu0 %v1778
        %1784 = vmatprep.subr.bf16.mxu0 0
        %1785 = vmatpush1.bf16.xpose.msra.mxu0 0
        %1786 = vmatprep.subr.bf16.mxu0 0
        %1787 = vmatpush1.bf16.xpose.msra.mxu0 0
        %1788 = vmatprep.subr.bf16.mxu0 0
        %1789 = vmatpush1.bf16.xpose.msra.mxu0 0
        %1790 = vmatprep.subr.bf16.mxu0 0
        %1791 = vmatpush1.bf16.xpose.msra.mxu0 0
        %1792 = vmatprep.subr.bf16.mxu0 0
        %1793 = vmatpush1.bf16.xpose.msra.mxu0 0
        %1794 = vmatprep.subr.bf16.mxu0 0
        %1795 = vmatpush1.bf16.xpose.msra.mxu0 0
        %1796 = vmatprep.subr.bf16.mxu0 0
        %1797 = vmatpush1.bf16.xpose.msra.mxu0 0
        %1798 = vmatprep.subr.bf16.mxu0 0
        %1799 = vmatpush1.bf16.xpose.msra.mxu0 0
        %1800 = vmatprep.subr.bf16.mxu0 0
        %1801 = vmatpush1.bf16.xpose.msra.mxu0 0
        %1802 = vmatprep.subr.bf16.mxu0 0
        %1803 = vmatpush1.bf16.xpose.msra.mxu0 0
        %1804 = vmatprep.subr.bf16.mxu0 0
        %1805 = vmatpush1.bf16.xpose.msra.mxu0 0
        %1806 = vmatprep.subr.bf16.mxu0 0
        %1807 = vmatpush1.bf16.xpose.msra.mxu0 0
        %1808 = vmatprep.subr.bf16.mxu0 0
        %1809 = vmatpush1.bf16.xpose.msra.mxu0 0
        %1810 = vmatprep.subr.bf16.mxu0 0
        %1811 = vmatpush1.bf16.xpose.msra.mxu0 0
        %1812 = vmatprep.mubr.bf16.mxu0 0
        %1813 = vmatmul.mubr.bf16.gmra.mrb[0].mxu0 %v1769
        %v1814 = vpop.f32.mrb[0].mxu0
        %v1815 = vadd.f32 0.0, %v1814
        %v1816 = vpop.f32.mrb[0].mxu0
        %v1817 = vpop.f32.mrb[0].mxu0
        %v1818 = vadd.f32 0.0, %v1817
        %v1819 = vpop.f32.mrb[0].mxu0
        %1820 = vmatprep.mubr.bf16.mxu0 0
        %1821 = vmatmul.mubr.bf16.gmra.mrb[0].mxu0 %v1772
        %v1822 = vpop.f32.mrb[0].mxu0
        %v1823 = vadd.f32 0.0, %v1822
        %v1824 = vpop.f32.mrb[0].mxu0
        %v1825 = vpop.f32.mrb[0].mxu0
        %v1826 = vpop.f32.mrb[0].mxu0
        %1827 = vdwg.mxu0
        %s1828 = scalar_lea.vmem [#allocation2], 48
        %v1829 = vld [vmem:[%s1828] sm:$0xff]
        %v1830 = vld [vmem:[%s1828 + $0x8] sm:$0xff]
        %v1831 = vld [vmem:[%s1828 + $0x10] sm:$0x1]
        %v1832 = vsel %vm1044, %v1815, -inf
        %1833 = vmax.xlane.f32.xlu0 %v1832
        %v1834 = vpop.xlane.xlu0 %1833
        %v1835 = vsel %vm1044, %v1818, -inf
        %1836 = vmax.xlane.f32.xlu0 %v1835
        %v1837 = vpop.xlane.xlu0 %1836
        %v1838 = vsel %vm1051, %v1823, -inf
        %1839 = vmax.xlane.f32.xlu0 %v1838
        %v1840 = vpop.xlane.xlu0 %1839
        %v1841 = vmax.f32 %v1829, %v1834
        %v1842 = vmax.f32 %v1830, %v1837
        %v1843 = vmax.f32 %v1831, %v1840
        %v1844 = vsub.f32 %v1829, %v1841
        %v1845 = vsub.f32 %v1830, %v1842
        %v1846 = vsub.f32 %v1831, %v1843
        %v1847 = vmul.f32 %v1844, 1.442695
        %v1848 = vpow.pop %v1847
        %v1849 = vmul.f32 %v1845, 1.442695
        %v1850 = vpow.pop %v1849
        %v1851 = vmul.f32 %v1846, 1.442695
        %v1852 = vpow.pop %v1851
        %1854 = vset.pattern.permute.xlu0 0
        %1855 = vperm.xlu0 %1854, %v1841
        %v1856 = vpop.permute.xlu0 %1855
        %1859 = vset.pattern.permute.xlu0 0
        %1860 = vperm.xlu0 %1859, %v1842
        %v1861 = vpop.permute.xlu0 %1860
        %1864 = vset.pattern.permute.xlu0 0
        %1865 = vperm.xlu0 %1864, %v1843
        %v1866 = vpop.permute.xlu0 %1865
        %v1868 = vsub.f32 %v1815, %v1856
        %v1869 = vsub.f32 %v1818, %v1861
        %v1870 = vsub.f32 %v1823, %v1866
        %v1871 = vmul.f32 %v1868, 1.442695
        %v1872 = vpow.pop %v1871
        %v1873 = vmul.f32 %v1869, 1.442695
        %v1874 = vpow.pop %v1873
        %v1875 = vmul.f32 %v1870, 1.442695
        %v1876 = vpow.pop %v1875
        %s1877 = scalar_lea.vmem [#allocation3], 48
        %v1878 = vld [vmem:[%s1877] sm:$0xff]
        %v1879 = vld [vmem:[%s1877 + $0x8] sm:$0xff]
        %v1880 = vld [vmem:[%s1877 + $0x10] sm:$0x1]
        %v1881 = vmul.f32 %v1848, %v1878
        %v1882 = vmul.f32 %v1850, %v1879
        %v1883 = vmul.f32 %v1852, %v1880
        %v1884 = vsel %vm1044, %v1872, 0.0
        %1885 = vadd.xlane.f32.xlu0 %v1884
        %v1886 = vpop.xlane.xlu0 %1885
        %v1887 = vsel %vm1044, %v1874, 0.0
        %1888 = vadd.xlane.f32.xlu0 %v1887
        %v1889 = vpop.xlane.xlu0 %1888
        %v1890 = vsel %vm1051, %v1876, 0.0
        %1891 = vadd.xlane.f32.xlu0 %v1890
        %v1892 = vpop.xlane.xlu0 %1891
        %v1893 = vadd.f32 %v1881, %v1886
        %v1894 = vadd.f32 %v1882, %v1889
        %v1895 = vadd.f32 %v1883, %v1892
        %1896 = vst.msk [vmem:[%s1877] sm:$0xff] %vm1109, %v1893
        %1897 = vst.msk [vmem:[%s1877 + $0x8] sm:$0xff] %vm1109, %v1894
        %1898 = vst.msk [vmem:[%s1877 + $0x10] sm:$0x1] %vm1112, %v1895
        %s1899 = scalar_lea.vmem [#allocation4], 48
        %v1900 = vld [vmem:[%s1899] sm:$0xff]
        %v1901 = vld [vmem:[%s1899 + $0x8] sm:$0xff]
        %v1902 = vld [vmem:[%s1899 + $0x10] sm:$0x1]
        %1904 = vset.pattern.permute.xlu0 0
        %1905 = vperm.xlu0 %1904, %v1848
        %v1906 = vpop.permute.xlu0 %1905
        %1909 = vset.pattern.permute.xlu0 0
        %1910 = vperm.xlu0 %1909, %v1850
        %v1911 = vpop.permute.xlu0 %1910
        %1914 = vset.pattern.permute.xlu0 0
        %1915 = vperm.xlu0 %1914, %v1852
        %v1916 = vpop.permute.xlu0 %1915
        %v1918 = vmul.f32 %v1906, %v1900
        %v1919 = vmul.f32 %v1911, %v1901
        %v1920 = vmul.f32 %v1916, %v1902
        %v1921 = vpack.c.bf16 %v1874, %v1872
        %v1922 = vpack.c.bf16 %v1876, %v1876
        %v1923 = vrot.slane %v1273, 2
        %v1924 = vrot.slane %v1274, 1
        %v1925 = vsel %vm761, %v1924, %v1923
        %v1926 = vsel %vm764, %v1275, %v1925
        %v1927 = vrot.slane %v1276, 7
        %v1928 = vsel %vm767, %v1927, %v1926
        %v1929 = vrot.slane %v1277, 6
        %v1930 = vsel %vm770, %v1929, %v1928
        %v1931 = vrot.slane %v1278, 5
        %v1932 = vsel %vm773, %v1931, %v1930
        %v1933 = vrot.slane %v1279, 4
        %v1934 = vsel %vm776, %v1933, %v1932
        %v1935 = vrot.slane %v1280, 3
        %v1936 = vsel %vm779, %v1935, %v1934
        %v1937 = vrot.slane %v1281, 2
        %v1938 = vrot.slane %v1282, 1
        %v1939 = vsel %vm761, %v1938, %v1937
        %v1940 = vsel %vm764, %v1283, %v1939
        %v1941 = vrot.slane %v1284, 7
        %v1942 = vsel %vm767, %v1941, %v1940
        %v1943 = vrot.slane %v1285, 6
        %v1944 = vsel %vm770, %v1943, %v1942
        %v1945 = vrot.slane %v1286, 5
        %v1946 = vsel %vm773, %v1945, %v1944
        %v1947 = vrot.slane %v1287, 4
        %v1948 = vsel %vm776, %v1947, %v1946
        %v1949 = vrot.slane %v1288, 3
        %v1950 = vsel %vm779, %v1949, %v1948
        %v1951 = vrot.slane %v1289, 2
        %v1952 = vpack.c.b16 %v1950, %v1936
        %v1953 = vpack.c.b16 %v1951, %v1951
        %v1956 = vsel %vm1044, %v1921, 0
        %v1959 = vsel %vm1044, %v1922, 0
        %v1962 = vand.u32 %v1953, %v1329
        %1964 = vmatprep.subr.bf16.mxu0 0
        %1965 = vmatpush1.bf16.msra.mxu0 %v1952
        %1966 = vmatprep.subr.bf16.mxu0 0
        %1967 = vmatpush1.bf16.msra.mxu0 %v1962
        %1968 = vmatprep.subr.bf16.mxu0 0
        %1969 = vmatpush1.bf16.msra.mxu0 0
        %1970 = vmatprep.subr.bf16.mxu0 0
        %1971 = vmatpush1.bf16.msra.mxu0 0
        %1972 = vmatprep.subr.bf16.mxu0 0
        %1973 = vmatpush1.bf16.msra.mxu0 0
        %1974 = vmatprep.subr.bf16.mxu0 0
        %1975 = vmatpush1.bf16.msra.mxu0 0
        %1976 = vmatprep.subr.bf16.mxu0 0
        %1977 = vmatpush1.bf16.msra.mxu0 0
        %1978 = vmatprep.subr.bf16.mxu0 0
        %1979 = vmatpush1.bf16.msra.mxu0 0
        %1980 = vmatprep.subr.bf16.mxu0 0
        %1981 = vmatpush1.bf16.msra.mxu0 0
        %1982 = vmatprep.subr.bf16.mxu0 0
        %1983 = vmatpush1.bf16.msra.mxu0 0
        %1984 = vmatprep.subr.bf16.mxu0 0
        %1985 = vmatpush1.bf16.msra.mxu0 0
        %1986 = vmatprep.subr.bf16.mxu0 0
        %1987 = vmatpush1.bf16.msra.mxu0 0
        %1988 = vmatprep.subr.bf16.mxu0 0
        %1989 = vmatpush1.bf16.msra.mxu0 0
        %1990 = vmatprep.subr.bf16.mxu0 0
        %1991 = vmatpush1.bf16.msra.mxu0 0
        %1992 = vmatprep.subr.bf16.mxu0 0
        %1993 = vmatpush1.bf16.msra.mxu0 0
        %1994 = vmatprep.subr.bf16.mxu0 0
        %1995 = vmatpush1.bf16.msra.mxu0 0
        %1996 = vmatprep.mubr.bf16.mxu0 0
        %1997 = vmatmul.mubr.bf16.gmra.mrb[0].mxu0 %v1956
        %v1998 = vpop.f32.mrb[0].mxu0
        %v1999 = vadd.f32 0.0, %v1998
        %v2000 = vpop.f32.mrb[0].mxu0
        %v2001 = vpop.f32.mrb[0].mxu0
        %v2002 = vadd.f32 0.0, %v2001
        %v2003 = vpop.f32.mrb[0].mxu0
        %2004 = vmatprep.mubr.bf16.mxu0 0
        %2005 = vmatmul.mubr.bf16.gmra.mrb[0].mxu0 %v1959
        %v2006 = vpop.f32.mrb[0].mxu0
        %v2007 = vadd.f32 0.0, %v2006
        %v2008 = vpop.f32.mrb[0].mxu0
        %v2009 = vpop.f32.mrb[0].mxu0
        %v2010 = vpop.f32.mrb[0].mxu0
        %2011 = vdwg.mxu0
        %v2012 = vadd.f32 %v1918, %v1999
        %v2013 = vadd.f32 %v1919, %v2002
        %v2014 = vadd.f32 %v1920, %v2007
        %2015 = vst.msk [vmem:[%s1899] sm:$0xff] %vm980, %v2012
        %2016 = vst.msk [vmem:[%s1899 + $0x8] sm:$0xff] %vm980, %v2013
        %2017 = vst.msk [vmem:[%s1899 + $0x10] sm:$0x1] %vm1386, %v2014
        %2018 = vst.msk [vmem:[%s1828] sm:$0xff] %vm1109, %v1841
        %2019 = vst.msk [vmem:[%s1828 + $0x8] sm:$0xff] %vm1109, %v1842
        %2020 = vst.msk [vmem:[%s1828 + $0x10] sm:$0x1] %vm1112, %v1843
        %v2021 = vrot.slane %v743, 3
        %v2022 = vrot.slane %v744, 2
        %v2023 = vsel %vm761, %v2022, %v2021
        %v2024 = vrot.slane %v745, 1
        %v2025 = vsel %vm764, %v2024, %v2023
        %v2026 = vsel %vm767, %v746, %v2025
        %v2027 = vrot.slane %v747, 7
        %v2028 = vsel %vm770, %v2027, %v2026
        %v2029 = vrot.slane %v748, 6
        %v2030 = vsel %vm773, %v2029, %v2028
        %v2031 = vrot.slane %v749, 5
        %v2032 = vsel %vm776, %v2031, %v2030
        %v2033 = vrot.slane %v750, 4
        %v2034 = vsel %vm779, %v2033, %v2032
        %v2035 = vrot.slane %v751, 3
        %v2036 = vrot.slane %v752, 2
        %v2037 = vsel %vm761, %v2036, %v2035
        %v2038 = vrot.slane %v753, 1
        %v2039 = vsel %vm764, %v2038, %v2037
        %v2040 = vsel %vm767, %v754, %v2039
        %v2041 = vrot.slane %v755, 7
        %v2042 = vsel %vm770, %v2041, %v2040
        %v2043 = vrot.slane %v756, 6
        %v2044 = vsel %vm773, %v2043, %v2042
        %v2045 = vrot.slane %v757, 5
        %v2046 = vsel %vm776, %v2045, %v2044
        %v2047 = vrot.slane %v758, 4
        %v2048 = vsel %vm779, %v2047, %v2046
        %v2049 = vrot.slane %v759, 3
        %v2050 = vpack.c.b16 %v2048, %v2034
        %v2051 = vpack.c.b16 %v2049, %v2049
        %v2052 = vrot.slane %v933, 3
        %v2053 = vrot.slane %v934, 2
        %v2054 = vsel %vm761, %v2053, %v2052
        %v2055 = vrot.slane %v935, 1
        %v2056 = vsel %vm764, %v2055, %v2054
        %v2057 = vsel %vm767, %v936, %v2056
        %v2058 = vrot.slane %v937, 7
        %v2059 = vsel %vm770, %v2058, %v2057
        %v2060 = vrot.slane %v938, 6
        %v2061 = vsel %vm773, %v2060, %v2059
        %v2062 = vrot.slane %v939, 5
        %v2063 = vsel %vm776, %v2062, %v2061
        %v2064 = vrot.slane %v940, 4
        %v2065 = vsel %vm779, %v2064, %v2063
        %v2066 = vrot.slane %v941, 3
        %v2067 = vrot.slane %v942, 2
        %v2068 = vsel %vm761, %v2067, %v2066
        %v2069 = vrot.slane %v943, 1
        %v2070 = vsel %vm764, %v2069, %v2068
        %v2071 = vsel %vm767, %v944, %v2070
        %v2072 = vrot.slane %v945, 7
        %v2073 = vsel %vm770, %v2072, %v2071
        %v2074 = vrot.slane %v946, 6
        %v2075 = vsel %vm773, %v2074, %v2073
        %v2076 = vrot.slane %v947, 5
        %v2077 = vsel %vm776, %v2076, %v2075
        %v2078 = vrot.slane %v948, 4
        %v2079 = vsel %vm779, %v2078, %v2077
        %v2080 = vrot.slane %v949, 3
        %v2081 = vpack.c.b16 %v2079, %v2065
        %v2082 = vpack.c.b16 %v2080, %v2080
        %v2084 = vsel %vm980, %v2050, 0
        %v2087 = vsel %vm980, %v2051, 0
        %v2090 = vsel %vm980, %v2081, 0
        %v2093 = vsel %vm980, %v2082, 0
        %2095 = vmatprep.subr.bf16.mxu0 0
        %2096 = vmatpush1.bf16.xpose.msra.mxu0 %v2090
        %2097 = vmatprep.subr.bf16.mxu0 0
        %2098 = vmatpush1.bf16.xpose.msra.mxu0 %v2093
        %2099 = vmatprep.subr.bf16.mxu0 0
        %2100 = vmatpush1.bf16.xpose.msra.mxu0 0
        %2101 = vmatprep.subr.bf16.mxu0 0
        %2102 = vmatpush1.bf16.xpose.msra.mxu0 0
        %2103 = vmatprep.subr.bf16.mxu0 0
        %2104 = vmatpush1.bf16.xpose.msra.mxu0 0
        %2105 = vmatprep.subr.bf16.mxu0 0
        %2106 = vmatpush1.bf16.xpose.msra.mxu0 0
        %2107 = vmatprep.subr.bf16.mxu0 0
        %2108 = vmatpush1.bf16.xpose.msra.mxu0 0
        %2109 = vmatprep.subr.bf16.mxu0 0
        %2110 = vmatpush1.bf16.xpose.msra.mxu0 0
        %2111 = vmatprep.subr.bf16.mxu0 0
        %2112 = vmatpush1.bf16.xpose.msra.mxu0 0
        %2113 = vmatprep.subr.bf16.mxu0 0
        %2114 = vmatpush1.bf16.xpose.msra.mxu0 0
        %2115 = vmatprep.subr.bf16.mxu0 0
        %2116 = vmatpush1.bf16.xpose.msra.mxu0 0
        %2117 = vmatprep.subr.bf16.mxu0 0
        %2118 = vmatpush1.bf16.xpose.msra.mxu0 0
        %2119 = vmatprep.subr.bf16.mxu0 0
        %2120 = vmatpush1.bf16.xpose.msra.mxu0 0
        %2121 = vmatprep.subr.bf16.mxu0 0
        %2122 = vmatpush1.bf16.xpose.msra.mxu0 0
        %2123 = vmatprep.subr.bf16.mxu0 0
        %2124 = vmatpush1.bf16.xpose.msra.mxu0 0
        %2125 = vmatprep.subr.bf16.mxu0 0
        %2126 = vmatpush1.bf16.xpose.msra.mxu0 0
        %2127 = vmatprep.mubr.bf16.mxu0 0
        %2128 = vmatmul.mubr.bf16.gmra.mrb[0].mxu0 %v2084
        %v2129 = vpop.f32.mrb[0].mxu0
        %v2130 = vadd.f32 0.0, %v2129
        %v2131 = vpop.f32.mrb[0].mxu0
        %v2132 = vpop.f32.mrb[0].mxu0
        %v2133 = vadd.f32 0.0, %v2132
        %v2134 = vpop.f32.mrb[0].mxu0
        %2135 = vmatprep.mubr.bf16.mxu0 0
        %2136 = vmatmul.mubr.bf16.gmra.mrb[0].mxu0 %v2087
        %v2137 = vpop.f32.mrb[0].mxu0
        %v2138 = vadd.f32 0.0, %v2137
        %v2139 = vpop.f32.mrb[0].mxu0
        %v2140 = vpop.f32.mrb[0].mxu0
        %v2141 = vpop.f32.mrb[0].mxu0
        %2142 = vdwg.mxu0
        %s2143 = scalar_lea.vmem [#allocation2], 72
        %v2144 = vld [vmem:[%s2143] sm:$0xff]
        %v2145 = vld [vmem:[%s2143 + $0x8] sm:$0xff]
        %v2146 = vld [vmem:[%s2143 + $0x10] sm:$0x1]
        %v2147 = vsel %vm1044, %v2130, -inf
        %2148 = vmax.xlane.f32.xlu0 %v2147
        %v2149 = vpop.xlane.xlu0 %2148
        %v2150 = vsel %vm1044, %v2133, -inf
        %2151 = vmax.xlane.f32.xlu0 %v2150
        %v2152 = vpop.xlane.xlu0 %2151
        %v2153 = vsel %vm1051, %v2138, -inf
        %2154 = vmax.xlane.f32.xlu0 %v2153
        %v2155 = vpop.xlane.xlu0 %2154
        %v2156 = vmax.f32 %v2144, %v2149
        %v2157 = vmax.f32 %v2145, %v2152
        %v2158 = vmax.f32 %v2146, %v2155
        %v2159 = vsub.f32 %v2144, %v2156
        %v2160 = vsub.f32 %v2145, %v2157
        %v2161 = vsub.f32 %v2146, %v2158
        %v2162 = vmul.f32 %v2159, 1.442695
        %v2163 = vpow.pop %v2162
        %v2164 = vmul.f32 %v2160, 1.442695
        %v2165 = vpow.pop %v2164
        %v2166 = vmul.f32 %v2161, 1.442695
        %v2167 = vpow.pop %v2166
        %2169 = vset.pattern.permute.xlu0 0
        %2170 = vperm.xlu0 %2169, %v2156
        %v2171 = vpop.permute.xlu0 %2170
        %2174 = vset.pattern.permute.xlu0 0
        %2175 = vperm.xlu0 %2174, %v2157
        %v2176 = vpop.permute.xlu0 %2175
        %2179 = vset.pattern.permute.xlu0 0
        %2180 = vperm.xlu0 %2179, %v2158
        %v2181 = vpop.permute.xlu0 %2180
        %v2183 = vsub.f32 %v2130, %v2171
        %v2184 = vsub.f32 %v2133, %v2176
        %v2185 = vsub.f32 %v2138, %v2181
        %v2186 = vmul.f32 %v2183, 1.442695
        %v2187 = vpow.pop %v2186
        %v2188 = vmul.f32 %v2184, 1.442695
        %v2189 = vpow.pop %v2188
        %v2190 = vmul.f32 %v2185, 1.442695
        %v2191 = vpow.pop %v2190
        %s2192 = scalar_lea.vmem [#allocation3], 72
        %v2193 = vld [vmem:[%s2192] sm:$0xff]
        %v2194 = vld [vmem:[%s2192 + $0x8] sm:$0xff]
        %v2195 = vld [vmem:[%s2192 + $0x10] sm:$0x1]
        %v2196 = vmul.f32 %v2163, %v2193
        %v2197 = vmul.f32 %v2165, %v2194
        %v2198 = vmul.f32 %v2167, %v2195
        %v2199 = vsel %vm1044, %v2187, 0.0
        %2200 = vadd.xlane.f32.xlu0 %v2199
        %v2201 = vpop.xlane.xlu0 %2200
        %v2202 = vsel %vm1044, %v2189, 0.0
        %2203 = vadd.xlane.f32.xlu0 %v2202
        %v2204 = vpop.xlane.xlu0 %2203
        %v2205 = vsel %vm1051, %v2191, 0.0
        %2206 = vadd.xlane.f32.xlu0 %v2205
        %v2207 = vpop.xlane.xlu0 %2206
        %v2208 = vadd.f32 %v2196, %v2201
        %v2209 = vadd.f32 %v2197, %v2204
        %v2210 = vadd.f32 %v2198, %v2207
        %2211 = vst.msk [vmem:[%s2192] sm:$0xff] %vm1109, %v2208
        %2212 = vst.msk [vmem:[%s2192 + $0x8] sm:$0xff] %vm1109, %v2209
        %2213 = vst.msk [vmem:[%s2192 + $0x10] sm:$0x1] %vm1112, %v2210
        %s2214 = scalar_lea.vmem [#allocation4], 72
        %v2215 = vld [vmem:[%s2214] sm:$0xff]
        %v2216 = vld [vmem:[%s2214 + $0x8] sm:$0xff]
        %v2217 = vld [vmem:[%s2214 + $0x10] sm:$0x1]
        %2219 = vset.pattern.permute.xlu0 0
        %2220 = vperm.xlu0 %2219, %v2163
        %v2221 = vpop.permute.xlu0 %2220
        %2224 = vset.pattern.permute.xlu0 0
        %2225 = vperm.xlu0 %2224, %v2165
        %v2226 = vpop.permute.xlu0 %2225
        %2229 = vset.pattern.permute.xlu0 0
        %2230 = vperm.xlu0 %2229, %v2167
        %v2231 = vpop.permute.xlu0 %2230
        %v2233 = vmul.f32 %v2221, %v2215
        %v2234 = vmul.f32 %v2226, %v2216
        %v2235 = vmul.f32 %v2231, %v2217
        %v2236 = vpack.c.bf16 %v2189, %v2187
        %v2237 = vpack.c.bf16 %v2191, %v2191
        %v2238 = vrot.slane %v1273, 3
        %v2239 = vrot.slane %v1274, 2
        %v2240 = vsel %vm761, %v2239, %v2238
        %v2241 = vrot.slane %v1275, 1
        %v2242 = vsel %vm764, %v2241, %v2240
        %v2243 = vsel %vm767, %v1276, %v2242
        %v2244 = vrot.slane %v1277, 7
        %v2245 = vsel %vm770, %v2244, %v2243
        %v2246 = vrot.slane %v1278, 6
        %v2247 = vsel %vm773, %v2246, %v2245
        %v2248 = vrot.slane %v1279, 5
        %v2249 = vsel %vm776, %v2248, %v2247
        %v2250 = vrot.slane %v1280, 4
        %v2251 = vsel %vm779, %v2250, %v2249
        %v2252 = vrot.slane %v1281, 3
        %v2253 = vrot.slane %v1282, 2
        %v2254 = vsel %vm761, %v2253, %v2252
        %v2255 = vrot.slane %v1283, 1
        %v2256 = vsel %vm764, %v2255, %v2254
        %v2257 = vsel %vm767, %v1284, %v2256
        %v2258 = vrot.slane %v1285, 7
        %v2259 = vsel %vm770, %v2258, %v2257
        %v2260 = vrot.slane %v1286, 6
        %v2261 = vsel %vm773, %v2260, %v2259
        %v2262 = vrot.slane %v1287, 5
        %v2263 = vsel %vm776, %v2262, %v2261
        %v2264 = vrot.slane %v1288, 4
        %v2265 = vsel %vm779, %v2264, %v2263
        %v2266 = vrot.slane %v1289, 3
        %v2267 = vpack.c.b16 %v2265, %v2251
        %v2268 = vpack.c.b16 %v2266, %v2266
        %v2271 = vsel %vm1044, %v2236, 0
        %v2274 = vsel %vm1044, %v2237, 0
        %v2277 = vand.u32 %v2268, %v1329
        %2279 = vmatprep.subr.bf16.mxu0 0
        %2280 = vmatpush1.bf16.msra.mxu0 %v2267
        %2281 = vmatprep.subr.bf16.mxu0 0
        %2282 = vmatpush1.bf16.msra.mxu0 %v2277
        %2283 = vmatprep.subr.bf16.mxu0 0
        %2284 = vmatpush1.bf16.msra.mxu0 0
        %2285 = vmatprep.subr.bf16.mxu0 0
        %2286 = vmatpush1.bf16.msra.mxu0 0
        %2287 = vmatprep.subr.bf16.mxu0 0
        %2288 = vmatpush1.bf16.msra.mxu0 0
        %2289 = vmatprep.subr.bf16.mxu0 0
        %2290 = vmatpush1.bf16.msra.mxu0 0
        %2291 = vmatprep.subr.bf16.mxu0 0
        %2292 = vmatpush1.bf16.msra.mxu0 0
        %2293 = vmatprep.subr.bf16.mxu0 0
        %2294 = vmatpush1.bf16.msra.mxu0 0
        %2295 = vmatprep.subr.bf16.mxu0 0
        %2296 = vmatpush1.bf16.msra.mxu0 0
        %2297 = vmatprep.subr.bf16.mxu0 0
        %2298 = vmatpush1.bf16.msra.mxu0 0
        %2299 = vmatprep.subr.bf16.mxu0 0
        %2300 = vmatpush1.bf16.msra.mxu0 0
        %2301 = vmatprep.subr.bf16.mxu0 0
        %2302 = vmatpush1.bf16.msra.mxu0 0
        %2303 = vmatprep.subr.bf16.mxu0 0
        %2304 = vmatpush1.bf16.msra.mxu0 0
        %2305 = vmatprep.subr.bf16.mxu0 0
        %2306 = vmatpush1.bf16.msra.mxu0 0
        %2307 = vmatprep.subr.bf16.mxu0 0
        %2308 = vmatpush1.bf16.msra.mxu0 0
        %2309 = vmatprep.subr.bf16.mxu0 0
        %2310 = vmatpush1.bf16.msra.mxu0 0
        %2311 = vmatprep.mubr.bf16.mxu0 0
        %2312 = vmatmul.mubr.bf16.gmra.mrb[0].mxu0 %v2271
        %v2313 = vpop.f32.mrb[0].mxu0
        %v2314 = vadd.f32 0.0, %v2313
        %v2315 = vpop.f32.mrb[0].mxu0
        %v2316 = vpop.f32.mrb[0].mxu0
        %v2317 = vadd.f32 0.0, %v2316
        %v2318 = vpop.f32.mrb[0].mxu0
        %2319 = vmatprep.mubr.bf16.mxu0 0
        %2320 = vmatmul.mubr.bf16.gmra.mrb[0].mxu0 %v2274
        %v2321 = vpop.f32.mrb[0].mxu0
        %v2322 = vadd.f32 0.0, %v2321
        %v2323 = vpop.f32.mrb[0].mxu0
        %v2324 = vpop.f32.mrb[0].mxu0
        %v2325 = vpop.f32.mrb[0].mxu0
        %2326 = vdwg.mxu0
        %v2327 = vadd.f32 %v2233, %v2314
        %v2328 = vadd.f32 %v2234, %v2317
        %v2329 = vadd.f32 %v2235, %v2322
        %2330 = vst.msk [vmem:[%s2214] sm:$0xff] %vm980, %v2327
        %2331 = vst.msk [vmem:[%s2214 + $0x8] sm:$0xff] %vm980, %v2328
        %2332 = vst.msk [vmem:[%s2214 + $0x10] sm:$0x1] %vm1386, %v2329
        %2333 = vst.msk [vmem:[%s2143] sm:$0xff] %vm1109, %v2156
        %2334 = vst.msk [vmem:[%s2143 + $0x8] sm:$0xff] %vm1109, %v2157
        %2335 = vst.msk [vmem:[%s2143 + $0x10] sm:$0x1] %vm1112, %v2158
        // Predicated region
        $region160: #{encoder_decoder_forward.18} parent=142 // pred_check
          %p2336 = pneg %p580
        $region161: #{encoder_decoder_forward.18} parent=142 // pred_check_branch
          %2338 = sbr.rel (%p2336) target = $region163
        $region162: #{encoder_decoder_forward.18} parent=142 // pred_region
          %v2339 = vld [vmem:[#allocation4] sm:$0xff]
          %v2340 = vld [vmem:[#allocation4 + $0x8] sm:$0xff]
          %v2341 = vld [vmem:[#allocation4 + $0x10] sm:$0x1]
          %v2342 = vld [vmem:[#allocation3] sm:$0xff]
          %v2343 = vld [vmem:[#allocation3 + $0x8] sm:$0xff]
          %v2344 = vld [vmem:[#allocation3 + $0x10] sm:$0x1]
          %v2345 = vrcp.pop %v2342
          %v2346 = vrcp.pop %v2343
          %v2347 = vrcp.pop %v2344
          %2349 = vset.pattern.permute.xlu0 0
          %2350 = vperm.xlu0 %2349, %v2345
          %v2351 = vpop.permute.xlu0 %2350
          %2354 = vset.pattern.permute.xlu0 0
          %2355 = vperm.xlu0 %2354, %v2346
          %v2356 = vpop.permute.xlu0 %2355
          %2359 = vset.pattern.permute.xlu0 0
          %2360 = vperm.xlu0 %2359, %v2347
          %v2361 = vpop.permute.xlu0 %2360
          %v2363 = vmul.f32 %v2339, %v2351
          %v2364 = vmul.f32 %v2340, %v2356
          %v2365 = vmul.f32 %v2341, %v2361
          %v2366 = vpack.c.bf16 %v2364, %v2363
          %v2367 = vpack.c.bf16 %v2365, %v2365
          %v2370 = vunpack.c.l.b16 %v2366
          %v2371 = vunpack.c.h.b16 %v2366
          %v2372 = vunpack.c.l.b16 %v2367
          %v2373 = vpack.c.b16 %v2370, %v2370
          %v2374 = vpack.c.b16 %v2371, %v2371
          %v2375 = vpack.c.b16 %v2372, %v2372
          %vm2379 = vcmask 60416
          %2380 = vst.msk [vmem:[%s577] sm:$0xf] %vm2379, %v2373
          %2381 = vst.msk [vmem:[%s577 + $0x4] sm:$0xf] %vm2379, %v2374
          %vm2382 = vcmask 57344
          %vm2383 = vsmask.f32 256
          %vm2384 = vmand %vm2382, %vm2383
          %v2385 = vld [vmem:[%s577 + $0x8] sm:$0x1]
          %v2386 = vsel %vm2384, %v2375, %v2385
          %2387 = vst [vmem:[%s577 + $0x8] sm:$0x1] %v2386
          %v2388 = vld [vmem:[%s1584] sm:$0xff]
          %v2389 = vld [vmem:[%s1584 + $0x8] sm:$0xff]
          %v2390 = vld [vmem:[%s1584 + $0x10] sm:$0x1]
          %v2391 = vld [vmem:[%s1562] sm:$0xff]
          %v2392 = vld [vmem:[%s1562 + $0x8] sm:$0xff]
          %v2393 = vld [vmem:[%s1562 + $0x10] sm:$0x1]
          %v2394 = vrcp.pop %v2391
          %v2395 = vrcp.pop %v2392
          %v2396 = vrcp.pop %v2393
          %2398 = vset.pattern.permute.xlu0 0
          %2399 = vperm.xlu0 %2398, %v2394
          %v2400 = vpop.permute.xlu0 %2399
          %2403 = vset.pattern.permute.xlu0 0
          %2404 = vperm.xlu0 %2403, %v2395
          %v2405 = vpop.permute.xlu0 %2404
          %2408 = vset.pattern.permute.xlu0 0
          %2409 = vperm.xlu0 %2408, %v2396
          %v2410 = vpop.permute.xlu0 %2409
          %v2412 = vmul.f32 %v2388, %v2400
          %v2413 = vmul.f32 %v2389, %v2405
          %v2414 = vmul.f32 %v2390, %v2410
          %v2415 = vpack.c.bf16 %v2413, %v2412
          %v2416 = vpack.c.bf16 %v2414, %v2414
          %v2419 = vunpack.c.l.b16 %v2415
          %v2420 = vunpack.c.h.b16 %v2415
          %v2421 = vunpack.c.l.b16 %v2416
          %v2422 = vpack.c.b16 %v2419, %v2419
          %v2423 = vpack.c.b16 %v2420, %v2420
          %v2424 = vpack.c.b16 %v2421, %v2421
          %2425 = vrot.lane.b32.xlu0 %v2422, 8
          %v2426 = vpop.permute.xlu0 %2425
          %2427 = vrot.lane.b32.xlu0 %v2423, 8
          %v2428 = vpop.permute.xlu0 %2427
          %2429 = vrot.lane.b32.xlu0 %v2424, 8
          %v2430 = vpop.permute.xlu0 %2429
          %vm2434 = vcmask 126016
          %2435 = vst.msk [vmem:[%s577] sm:$0xf] %vm2434, %v2426
          %2436 = vst.msk [vmem:[%s577 + $0x4] sm:$0xf] %vm2434, %v2428
          %vm2437 = vcmask 122944
          %vm2438 = vmand %vm2437, %vm2383
          %v2439 = vld [vmem:[%s577 + $0x8] sm:$0x1]
          %v2440 = vsel %vm2438, %v2430, %v2439
          %2441 = vst [vmem:[%s577 + $0x8] sm:$0x1] %v2440
          %v2442 = vld [vmem:[%s1899] sm:$0xff]
          %v2443 = vld [vmem:[%s1899 + $0x8] sm:$0xff]
          %v2444 = vld [vmem:[%s1899 + $0x10] sm:$0x1]
          %v2445 = vld [vmem:[%s1877] sm:$0xff]
          %v2446 = vld [vmem:[%s1877 + $0x8] sm:$0xff]
          %v2447 = vld [vmem:[%s1877 + $0x10] sm:$0x1]
          %v2448 = vrcp.pop %v2445
          %v2449 = vrcp.pop %v2446
          %v2450 = vrcp.pop %v2447
          %2452 = vset.pattern.permute.xlu0 0
          %2453 = vperm.xlu0 %2452, %v2448
          %v2454 = vpop.permute.xlu0 %2453
          %2457 = vset.pattern.permute.xlu0 0
          %2458 = vperm.xlu0 %2457, %v2449
          %v2459 = vpop.permute.xlu0 %2458
          %2462 = vset.pattern.permute.xlu0 0
          %2463 = vperm.xlu0 %2462, %v2450
          %v2464 = vpop.permute.xlu0 %2463
          %v2466 = vmul.f32 %v2442, %v2454
          %v2467 = vmul.f32 %v2443, %v2459
          %v2468 = vmul.f32 %v2444, %v2464
          %v2469 = vpack.c.bf16 %v2467, %v2466
          %v2470 = vpack.c.bf16 %v2468, %v2468
          %v2473 = vunpack.c.l.b16 %v2469
          %v2474 = vunpack.c.h.b16 %v2469
          %v2475 = vunpack.c.l.b16 %v2470
          %v2476 = vpack.c.b16 %v2473, %v2473
          %v2477 = vpack.c.b16 %v2474, %v2474
          %v2478 = vpack.c.b16 %v2475, %v2475
          %2479 = vrot.lane.b32.xlu0 %v2476, 16
          %v2480 = vpop.permute.xlu0 %2479
          %2481 = vrot.lane.b32.xlu0 %v2477, 16
          %v2482 = vpop.permute.xlu0 %2481
          %2483 = vrot.lane.b32.xlu0 %v2478, 16
          %v2484 = vpop.permute.xlu0 %2483
          %vm2488 = vcmask 191616
          %2489 = vst.msk [vmem:[%s577] sm:$0xf] %vm2488, %v2480
          %2490 = vst.msk [vmem:[%s577 + $0x4] sm:$0xf] %vm2488, %v2482
          %vm2491 = vcmask 188544
          %vm2492 = vmand %vm2491, %vm2383
          %v2493 = vld [vmem:[%s577 + $0x8] sm:$0x1]
          %v2494 = vsel %vm2492, %v2484, %v2493
          %2495 = vst [vmem:[%s577 + $0x8] sm:$0x1] %v2494
          %v2496 = vld [vmem:[%s2214] sm:$0xff]
          %v2497 = vld [vmem:[%s2214 + $0x8] sm:$0xff]
          %v2498 = vld [vmem:[%s2214 + $0x10] sm:$0x1]
          %v2499 = vld [vmem:[%s2192] sm:$0xff]
          %v2500 = vld [vmem:[%s2192 + $0x8] sm:$0xff]
          %v2501 = vld [vmem:[%s2192 + $0x10] sm:$0x1]
          %v2502 = vrcp.pop %v2499
          %v2503 = vrcp.pop %v2500
          %v2504 = vrcp.pop %v2501
          %2506 = vset.pattern.permute.xlu0 0
          %2507 = vperm.xlu0 %2506, %v2502
          %v2508 = vpop.permute.xlu0 %2507
          %2511 = vset.pattern.permute.xlu0 0
          %2512 = vperm.xlu0 %2511, %v2503
          %v2513 = vpop.permute.xlu0 %2512
          %2516 = vset.pattern.permute.xlu0 0
          %2517 = vperm.xlu0 %2516, %v2504
          %v2518 = vpop.permute.xlu0 %2517
          %v2520 = vmul.f32 %v2496, %v2508
          %v2521 = vmul.f32 %v2497, %v2513
          %v2522 = vmul.f32 %v2498, %v2518
          %v2523 = vpack.c.bf16 %v2521, %v2520
          %v2524 = vpack.c.bf16 %v2522, %v2522
          %v2527 = vunpack.c.l.b16 %v2523
          %v2528 = vunpack.c.h.b16 %v2523
          %v2529 = vunpack.c.l.b16 %v2524
          %v2530 = vpack.c.b16 %v2527, %v2527
          %v2531 = vpack.c.b16 %v2528, %v2528
          %v2532 = vpack.c.b16 %v2529, %v2529
          %2533 = vrot.lane.b32.xlu0 %v2530, 24
          %v2534 = vpop.permute.xlu0 %2533
          %2535 = vrot.lane.b32.xlu0 %v2531, 24
          %v2536 = vpop.permute.xlu0 %2535
          %2537 = vrot.lane.b32.xlu0 %v2532, 24
          %v2538 = vpop.permute.xlu0 %2537
          %vm2542 = vcmask 257216
          %2543 = vst.msk [vmem:[%s577] sm:$0xf] %vm2542, %v2534
          %2544 = vst.msk [vmem:[%s577 + $0x4] sm:$0xf] %vm2542, %v2536
          %vm2545 = vcmask 254144
          %vm2546 = vmand %vm2545, %vm2383
          %v2547 = vld [vmem:[%s577 + $0x8] sm:$0x1]
          %v2548 = vsel %vm2546, %v2538, %v2547
          %2549 = vst [vmem:[%s577 + $0x8] sm:$0x1] %v2548
        $region163: #{encoder_decoder_forward.18} parent=142 // pred_fallthru
          _
        %s2550 = smul.u32 3, %s20
        %p2551 = scmp.lt.s32.totalorder %s19, 1
        %s2552 = scalar_select %p2551, %s19, 1
        %p2553 = scmp.lt.s32.totalorder %s2550, 2
        %s2554 = scalar_select %p2553, %s2550, 2
        %s2555 = smul.addr %s2552, 3
        %s2556 = sadd.s32 %s2554, %s2555
        %s2557 = smul.addr %s2556, 4
        %s2558 = scalar_lea.vmem %s3, %s2557
        // Predicated region
        $region164: #{encoder_decoder_forward.18} parent=142 // pred_check
          %p2559 = pneg %p137
        $region165: #{encoder_decoder_forward.18} parent=142 // pred_check_branch
          %2561 = sbr.rel (%p2559) target = $region167
        $region166: #{encoder_decoder_forward.18} parent=142 // pred_region
          %s2562 = smul.u32 3, %s20
        $region167: #{encoder_decoder_forward.18} parent=142 // pred_fallthru
          _
      $region143: #{encoder_decoder_forward.18} parent=5 // pred_fallthru
        _
      %p2563 = scmp.le.s32.totalorder 2, %s9
      // Predicated region
      $region168: #{encoder_decoder_forward.18} parent=5 // pred_check
        %p2564 = pneg %p2563
      $region169: #{encoder_decoder_forward.18} parent=5 // pred_check_branch
        %2566 = sbr.rel (%p2564) target = $region171
      $region170: #{encoder_decoder_forward.18} parent=5 // pred_region
        %s2567 = ssub.s32 %s9, 2
        // Predicated region
        $region172: #{encoder_decoder_forward.18} parent=170 // pred_check
          %p2568 = pneg %p143
        $region173: #{encoder_decoder_forward.18} parent=170 // pred_check_branch
          %2570 = sbr.rel (%p2568) target = $region175
        $region174: #{encoder_decoder_forward.18} parent=170 // pred_region
          %s2571 = smul.u32 3, %s23
          %p2572 = scmp.lt.s32.totalorder %s22, 1
          %s2573 = scalar_select %p2572, %s22, 1
          %p2574 = scmp.lt.s32.totalorder %s2571, 2
          %s2575 = scalar_select %p2574, %s2571, 2
          %s2576 = smul.addr %s2573, 3
          %s2577 = sadd.s32 %s2575, %s2576
          %s2578 = smul.addr %s2577, 4
          %s2579 = scalar_lea.vmem %s3, %s2578
        $region175: #{encoder_decoder_forward.18} parent=170 // pred_fallthru
          _
      $region171: #{encoder_decoder_forward.18} parent=5 // pred_fallthru
        _
    $region6: #{encoder_decoder_forward.18} parent=1 // loop_footer
      %s13 = sadd.s32 1, %s9
    $region7: #{encoder_decoder_forward.18} parent=1 // loop_footer_branch
      %8 = sbr.rel target = $region3
    $region8: #{encoder_decoder_forward.18} parent=1 // loop_exit
      _

</llo_original>
